<compile_context>
chip_gen: v7x
topology: tpu7x:2x2x1
jax: 0.10.0
libtpu: 0.0.40
codegen_flags: <defaults>
</compile_context>

<pallas_src>
import functools

import jax
import jax.numpy as jnp
import numpy as np
from jax.experimental import pallas as pl
from jax.experimental.pallas import tpu as pltpu

MATMUL_DTYPE = jnp.bfloat16   # MXU operand dtype (accumulation stays f32)


# --------------------- math shared by kernel and reference ---------------------
def _mm(a, w):
    """MXU matmul: bf16 operands, f32 accumulation."""
    return jnp.dot(a.astype(MATMUL_DTYPE), w.astype(MATMUL_DTYPE),
                   preferred_element_type=jnp.float32)


def _ln(x, g, b, eps=1e-5):
    mu = jnp.mean(x, axis=-1, keepdims=True)
    var = jnp.mean((x - mu) ** 2, axis=-1, keepdims=True)
    return (x - mu) * jax.lax.rsqrt(var + eps) * g + b


def _lrelu(x, slope=0.01):
    return jnp.where(x > 0, x, slope * x)


def _sigmoid(x):
    return 1.0 / (1.0 + jnp.exp(-x))


def _input_gates(z, pos, wih, bg):
    """x @ W_ih^T + (b_ih + b_hh); projected / positional parts kept as two
    matmuls so no lane-axis concatenation of the activations is needed."""
    p = z.shape[-1]
    return _mm(z, wih[:p]) + _mm(pos, wih[p:]) + bg


def _lstm_step(g_in, h_prev, c_prev, whh):
    """One PyTorch-style LSTM cell step (gate order i, f, g, o)."""
    hd = whh.shape[0]
    g = g_in + jnp.dot(h_prev, whh, preferred_element_type=jnp.float32)
    i = _sigmoid(g[:, 0 * hd:1 * hd])
    f = _sigmoid(g[:, 1 * hd:2 * hd])
    gg = jnp.tanh(g[:, 2 * hd:3 * hd])
    o = _sigmoid(g[:, 3 * hd:4 * hd])
    c = f * c_prev + i * gg
    return o * jnp.tanh(c), c


def _l2_normalize(v, eps=1e-12):                       # F.normalize(dim=-1)
    nrm = jnp.sqrt(jnp.sum(v * v, axis=-1, keepdims=True))
    return v / jnp.maximum(nrm, eps)


# ------------------------------- Pallas kernel -------------------------------
def _abmap_kernel(x_ref, pos_ref,
                  w1, b1, g1, be1,
                  w2, b2, g2, be2,
                  w3, b3, g3, be3,
                  wih_f, bgf, wih_r, bgr,
                  whh_f, whh_r, tw, tb,
                  pred_ref, x1n_ref, x2n_ref):
    two, bt, s, e = x_ref.shape          # (2 streams, Bt batch, S time, E feat)
    n = two * bt                         # fused sequences this grid step
    hd = whh_f.shape[0]

    # ---- projection MLP, fused over all 2*Bt*S rows (one big matmul / layer)
    z = x_ref[...].reshape(n * s, e)
    z = _lrelu(_ln(_mm(z, w1[...]) + b1[...], g1[...], be1[...]))
    z = _lrelu(_ln(_mm(z, w2[...]) + b2[...], g2[...], be2[...]))
    z = _lrelu(_ln(_mm(z, w3[...]) + b3[...], g3[...], be3[...]))
    # TODO(synk): nn.Dropout(p=0.3) is identity here (eval-mode forward only).

    pos = pos_ref[...].reshape(n * s, pos_ref.shape[-1])

    # ---- LSTM input-gate contributions for every timestep, both directions
    gin_f = _input_gates(z, pos, wih_f[...], bgf[...]).reshape(n, s, 4 * hd)
    gin_r = _input_gates(z, pos, wih_r[...], bgr[...]).reshape(n, s, 4 * hd)

    # ---- bidirectional recurrence (only the tiny h @ Whh matmul per step)
    whhf = whh_f[...]
    whhr = whh_r[...]
    hf = jnp.zeros((n, hd), jnp.float32)
    cf = jnp.zeros_like(hf)
    hr = jnp.zeros_like(hf)
    cr = jnp.zeros_like(hf)
    for t in range(s):                   # static unroll; S (CDR length) is small
        hf, cf = _lstm_step(gin_f[:, t, :], hf, cf, whhf)
        hr, cr = _lstm_step(gin_r[:, s - 1 - t, :], hr, cr, whhr)

    emb = jnp.concatenate([hf, hr], axis=-1)   # (n, 2H): [fwd_final, bwd_final]
    e1 = emb[:bt]                              # stream 0 -> x1 sequences
    e2 = emb[bt:]                              # stream 1 -> x2 sequences

    x1n = _l2_normalize(e1)
    x2n = _l2_normalize(e2)
    x1n_ref[0] = x1n
    x2n_ref[0] = x2n

    # cosine similarity (dim=-1, eps=1e-8) + Linear(1,1) transform
    n1 = jnp.sqrt(jnp.sum(x1n * x1n, axis=-1, keepdims=True))
    n2 = jnp.sqrt(jnp.sum(x2n * x2n, axis=-1, keepdims=True))
    cos = jnp.sum(x1n * x2n, axis=-1, keepdims=True) / jnp.maximum(n1 * n2, 1e-8)
    pred_ref[0] = cos * tw[...] + tb[...]


# --------------------------------- wrapper ----------------------------------
def abmap_lstm_forward(x1, x2, x1_mask, x2_mask, task, params, *, block_b=None):
    """x1, x2: (B, S, F) f32.  Returns (pred (B,), x1_emb (B,2H), x2_emb (B,2H))."""
    del x1_mask, x2_mask                 # unused by AbMAPLSTM.forward
    E = params["w1"].shape[0]
    lstm = params["lstm"][task]
    tw, tb = params["transform"][task]
    H = lstm["whh_f"].shape[0]

    B, S, _ = x1.shape
    # slice the projected window and the 4 positional features (…-2204:-4 / -4:)
    feats = jnp.stack([x1[:, :, -(E + 4):-4], x2[:, :, -(E + 4):-4]], axis=0)
    poss = jnp.stack([x1[:, :, -4:], x2[:, :, -4:]], axis=0)

    if block_b is None:                  # aim for >=256 fused rows per grid step
        block_b = max(1, min(B, 256 // max(S, 1)))
    while B % block_b:
        block_b -= 1
    G = B // block_b

    # Big matmul weights in bf16 (half the DMA bytes, MXU bf16 path); biases,
    # LayerNorm params and the recurrent Whh stay f32.
    mdt = MATMUL_DTYPE
    weights = [params["w1"].astype(mdt), params["b1"],
               params["ln1_g"], params["ln1_b"],
               params["w2"].astype(mdt), params["b2"],
               params["ln2_g"], params["ln2_b"],
               params["w3"].astype(mdt), params["b3"],
               params["ln3_g"], params["ln3_b"],
               lstm["wih_f"].astype(mdt), lstm["bg_f"],
               lstm["wih_r"].astype(mdt), lstm["bg_r"],
               lstm["whh_f"], lstm["whh_r"], tw, tb]

    in_specs = [
        pl.BlockSpec((2, block_b, S, E), lambda b: (0, b, 0, 0)),   # features
        pl.BlockSpec((2, block_b, S, 4), lambda b: (0, b, 0, 0)),   # pos feats
    ] + [
        pl.BlockSpec(w.shape, lambda b, _n=w.ndim: (0,) * _n) for w in weights
    ]

    out_shape = (jax.ShapeDtypeStruct((G, block_b, 1), jnp.float32),
                 jax.ShapeDtypeStruct((G, block_b, 2 * H), jnp.float32),
                 jax.ShapeDtypeStruct((G, block_b, 2 * H), jnp.float32))
    out_specs = (pl.BlockSpec((1, block_b, 1), lambda b: (b, 0, 0)),
                 pl.BlockSpec((1, block_b, 2 * H), lambda b: (b, 0, 0)),
                 pl.BlockSpec((1, block_b, 2 * H), lambda b: (b, 0, 0)))

    pred, x1n, x2n = pl.pallas_call(
        _abmap_kernel,
        grid=(G,),
        in_specs=in_specs,
        out_specs=out_specs,
        out_shape=out_shape,
        compiler_params=pltpu.CompilerParams(
            dimension_semantics=("parallel",),          # batch tiles over cores
            vmem_limit_bytes=64 * 1024 * 1024),         # sized for v7x's 64 MiB
    )(feats, poss, *weights)

    return pred.reshape(B), x1n.reshape(B, 2 * H), x2n.reshape(B, 2 * H)


# --------------------- deterministic parameter construction ---------------------
def init_params(key, E, m2, m3, P, H):
    ks = iter(jax.random.split(key, 40))

    def nrm(shape, scale):
        return scale * jax.random.normal(next(ks), shape, jnp.float32)

    def lin(fin, fout):
        return nrm((fin, fout), 1.0 / np.sqrt(fin)), nrm((1, fout), 0.01)

    def lnp(dim):
        return 1.0 + nrm((1, dim), 0.05), nrm((1, dim), 0.05)

    p = {}
    p["w1"], p["b1"] = lin(E, m2)
    p["ln1_g"], p["ln1_b"] = lnp(m2)
    p["w2"], p["b2"] = lin(m2, m3)
    p["ln2_g"], p["ln2_b"] = lnp(m3)
    p["w3"], p["b3"] = lin(m3, P)
    p["ln3_g"], p["ln3_b"] = lnp(P)

    def lstm_branch():
        sc = 1.0 / np.sqrt(H)
        return {"wih_f": nrm((P + 4, 4 * H), sc),
                "bg_f": nrm((1, 4 * H), sc),     # b_ih + b_hh folded together
                "wih_r": nrm((P + 4, 4 * H), sc),
                "bg_r": nrm((1, 4 * H), sc),
                "whh_f": nrm((H, 4 * H), sc),
                "whh_r": nrm((H, 4 * H), sc)}

    p["lstm"] = {0: lstm_branch(), 1: lstm_branch()}         # rnn_struc / rnn_func
    ident = (jnp.ones((1, 1), jnp.float32), jnp.zeros((1, 1), jnp.float32))
    p["transform"] = {0: ident, 1: ident}                    # Linear(1,1) = identity
    return p


# --------------------- pure-JAX reference (same math) ---------------------
def ref_forward(x1, x2, x1_mask, x2_mask, task, params):
    del x1_mask, x2_mask
    E = params["w1"].shape[0]
    lstm = params["lstm"][task]
    tw, tb = params["transform"][task]
    H = lstm["whh_f"].shape[0]

    def project(x):
        B, S, _ = x.shape
        z = x[:, :, -(E + 4):-4].reshape(B * S, E)
        z = _lrelu(_ln(_mm(z, params["w1"]) + params["b1"],
                       params["ln1_g"], params["ln1_b"]))
        z = _lrelu(_ln(_mm(z, params["w2"]) + params["b2"],
                       params["ln2_g"], params["ln2_b"]))
        z = _lrelu(_ln(_mm(z, params["w3"]) + params["b3"],
                       params["ln3_g"], params["ln3_b"]))
        return z, x[:, :, -4:].reshape(B * S, 4), B, S

    def bilstm(z, pos, B, S):
        gf = _input_gates(z, pos, lstm["wih_f"], lstm["bg_f"]).reshape(B, S, 4 * H)
        gr = _input_gates(z, pos, lstm["wih_r"], lstm["bg_r"]).reshape(B, S, 4 * H)
        hf = jnp.zeros((B, H), jnp.float32)
        cf = jnp.zeros_like(hf)
        hr = jnp.zeros_like(hf)
        cr = jnp.zeros_like(hf)
        for t in range(S):
            hf, cf = _lstm_step(gf[:, t], hf, cf, lstm["whh_f"])
            hr, cr = _lstm_step(gr[:, S - 1 - t], hr, cr, lstm["whh_r"])
        return jnp.concatenate([hf, hr], axis=-1)

    e1 = bilstm(*project(x1))
    e2 = bilstm(*project(x2))
    x1n = _l2_normalize(e1)
    x2n = _l2_normalize(e2)
    n1 = jnp.sqrt(jnp.sum(x1n * x1n, -1))
    n2 = jnp.sqrt(jnp.sum(x2n * x2n, -1))
    cos = jnp.sum(x1n * x2n, -1) / jnp.maximum(n1 * n2, 1e-8)
    pred = cos * tw[0, 0] + tb[0, 0]
    return pred, x1n, x2n


if __name__ == "__main__":
    # Small stand-ins for the module's 2200 / 512 / 128 / 50 / 50 dims.
    B, S = 2, 8
    E, M2, M3, P, H = 32, 32, 16, 8, 8
    TOTAL = E + 8            # 4 ignored leading features + E sliced + 4 positional

    key = jax.random.PRNGKey(0)
    k1, k2, kp = jax.random.split(key, 3)
    x1 = jax.random.normal(k1, (B, S, TOTAL), jnp.float32)
    x2 = jax.random.normal(k2, (B, S, TOTAL), jnp.float32)
    x1_mask = jnp.zeros((B, S), dtype=bool)   # accepted but unused (as in PyTorch)
    x2_mask = jnp.zeros((B, S), dtype=bool)

    params = init_params(kp, E, M2, M3, P, H)

    # block_b=1 -> grid=(2,): exercises the batch-tiled parallel grid path.
    pred, e1, e2 = abmap_lstm_forward(x1, x2, x1_mask, x2_mask, task=0,
                                      params=params, block_b=1)
    pred = jax.block_until_ready(pred)
    e1 = jax.block_until_ready(e1)
    e2 = jax.block_until_ready(e2)

    rp, r1, r2 = ref_forward(x1, x2, x1_mask, x2_mask, 0, params)
    rp = jax.block_until_ready(rp)

    assert pred.shape == (B,) and e1.shape == (B, 2 * H) and e2.shape == (B, 2 * H)
    assert np.all(np.isfinite(np.asarray(pred)))
    assert np.max(np.abs(np.asarray(pred) - np.asarray(rp))) < 1e-2, (pred, rp)
    assert np.max(np.abs(np.asarray(e1) - np.asarray(r1))) < 1e-2
    assert np.max(np.abs(np.asarray(e2) - np.asarray(r2))) < 1e-2
    print("KERNEL_OK")
</pallas_src>

<mosaic_0001>
module attributes {stable_mosaic.version = 11 : i64} {
  func.func @_abmap_kernel(%arg0: i32, %arg1: memref<2x1x8x32xf32, #tpu.memory_space<vmem>>, %arg2: memref<2x1x8x4xf32, #tpu.memory_space<vmem>>, %arg3: memref<32x32xbf16, #tpu.memory_space<vmem>>, %arg4: memref<1x32xf32, #tpu.memory_space<vmem>>, %arg5: memref<1x32xf32, #tpu.memory_space<vmem>>, %arg6: memref<1x32xf32, #tpu.memory_space<vmem>>, %arg7: memref<32x16xbf16, #tpu.memory_space<vmem>>, %arg8: memref<1x16xf32, #tpu.memory_space<vmem>>, %arg9: memref<1x16xf32, #tpu.memory_space<vmem>>, %arg10: memref<1x16xf32, #tpu.memory_space<vmem>>, %arg11: memref<16x8xbf16, #tpu.memory_space<vmem>>, %arg12: memref<1x8xf32, #tpu.memory_space<vmem>>, %arg13: memref<1x8xf32, #tpu.memory_space<vmem>>, %arg14: memref<1x8xf32, #tpu.memory_space<vmem>>, %arg15: memref<12x32xbf16, #tpu.memory_space<vmem>>, %arg16: memref<1x32xf32, #tpu.memory_space<vmem>>, %arg17: memref<12x32xbf16, #tpu.memory_space<vmem>>, %arg18: memref<1x32xf32, #tpu.memory_space<vmem>>, %arg19: memref<8x32xf32, #tpu.memory_space<vmem>>, %arg20: memref<8x32xf32, #tpu.memory_space<vmem>>, %arg21: memref<1x1xf32, #tpu.memory_space<vmem>>, %arg22: memref<1x1xf32, #tpu.memory_space<vmem>>, %arg23: memref<1x1x1xf32, #tpu.memory_space<vmem>>, %arg24: memref<1x1x16xf32, #tpu.memory_space<vmem>>, %arg25: memref<1x1x16xf32, #tpu.memory_space<vmem>>) attributes {dimension_semantics = [#tpu.dimension_semantics<parallel>], iteration_bounds = array<i64: 2>, scalar_prefetch = 0 : i64, scratch_operands = 0 : i64, tpu.core_type = #tpu.core_type<tc>, window_params = [{transform_indices = @transform_0, window_bounds = array<i64: 2, 1, 8, 32>}, {transform_indices = @transform_1, window_bounds = array<i64: 2, 1, 8, 4>}, {pipeline_mode = #tpu.pipeline_mode<synchronous>, transform_indices = @transform_2, window_bounds = array<i64: 32, 32>}, {pipeline_mode = #tpu.pipeline_mode<synchronous>, transform_indices = @transform_3, window_bounds = array<i64: 1, 32>}, {pipeline_mode = #tpu.pipeline_mode<synchronous>, transform_indices = @transform_4, window_bounds = array<i64: 1, 32>}, {pipeline_mode = #tpu.pipeline_mode<synchronous>, transform_indices = @transform_5, window_bounds = array<i64: 1, 32>}, {pipeline_mode = #tpu.pipeline_mode<synchronous>, transform_indices = @transform_6, window_bounds = array<i64: 32, 16>}, {pipeline_mode = #tpu.pipeline_mode<synchronous>, transform_indices = @transform_7, window_bounds = array<i64: 1, 16>}, {pipeline_mode = #tpu.pipeline_mode<synchronous>, transform_indices = @transform_8, window_bounds = array<i64: 1, 16>}, {pipeline_mode = #tpu.pipeline_mode<synchronous>, transform_indices = @transform_9, window_bounds = array<i64: 1, 16>}, {pipeline_mode = #tpu.pipeline_mode<synchronous>, transform_indices = @transform_10, window_bounds = array<i64: 16, 8>}, {pipeline_mode = #tpu.pipeline_mode<synchronous>, transform_indices = @transform_11, window_bounds = array<i64: 1, 8>}, {pipeline_mode = #tpu.pipeline_mode<synchronous>, transform_indices = @transform_12, window_bounds = array<i64: 1, 8>}, {pipeline_mode = #tpu.pipeline_mode<synchronous>, transform_indices = @transform_13, window_bounds = array<i64: 1, 8>}, {pipeline_mode = #tpu.pipeline_mode<synchronous>, transform_indices = @transform_14, window_bounds = array<i64: 12, 32>}, {pipeline_mode = #tpu.pipeline_mode<synchronous>, transform_indices = @transform_15, window_bounds = array<i64: 1, 32>}, {pipeline_mode = #tpu.pipeline_mode<synchronous>, transform_indices = @transform_16, window_bounds = array<i64: 12, 32>}, {pipeline_mode = #tpu.pipeline_mode<synchronous>, transform_indices = @transform_17, window_bounds = array<i64: 1, 32>}, {pipeline_mode = #tpu.pipeline_mode<synchronous>, transform_indices = @transform_18, window_bounds = array<i64: 8, 32>}, {pipeline_mode = #tpu.pipeline_mode<synchronous>, transform_indices = @transform_19, window_bounds = array<i64: 8, 32>}, {pipeline_mode = #tpu.pipeline_mode<synchronous>, transform_indices = @transform_20, window_bounds = array<i64: 1, 1>}, {pipeline_mode = #tpu.pipeline_mode<synchronous>, transform_indices = @transform_21, window_bounds = array<i64: 1, 1>}, {transform_indices = @transform_22, window_bounds = array<i64: 1, 1, 1>}, {transform_indices = @transform_23, window_bounds = array<i64: 1, 1, 16>}, {transform_indices = @transform_24, window_bounds = array<i64: 1, 1, 16>}]} {
    %c0 = arith.constant 0 : index
    %c0_0 = arith.constant 0 : index
    %c0_1 = arith.constant 0 : index
    %c0_2 = arith.constant 0 : index
    %0 = vector.load %arg1[%c0, %c0_0, %c0_1, %c0_2] : memref<2x1x8x32xf32, #tpu.memory_space<vmem>>, vector<2x1x8x32xf32>
    %1 = vector.shape_cast %0 : vector<2x1x8x32xf32> to vector<16x32xf32>
    %c0_3 = arith.constant 0 : index
    %c0_4 = arith.constant 0 : index
    %2 = vector.load %arg3[%c0_3, %c0_4] : memref<32x32xbf16, #tpu.memory_space<vmem>>, vector<32x32xbf16>
    %3 = arith.truncf %1 : vector<16x32xf32> to vector<16x32xbf16>
    %cst = arith.constant dense<0.000000e+00> : vector<16x32xf32>
    %4 = tpu.matmul %3, %2, %cst {dimension_numbers = #tpu.dot_dimension_numbers<[1], [0], [0], [1], [0, 0, 1, 1], [], []>} : vector<16x32xbf16>, vector<32x32xbf16>, vector<16x32xf32> -> vector<16x32xf32>
    %c0_5 = arith.constant 0 : index
    %c0_6 = arith.constant 0 : index
    %5 = vector.load %arg4[%c0_5, %c0_6] : memref<1x32xf32, #tpu.memory_space<vmem>>, vector<1x32xf32>
    %6 = vector.broadcast %5 : vector<1x32xf32> to vector<16x32xf32>
    %7 = arith.addf %4, %6 : vector<16x32xf32>
    %c0_7 = arith.constant 0 : index
    %c0_8 = arith.constant 0 : index
    %8 = vector.load %arg5[%c0_7, %c0_8] : memref<1x32xf32, #tpu.memory_space<vmem>>, vector<1x32xf32>
    %c0_9 = arith.constant 0 : index
    %c0_10 = arith.constant 0 : index
    %9 = vector.load %arg6[%c0_9, %c0_10] : memref<1x32xf32, #tpu.memory_space<vmem>>, vector<1x32xf32>
    %cst_11 = arith.constant dense<0.000000e+00> : vector<16xf32>
    %10 = vector.multi_reduction <add>, %7, %cst_11 [1] : vector<16x32xf32> to vector<16xf32>
    %11 = vector.shape_cast %10 : vector<16xf32> to vector<16x1xf32>
    %cst_12 = arith.constant 3.200000e+01 : f32
    %12 = vector.broadcast %cst_12 : f32 to vector<16x1xf32>
    %13 = arith.divf %11, %12 : vector<16x1xf32>
    %14 = vector.broadcast %13 : vector<16x1xf32> to vector<16x32xf32>
    %15 = arith.subf %7, %14 : vector<16x32xf32>
    %16 = arith.mulf %15, %15 : vector<16x32xf32>
    %cst_13 = arith.constant dense<0.000000e+00> : vector<16xf32>
    %17 = vector.multi_reduction <add>, %16, %cst_13 [1] : vector<16x32xf32> to vector<16xf32>
    %18 = vector.shape_cast %17 : vector<16xf32> to vector<16x1xf32>
    %cst_14 = arith.constant 3.200000e+01 : f32
    %19 = vector.broadcast %cst_14 : f32 to vector<16x1xf32>
    %20 = arith.divf %18, %19 : vector<16x1xf32>
    %21 = vector.broadcast %13 : vector<16x1xf32> to vector<16x32xf32>
    %22 = arith.subf %7, %21 : vector<16x32xf32>
    %cst_15 = arith.constant 9.99999974E-6 : f32
    %23 = vector.broadcast %cst_15 : f32 to vector<16x1xf32>
    %24 = arith.addf %20, %23 : vector<16x1xf32>
    %25 = math.rsqrt %24 : vector<16x1xf32>
    %26 = vector.broadcast %25 : vector<16x1xf32> to vector<16x32xf32>
    %27 = arith.mulf %22, %26 : vector<16x32xf32>
    %28 = vector.broadcast %8 : vector<1x32xf32> to vector<16x32xf32>
    %29 = arith.mulf %27, %28 : vector<16x32xf32>
    %30 = vector.broadcast %9 : vector<1x32xf32> to vector<16x32xf32>
    %31 = arith.addf %29, %30 : vector<16x32xf32>
    %cst_16 = arith.constant 0.000000e+00 : f32
    %32 = vector.broadcast %cst_16 : f32 to vector<16x32xf32>
    %33 = arith.cmpf ogt, %31, %32 : vector<16x32xf32>
    %cst_17 = arith.constant 0.00999999977 : f32
    %34 = vector.broadcast %cst_17 : f32 to vector<16x32xf32>
    %35 = arith.mulf %34, %31 : vector<16x32xf32>
    %36 = arith.select %33, %31, %35 : vector<16x32xi1>, vector<16x32xf32>
    %c0_18 = arith.constant 0 : index
    %c0_19 = arith.constant 0 : index
    %37 = vector.load %arg7[%c0_18, %c0_19] : memref<32x16xbf16, #tpu.memory_space<vmem>>, vector<32x16xbf16>
    %38 = arith.truncf %36 : vector<16x32xf32> to vector<16x32xbf16>
    %cst_20 = arith.constant dense<0.000000e+00> : vector<16x16xf32>
    %39 = tpu.matmul %38, %37, %cst_20 {dimension_numbers = #tpu.dot_dimension_numbers<[1], [0], [0], [1], [0, 0, 1, 1], [], []>} : vector<16x32xbf16>, vector<32x16xbf16>, vector<16x16xf32> -> vector<16x16xf32>
    %c0_21 = arith.constant 0 : index
    %c0_22 = arith.constant 0 : index
    %40 = vector.load %arg8[%c0_21, %c0_22] : memref<1x16xf32, #tpu.memory_space<vmem>>, vector<1x16xf32>
    %41 = vector.broadcast %40 : vector<1x16xf32> to vector<16x16xf32>
    %42 = arith.addf %39, %41 : vector<16x16xf32>
    %c0_23 = arith.constant 0 : index
    %c0_24 = arith.constant 0 : index
    %43 = vector.load %arg9[%c0_23, %c0_24] : memref<1x16xf32, #tpu.memory_space<vmem>>, vector<1x16xf32>
    %c0_25 = arith.constant 0 : index
    %c0_26 = arith.constant 0 : index
    %44 = vector.load %arg10[%c0_25, %c0_26] : memref<1x16xf32, #tpu.memory_space<vmem>>, vector<1x16xf32>
    %cst_27 = arith.constant dense<0.000000e+00> : vector<16xf32>
    %45 = vector.multi_reduction <add>, %42, %cst_27 [1] : vector<16x16xf32> to vector<16xf32>
    %46 = vector.shape_cast %45 : vector<16xf32> to vector<16x1xf32>
    %cst_28 = arith.constant 1.600000e+01 : f32
    %47 = vector.broadcast %cst_28 : f32 to vector<16x1xf32>
    %48 = arith.divf %46, %47 : vector<16x1xf32>
    %49 = vector.broadcast %48 : vector<16x1xf32> to vector<16x16xf32>
    %50 = arith.subf %42, %49 : vector<16x16xf32>
    %51 = arith.mulf %50, %50 : vector<16x16xf32>
    %cst_29 = arith.constant dense<0.000000e+00> : vector<16xf32>
    %52 = vector.multi_reduction <add>, %51, %cst_29 [1] : vector<16x16xf32> to vector<16xf32>
    %53 = vector.shape_cast %52 : vector<16xf32> to vector<16x1xf32>
    %cst_30 = arith.constant 1.600000e+01 : f32
    %54 = vector.broadcast %cst_30 : f32 to vector<16x1xf32>
    %55 = arith.divf %53, %54 : vector<16x1xf32>
    %56 = vector.broadcast %48 : vector<16x1xf32> to vector<16x16xf32>
    %57 = arith.subf %42, %56 : vector<16x16xf32>
    %cst_31 = arith.constant 9.99999974E-6 : f32
    %58 = vector.broadcast %cst_31 : f32 to vector<16x1xf32>
    %59 = arith.addf %55, %58 : vector<16x1xf32>
    %60 = math.rsqrt %59 : vector<16x1xf32>
    %61 = vector.broadcast %60 : vector<16x1xf32> to vector<16x16xf32>
    %62 = arith.mulf %57, %61 : vector<16x16xf32>
    %63 = vector.broadcast %43 : vector<1x16xf32> to vector<16x16xf32>
    %64 = arith.mulf %62, %63 : vector<16x16xf32>
    %65 = vector.broadcast %44 : vector<1x16xf32> to vector<16x16xf32>
    %66 = arith.addf %64, %65 : vector<16x16xf32>
    %cst_32 = arith.constant 0.000000e+00 : f32
    %67 = vector.broadcast %cst_32 : f32 to vector<16x16xf32>
    %68 = arith.cmpf ogt, %66, %67 : vector<16x16xf32>
    %cst_33 = arith.constant 0.00999999977 : f32
    %69 = vector.broadcast %cst_33 : f32 to vector<16x16xf32>
    %70 = arith.mulf %69, %66 : vector<16x16xf32>
    %71 = arith.select %68, %66, %70 : vector<16x16xi1>, vector<16x16xf32>
    %c0_34 = arith.constant 0 : index
    %c0_35 = arith.constant 0 : index
    %72 = vector.load %arg11[%c0_34, %c0_35] : memref<16x8xbf16, #tpu.memory_space<vmem>>, vector<16x8xbf16>
    %73 = arith.truncf %71 : vector<16x16xf32> to vector<16x16xbf16>
    %cst_36 = arith.constant dense<0.000000e+00> : vector<16x8xf32>
    %74 = tpu.matmul %73, %72, %cst_36 {dimension_numbers = #tpu.dot_dimension_numbers<[1], [0], [0], [1], [0, 0, 1, 1], [], []>} : vector<16x16xbf16>, vector<16x8xbf16>, vector<16x8xf32> -> vector<16x8xf32>
    %c0_37 = arith.constant 0 : index
    %c0_38 = arith.constant 0 : index
    %75 = vector.load %arg12[%c0_37, %c0_38] : memref<1x8xf32, #tpu.memory_space<vmem>>, vector<1x8xf32>
    %76 = vector.broadcast %75 : vector<1x8xf32> to vector<16x8xf32>
    %77 = arith.addf %74, %76 : vector<16x8xf32>
    %c0_39 = arith.constant 0 : index
    %c0_40 = arith.constant 0 : index
    %78 = vector.load %arg13[%c0_39, %c0_40] : memref<1x8xf32, #tpu.memory_space<vmem>>, vector<1x8xf32>
    %c0_41 = arith.constant 0 : index
    %c0_42 = arith.constant 0 : index
    %79 = vector.load %arg14[%c0_41, %c0_42] : memref<1x8xf32, #tpu.memory_space<vmem>>, vector<1x8xf32>
    %cst_43 = arith.constant dense<0.000000e+00> : vector<16xf32>
    %80 = vector.multi_reduction <add>, %77, %cst_43 [1] : vector<16x8xf32> to vector<16xf32>
    %81 = vector.shape_cast %80 : vector<16xf32> to vector<16x1xf32>
    %cst_44 = arith.constant 8.000000e+00 : f32
    %82 = vector.broadcast %cst_44 : f32 to vector<16x1xf32>
    %83 = arith.divf %81, %82 : vector<16x1xf32>
    %84 = vector.broadcast %83 : vector<16x1xf32> to vector<16x8xf32>
    %85 = arith.subf %77, %84 : vector<16x8xf32>
    %86 = arith.mulf %85, %85 : vector<16x8xf32>
    %cst_45 = arith.constant dense<0.000000e+00> : vector<16xf32>
    %87 = vector.multi_reduction <add>, %86, %cst_45 [1] : vector<16x8xf32> to vector<16xf32>
    %88 = vector.shape_cast %87 : vector<16xf32> to vector<16x1xf32>
    %cst_46 = arith.constant 8.000000e+00 : f32
    %89 = vector.broadcast %cst_46 : f32 to vector<16x1xf32>
    %90 = arith.divf %88, %89 : vector<16x1xf32>
    %91 = vector.broadcast %83 : vector<16x1xf32> to vector<16x8xf32>
    %92 = arith.subf %77, %91 : vector<16x8xf32>
    %cst_47 = arith.constant 9.99999974E-6 : f32
    %93 = vector.broadcast %cst_47 : f32 to vector<16x1xf32>
    %94 = arith.addf %90, %93 : vector<16x1xf32>
    %95 = math.rsqrt %94 : vector<16x1xf32>
    %96 = vector.broadcast %95 : vector<16x1xf32> to vector<16x8xf32>
    %97 = arith.mulf %92, %96 : vector<16x8xf32>
    %98 = vector.broadcast %78 : vector<1x8xf32> to vector<16x8xf32>
    %99 = arith.mulf %97, %98 : vector<16x8xf32>
    %100 = vector.broadcast %79 : vector<1x8xf32> to vector<16x8xf32>
    %101 = arith.addf %99, %100 : vector<16x8xf32>
    %cst_48 = arith.constant 0.000000e+00 : f32
    %102 = vector.broadcast %cst_48 : f32 to vector<16x8xf32>
    %103 = arith.cmpf ogt, %101, %102 : vector<16x8xf32>
    %cst_49 = arith.constant 0.00999999977 : f32
    %104 = vector.broadcast %cst_49 : f32 to vector<16x8xf32>
    %105 = arith.mulf %104, %101 : vector<16x8xf32>
    %106 = arith.select %103, %101, %105 : vector<16x8xi1>, vector<16x8xf32>
    %c0_50 = arith.constant 0 : index
    %c0_51 = arith.constant 0 : index
    %c0_52 = arith.constant 0 : index
    %c0_53 = arith.constant 0 : index
    %107 = vector.load %arg2[%c0_50, %c0_51, %c0_52, %c0_53] : memref<2x1x8x4xf32, #tpu.memory_space<vmem>>, vector<2x1x8x4xf32>
    %108 = vector.shape_cast %107 : vector<2x1x8x4xf32> to vector<16x4xf32>
    %c0_54 = arith.constant 0 : index
    %c0_55 = arith.constant 0 : index
    %109 = vector.load %arg15[%c0_54, %c0_55] : memref<12x32xbf16, #tpu.memory_space<vmem>>, vector<12x32xbf16>
    %c0_56 = arith.constant 0 : index
    %c0_57 = arith.constant 0 : index
    %110 = vector.load %arg16[%c0_56, %c0_57] : memref<1x32xf32, #tpu.memory_space<vmem>>, vector<1x32xf32>
    %111 = vector.extract_strided_slice %109 {offsets = [0, 0], sizes = [8, 32], strides = [1, 1]} : vector<12x32xbf16> to vector<8x32xbf16>
    %112 = arith.truncf %106 : vector<16x8xf32> to vector<16x8xbf16>
    %cst_58 = arith.constant dense<0.000000e+00> : vector<16x32xf32>
    %113 = tpu.matmul %112, %111, %cst_58 {dimension_numbers = #tpu.dot_dimension_numbers<[1], [0], [0], [1], [0, 0, 1, 1], [], []>} : vector<16x8xbf16>, vector<8x32xbf16>, vector<16x32xf32> -> vector<16x32xf32>
    %114 = vector.extract_strided_slice %109 {offsets = [8, 0], sizes = [4, 32], strides = [1, 1]} : vector<12x32xbf16> to vector<4x32xbf16>
    %115 = arith.truncf %108 : vector<16x4xf32> to vector<16x4xbf16>
    %cst_59 = arith.constant dense<0.000000e+00> : vector<16x32xf32>
    %116 = tpu.matmul %115, %114, %cst_59 {dimension_numbers = #tpu.dot_dimension_numbers<[1], [0], [0], [1], [0, 0, 1, 1], [], []>} : vector<16x4xbf16>, vector<4x32xbf16>, vector<16x32xf32> -> vector<16x32xf32>
    %117 = arith.addf %113, %116 : vector<16x32xf32>
    %118 = vector.broadcast %110 : vector<1x32xf32> to vector<16x32xf32>
    %119 = arith.addf %117, %118 : vector<16x32xf32>
    %120 = vector.shape_cast %119 : vector<16x32xf32> to vector<2x8x32xf32>
    %c0_60 = arith.constant 0 : index
    %c0_61 = arith.constant 0 : index
    %121 = vector.load %arg17[%c0_60, %c0_61] : memref<12x32xbf16, #tpu.memory_space<vmem>>, vector<12x32xbf16>
    %c0_62 = arith.constant 0 : index
    %c0_63 = arith.constant 0 : index
    %122 = vector.load %arg18[%c0_62, %c0_63] : memref<1x32xf32, #tpu.memory_space<vmem>>, vector<1x32xf32>
    %123 = vector.extract_strided_slice %121 {offsets = [0, 0], sizes = [8, 32], strides = [1, 1]} : vector<12x32xbf16> to vector<8x32xbf16>
    %124 = arith.truncf %106 : vector<16x8xf32> to vector<16x8xbf16>
    %cst_64 = arith.constant dense<0.000000e+00> : vector<16x32xf32>
    %125 = tpu.matmul %124, %123, %cst_64 {dimension_numbers = #tpu.dot_dimension_numbers<[1], [0], [0], [1], [0, 0, 1, 1], [], []>} : vector<16x8xbf16>, vector<8x32xbf16>, vector<16x32xf32> -> vector<16x32xf32>
    %126 = vector.extract_strided_slice %121 {offsets = [8, 0], sizes = [4, 32], strides = [1, 1]} : vector<12x32xbf16> to vector<4x32xbf16>
    %127 = arith.truncf %108 : vector<16x4xf32> to vector<16x4xbf16>
    %cst_65 = arith.constant dense<0.000000e+00> : vector<16x32xf32>
    %128 = tpu.matmul %127, %126, %cst_65 {dimension_numbers = #tpu.dot_dimension_numbers<[1], [0], [0], [1], [0, 0, 1, 1], [], []>} : vector<16x4xbf16>, vector<4x32xbf16>, vector<16x32xf32> -> vector<16x32xf32>
    %129 = arith.addf %125, %128 : vector<16x32xf32>
    %130 = vector.broadcast %122 : vector<1x32xf32> to vector<16x32xf32>
    %131 = arith.addf %129, %130 : vector<16x32xf32>
    %132 = vector.shape_cast %131 : vector<16x32xf32> to vector<2x8x32xf32>
    %c0_66 = arith.constant 0 : index
    %c0_67 = arith.constant 0 : index
    %133 = vector.load %arg19[%c0_66, %c0_67] : memref<8x32xf32, #tpu.memory_space<vmem>>, vector<8x32xf32>
    %c0_68 = arith.constant 0 : index
    %c0_69 = arith.constant 0 : index
    %134 = vector.load %arg20[%c0_68, %c0_69] : memref<8x32xf32, #tpu.memory_space<vmem>>, vector<8x32xf32>
    %cst_70 = arith.constant 0.000000e+00 : f32
    %135 = vector.broadcast %cst_70 : f32 to vector<2x8xf32>
    %cst_71 = arith.constant 0.000000e+00 : f32
    %136 = vector.broadcast %cst_71 : f32 to vector<2x8xf32>
    %cst_72 = arith.constant 0.000000e+00 : f32
    %137 = vector.broadcast %cst_72 : f32 to vector<2x8xf32>
    %cst_73 = arith.constant 0.000000e+00 : f32
    %138 = vector.broadcast %cst_73 : f32 to vector<2x8xf32>
    %139 = vector.extract_strided_slice %120 {offsets = [0, 0, 0], sizes = [2, 1, 32], strides = [1, 1, 1]} : vector<2x8x32xf32> to vector<2x1x32xf32>
    %140 = vector.shape_cast %139 : vector<2x1x32xf32> to vector<2x32xf32>
    %cst_74 = arith.constant dense<0.000000e+00> : vector<2x32xf32>
    %141 = tpu.matmul %135, %133, %cst_74 {dimension_numbers = #tpu.dot_dimension_numbers<[1], [0], [0], [1], [0, 0, 1, 1], [], []>} : vector<2x8xf32>, vector<8x32xf32>, vector<2x32xf32> -> vector<2x32xf32>
    %142 = arith.addf %140, %141 : vector<2x32xf32>
    %143 = vector.extract_strided_slice %142 {offsets = [0, 0], sizes = [2, 8], strides = [1, 1]} : vector<2x32xf32> to vector<2x8xf32>
    %cst_75 = arith.constant 0.000000e+00 : f32
    %144 = vector.broadcast %cst_75 : f32 to vector<2x8xf32>
    %145 = arith.subf %144, %143 : vector<2x8xf32>
    %146 = math.exp %145 : vector<2x8xf32>
    %cst_76 = arith.constant 1.000000e+00 : f32
    %147 = vector.broadcast %cst_76 : f32 to vector<2x8xf32>
    %148 = arith.addf %147, %146 : vector<2x8xf32>
    %cst_77 = arith.constant 1.000000e+00 : f32
    %149 = vector.broadcast %cst_77 : f32 to vector<2x8xf32>
    %150 = arith.divf %149, %148 : vector<2x8xf32>
    %151 = vector.extract_strided_slice %142 {offsets = [0, 8], sizes = [2, 8], strides = [1, 1]} : vector<2x32xf32> to vector<2x8xf32>
    %cst_78 = arith.constant 0.000000e+00 : f32
    %152 = vector.broadcast %cst_78 : f32 to vector<2x8xf32>
    %153 = arith.subf %152, %151 : vector<2x8xf32>
    %154 = math.exp %153 : vector<2x8xf32>
    %cst_79 = arith.constant 1.000000e+00 : f32
    %155 = vector.broadcast %cst_79 : f32 to vector<2x8xf32>
    %156 = arith.addf %155, %154 : vector<2x8xf32>
    %cst_80 = arith.constant 1.000000e+00 : f32
    %157 = vector.broadcast %cst_80 : f32 to vector<2x8xf32>
    %158 = arith.divf %157, %156 : vector<2x8xf32>
    %159 = vector.extract_strided_slice %142 {offsets = [0, 16], sizes = [2, 8], strides = [1, 1]} : vector<2x32xf32> to vector<2x8xf32>
    %160 = math.tanh %159 : vector<2x8xf32>
    %161 = vector.extract_strided_slice %142 {offsets = [0, 24], sizes = [2, 8], strides = [1, 1]} : vector<2x32xf32> to vector<2x8xf32>
    %cst_81 = arith.constant 0.000000e+00 : f32
    %162 = vector.broadcast %cst_81 : f32 to vector<2x8xf32>
    %163 = arith.subf %162, %161 : vector<2x8xf32>
    %164 = math.exp %163 : vector<2x8xf32>
    %cst_82 = arith.constant 1.000000e+00 : f32
    %165 = vector.broadcast %cst_82 : f32 to vector<2x8xf32>
    %166 = arith.addf %165, %164 : vector<2x8xf32>
    %cst_83 = arith.constant 1.000000e+00 : f32
    %167 = vector.broadcast %cst_83 : f32 to vector<2x8xf32>
    %168 = arith.divf %167, %166 : vector<2x8xf32>
    %169 = arith.mulf %158, %136 : vector<2x8xf32>
    %170 = arith.mulf %150, %160 : vector<2x8xf32>
    %171 = arith.addf %169, %170 : vector<2x8xf32>
    %172 = math.tanh %171 : vector<2x8xf32>
    %173 = arith.mulf %168, %172 : vector<2x8xf32>
    %174 = vector.extract_strided_slice %132 {offsets = [0, 7, 0], sizes = [2, 1, 32], strides = [1, 1, 1]} : vector<2x8x32xf32> to vector<2x1x32xf32>
    %175 = vector.shape_cast %174 : vector<2x1x32xf32> to vector<2x32xf32>
    %cst_84 = arith.constant dense<0.000000e+00> : vector<2x32xf32>
    %176 = tpu.matmul %137, %134, %cst_84 {dimension_numbers = #tpu.dot_dimension_numbers<[1], [0], [0], [1], [0, 0, 1, 1], [], []>} : vector<2x8xf32>, vector<8x32xf32>, vector<2x32xf32> -> vector<2x32xf32>
    %177 = arith.addf %175, %176 : vector<2x32xf32>
    %178 = vector.extract_strided_slice %177 {offsets = [0, 0], sizes = [2, 8], strides = [1, 1]} : vector<2x32xf32> to vector<2x8xf32>
    %cst_85 = arith.constant 0.000000e+00 : f32
    %179 = vector.broadcast %cst_85 : f32 to vector<2x8xf32>
    %180 = arith.subf %179, %178 : vector<2x8xf32>
    %181 = math.exp %180 : vector<2x8xf32>
    %cst_86 = arith.constant 1.000000e+00 : f32
    %182 = vector.broadcast %cst_86 : f32 to vector<2x8xf32>
    %183 = arith.addf %182, %181 : vector<2x8xf32>
    %cst_87 = arith.constant 1.000000e+00 : f32
    %184 = vector.broadcast %cst_87 : f32 to vector<2x8xf32>
    %185 = arith.divf %184, %183 : vector<2x8xf32>
    %186 = vector.extract_strided_slice %177 {offsets = [0, 8], sizes = [2, 8], strides = [1, 1]} : vector<2x32xf32> to vector<2x8xf32>
    %cst_88 = arith.constant 0.000000e+00 : f32
    %187 = vector.broadcast %cst_88 : f32 to vector<2x8xf32>
    %188 = arith.subf %187, %186 : vector<2x8xf32>
    %189 = math.exp %188 : vector<2x8xf32>
    %cst_89 = arith.constant 1.000000e+00 : f32
    %190 = vector.broadcast %cst_89 : f32 to vector<2x8xf32>
    %191 = arith.addf %190, %189 : vector<2x8xf32>
    %cst_90 = arith.constant 1.000000e+00 : f32
    %192 = vector.broadcast %cst_90 : f32 to vector<2x8xf32>
    %193 = arith.divf %192, %191 : vector<2x8xf32>
    %194 = vector.extract_strided_slice %177 {offsets = [0, 16], sizes = [2, 8], strides = [1, 1]} : vector<2x32xf32> to vector<2x8xf32>
    %195 = math.tanh %194 : vector<2x8xf32>
    %196 = vector.extract_strided_slice %177 {offsets = [0, 24], sizes = [2, 8], strides = [1, 1]} : vector<2x32xf32> to vector<2x8xf32>
    %cst_91 = arith.constant 0.000000e+00 : f32
    %197 = vector.broadcast %cst_91 : f32 to vector<2x8xf32>
    %198 = arith.subf %197, %196 : vector<2x8xf32>
    %199 = math.exp %198 : vector<2x8xf32>
    %cst_92 = arith.constant 1.000000e+00 : f32
    %200 = vector.broadcast %cst_92 : f32 to vector<2x8xf32>
    %201 = arith.addf %200, %199 : vector<2x8xf32>
    %cst_93 = arith.constant 1.000000e+00 : f32
    %202 = vector.broadcast %cst_93 : f32 to vector<2x8xf32>
    %203 = arith.divf %202, %201 : vector<2x8xf32>
    %204 = arith.mulf %193, %138 : vector<2x8xf32>
    %205 = arith.mulf %185, %195 : vector<2x8xf32>
    %206 = arith.addf %204, %205 : vector<2x8xf32>
    %207 = math.tanh %206 : vector<2x8xf32>
    %208 = arith.mulf %203, %207 : vector<2x8xf32>
    %209 = vector.extract_strided_slice %120 {offsets = [0, 1, 0], sizes = [2, 1, 32], strides = [1, 1, 1]} : vector<2x8x32xf32> to vector<2x1x32xf32>
    %210 = vector.shape_cast %209 : vector<2x1x32xf32> to vector<2x32xf32>
    %cst_94 = arith.constant dense<0.000000e+00> : vector<2x32xf32>
    %211 = tpu.matmul %173, %133, %cst_94 {dimension_numbers = #tpu.dot_dimension_numbers<[1], [0], [0], [1], [0, 0, 1, 1], [], []>} : vector<2x8xf32>, vector<8x32xf32>, vector<2x32xf32> -> vector<2x32xf32>
    %212 = arith.addf %210, %211 : vector<2x32xf32>
    %213 = vector.extract_strided_slice %212 {offsets = [0, 0], sizes = [2, 8], strides = [1, 1]} : vector<2x32xf32> to vector<2x8xf32>
    %cst_95 = arith.constant 0.000000e+00 : f32
    %214 = vector.broadcast %cst_95 : f32 to vector<2x8xf32>
    %215 = arith.subf %214, %213 : vector<2x8xf32>
    %216 = math.exp %215 : vector<2x8xf32>
    %cst_96 = arith.constant 1.000000e+00 : f32
    %217 = vector.broadcast %cst_96 : f32 to vector<2x8xf32>
    %218 = arith.addf %217, %216 : vector<2x8xf32>
    %cst_97 = arith.constant 1.000000e+00 : f32
    %219 = vector.broadcast %cst_97 : f32 to vector<2x8xf32>
    %220 = arith.divf %219, %218 : vector<2x8xf32>
    %221 = vector.extract_strided_slice %212 {offsets = [0, 8], sizes = [2, 8], strides = [1, 1]} : vector<2x32xf32> to vector<2x8xf32>
    %cst_98 = arith.constant 0.000000e+00 : f32
    %222 = vector.broadcast %cst_98 : f32 to vector<2x8xf32>
    %223 = arith.subf %222, %221 : vector<2x8xf32>
    %224 = math.exp %223 : vector<2x8xf32>
    %cst_99 = arith.constant 1.000000e+00 : f32
    %225 = vector.broadcast %cst_99 : f32 to vector<2x8xf32>
    %226 = arith.addf %225, %224 : vector<2x8xf32>
    %cst_100 = arith.constant 1.000000e+00 : f32
    %227 = vector.broadcast %cst_100 : f32 to vector<2x8xf32>
    %228 = arith.divf %227, %226 : vector<2x8xf32>
    %229 = vector.extract_strided_slice %212 {offsets = [0, 16], sizes = [2, 8], strides = [1, 1]} : vector<2x32xf32> to vector<2x8xf32>
    %230 = math.tanh %229 : vector<2x8xf32>
    %231 = vector.extract_strided_slice %212 {offsets = [0, 24], sizes = [2, 8], strides = [1, 1]} : vector<2x32xf32> to vector<2x8xf32>
    %cst_101 = arith.constant 0.000000e+00 : f32
    %232 = vector.broadcast %cst_101 : f32 to vector<2x8xf32>
    %233 = arith.subf %232, %231 : vector<2x8xf32>
    %234 = math.exp %233 : vector<2x8xf32>
    %cst_102 = arith.constant 1.000000e+00 : f32
    %235 = vector.broadcast %cst_102 : f32 to vector<2x8xf32>
    %236 = arith.addf %235, %234 : vector<2x8xf32>
    %cst_103 = arith.constant 1.000000e+00 : f32
    %237 = vector.broadcast %cst_103 : f32 to vector<2x8xf32>
    %238 = arith.divf %237, %236 : vector<2x8xf32>
    %239 = arith.mulf %228, %171 : vector<2x8xf32>
    %240 = arith.mulf %220, %230 : vector<2x8xf32>
    %241 = arith.addf %239, %240 : vector<2x8xf32>
    %242 = math.tanh %241 : vector<2x8xf32>
    %243 = arith.mulf %238, %242 : vector<2x8xf32>
    %244 = vector.extract_strided_slice %132 {offsets = [0, 6, 0], sizes = [2, 1, 32], strides = [1, 1, 1]} : vector<2x8x32xf32> to vector<2x1x32xf32>
    %245 = vector.shape_cast %244 : vector<2x1x32xf32> to vector<2x32xf32>
    %cst_104 = arith.constant dense<0.000000e+00> : vector<2x32xf32>
    %246 = tpu.matmul %208, %134, %cst_104 {dimension_numbers = #tpu.dot_dimension_numbers<[1], [0], [0], [1], [0, 0, 1, 1], [], []>} : vector<2x8xf32>, vector<8x32xf32>, vector<2x32xf32> -> vector<2x32xf32>
    %247 = arith.addf %245, %246 : vector<2x32xf32>
    %248 = vector.extract_strided_slice %247 {offsets = [0, 0], sizes = [2, 8], strides = [1, 1]} : vector<2x32xf32> to vector<2x8xf32>
    %cst_105 = arith.constant 0.000000e+00 : f32
    %249 = vector.broadcast %cst_105 : f32 to vector<2x8xf32>
    %250 = arith.subf %249, %248 : vector<2x8xf32>
    %251 = math.exp %250 : vector<2x8xf32>
    %cst_106 = arith.constant 1.000000e+00 : f32
    %252 = vector.broadcast %cst_106 : f32 to vector<2x8xf32>
    %253 = arith.addf %252, %251 : vector<2x8xf32>
    %cst_107 = arith.constant 1.000000e+00 : f32
    %254 = vector.broadcast %cst_107 : f32 to vector<2x8xf32>
    %255 = arith.divf %254, %253 : vector<2x8xf32>
    %256 = vector.extract_strided_slice %247 {offsets = [0, 8], sizes = [2, 8], strides = [1, 1]} : vector<2x32xf32> to vector<2x8xf32>
    %cst_108 = arith.constant 0.000000e+00 : f32
    %257 = vector.broadcast %cst_108 : f32 to vector<2x8xf32>
    %258 = arith.subf %257, %256 : vector<2x8xf32>
    %259 = math.exp %258 : vector<2x8xf32>
    %cst_109 = arith.constant 1.000000e+00 : f32
    %260 = vector.broadcast %cst_109 : f32 to vector<2x8xf32>
    %261 = arith.addf %260, %259 : vector<2x8xf32>
    %cst_110 = arith.constant 1.000000e+00 : f32
    %262 = vector.broadcast %cst_110 : f32 to vector<2x8xf32>
    %263 = arith.divf %262, %261 : vector<2x8xf32>
    %264 = vector.extract_strided_slice %247 {offsets = [0, 16], sizes = [2, 8], strides = [1, 1]} : vector<2x32xf32> to vector<2x8xf32>
    %265 = math.tanh %264 : vector<2x8xf32>
    %266 = vector.extract_strided_slice %247 {offsets = [0, 24], sizes = [2, 8], strides = [1, 1]} : vector<2x32xf32> to vector<2x8xf32>
    %cst_111 = arith.constant 0.000000e+00 : f32
    %267 = vector.broadcast %cst_111 : f32 to vector<2x8xf32>
    %268 = arith.subf %267, %266 : vector<2x8xf32>
    %269 = math.exp %268 : vector<2x8xf32>
    %cst_112 = arith.constant 1.000000e+00 : f32
    %270 = vector.broadcast %cst_112 : f32 to vector<2x8xf32>
    %271 = arith.addf %270, %269 : vector<2x8xf32>
    %cst_113 = arith.constant 1.000000e+00 : f32
    %272 = vector.broadcast %cst_113 : f32 to vector<2x8xf32>
    %273 = arith.divf %272, %271 : vector<2x8xf32>
    %274 = arith.mulf %263, %206 : vector<2x8xf32>
    %275 = arith.mulf %255, %265 : vector<2x8xf32>
    %276 = arith.addf %274, %275 : vector<2x8xf32>
    %277 = math.tanh %276 : vector<2x8xf32>
    %278 = arith.mulf %273, %277 : vector<2x8xf32>
    %279 = vector.extract_strided_slice %120 {offsets = [0, 2, 0], sizes = [2, 1, 32], strides = [1, 1, 1]} : vector<2x8x32xf32> to vector<2x1x32xf32>
    %280 = vector.shape_cast %279 : vector<2x1x32xf32> to vector<2x32xf32>
    %cst_114 = arith.constant dense<0.000000e+00> : vector<2x32xf32>
    %281 = tpu.matmul %243, %133, %cst_114 {dimension_numbers = #tpu.dot_dimension_numbers<[1], [0], [0], [1], [0, 0, 1, 1], [], []>} : vector<2x8xf32>, vector<8x32xf32>, vector<2x32xf32> -> vector<2x32xf32>
    %282 = arith.addf %280, %281 : vector<2x32xf32>
    %283 = vector.extract_strided_slice %282 {offsets = [0, 0], sizes = [2, 8], strides = [1, 1]} : vector<2x32xf32> to vector<2x8xf32>
    %cst_115 = arith.constant 0.000000e+00 : f32
    %284 = vector.broadcast %cst_115 : f32 to vector<2x8xf32>
    %285 = arith.subf %284, %283 : vector<2x8xf32>
    %286 = math.exp %285 : vector<2x8xf32>
    %cst_116 = arith.constant 1.000000e+00 : f32
    %287 = vector.broadcast %cst_116 : f32 to vector<2x8xf32>
    %288 = arith.addf %287, %286 : vector<2x8xf32>
    %cst_117 = arith.constant 1.000000e+00 : f32
    %289 = vector.broadcast %cst_117 : f32 to vector<2x8xf32>
    %290 = arith.divf %289, %288 : vector<2x8xf32>
    %291 = vector.extract_strided_slice %282 {offsets = [0, 8], sizes = [2, 8], strides = [1, 1]} : vector<2x32xf32> to vector<2x8xf32>
    %cst_118 = arith.constant 0.000000e+00 : f32
    %292 = vector.broadcast %cst_118 : f32 to vector<2x8xf32>
    %293 = arith.subf %292, %291 : vector<2x8xf32>
    %294 = math.exp %293 : vector<2x8xf32>
    %cst_119 = arith.constant 1.000000e+00 : f32
    %295 = vector.broadcast %cst_119 : f32 to vector<2x8xf32>
    %296 = arith.addf %295, %294 : vector<2x8xf32>
    %cst_120 = arith.constant 1.000000e+00 : f32
    %297 = vector.broadcast %cst_120 : f32 to vector<2x8xf32>
    %298 = arith.divf %297, %296 : vector<2x8xf32>
    %299 = vector.extract_strided_slice %282 {offsets = [0, 16], sizes = [2, 8], strides = [1, 1]} : vector<2x32xf32> to vector<2x8xf32>
    %300 = math.tanh %299 : vector<2x8xf32>
    %301 = vector.extract_strided_slice %282 {offsets = [0, 24], sizes = [2, 8], strides = [1, 1]} : vector<2x32xf32> to vector<2x8xf32>
    %cst_121 = arith.constant 0.000000e+00 : f32
    %302 = vector.broadcast %cst_121 : f32 to vector<2x8xf32>
    %303 = arith.subf %302, %301 : vector<2x8xf32>
    %304 = math.exp %303 : vector<2x8xf32>
    %cst_122 = arith.constant 1.000000e+00 : f32
    %305 = vector.broadcast %cst_122 : f32 to vector<2x8xf32>
    %306 = arith.addf %305, %304 : vector<2x8xf32>
    %cst_123 = arith.constant 1.000000e+00 : f32
    %307 = vector.broadcast %cst_123 : f32 to vector<2x8xf32>
    %308 = arith.divf %307, %306 : vector<2x8xf32>
    %309 = arith.mulf %298, %241 : vector<2x8xf32>
    %310 = arith.mulf %290, %300 : vector<2x8xf32>
    %311 = arith.addf %309, %310 : vector<2x8xf32>
    %312 = math.tanh %311 : vector<2x8xf32>
    %313 = arith.mulf %308, %312 : vector<2x8xf32>
    %314 = vector.extract_strided_slice %132 {offsets = [0, 5, 0], sizes = [2, 1, 32], strides = [1, 1, 1]} : vector<2x8x32xf32> to vector<2x1x32xf32>
    %315 = vector.shape_cast %314 : vector<2x1x32xf32> to vector<2x32xf32>
    %cst_124 = arith.constant dense<0.000000e+00> : vector<2x32xf32>
    %316 = tpu.matmul %278, %134, %cst_124 {dimension_numbers = #tpu.dot_dimension_numbers<[1], [0], [0], [1], [0, 0, 1, 1], [], []>} : vector<2x8xf32>, vector<8x32xf32>, vector<2x32xf32> -> vector<2x32xf32>
    %317 = arith.addf %315, %316 : vector<2x32xf32>
    %318 = vector.extract_strided_slice %317 {offsets = [0, 0], sizes = [2, 8], strides = [1, 1]} : vector<2x32xf32> to vector<2x8xf32>
    %cst_125 = arith.constant 0.000000e+00 : f32
    %319 = vector.broadcast %cst_125 : f32 to vector<2x8xf32>
    %320 = arith.subf %319, %318 : vector<2x8xf32>
    %321 = math.exp %320 : vector<2x8xf32>
    %cst_126 = arith.constant 1.000000e+00 : f32
    %322 = vector.broadcast %cst_126 : f32 to vector<2x8xf32>
    %323 = arith.addf %322, %321 : vector<2x8xf32>
    %cst_127 = arith.constant 1.000000e+00 : f32
    %324 = vector.broadcast %cst_127 : f32 to vector<2x8xf32>
    %325 = arith.divf %324, %323 : vector<2x8xf32>
    %326 = vector.extract_strided_slice %317 {offsets = [0, 8], sizes = [2, 8], strides = [1, 1]} : vector<2x32xf32> to vector<2x8xf32>
    %cst_128 = arith.constant 0.000000e+00 : f32
    %327 = vector.broadcast %cst_128 : f32 to vector<2x8xf32>
    %328 = arith.subf %327, %326 : vector<2x8xf32>
    %329 = math.exp %328 : vector<2x8xf32>
    %cst_129 = arith.constant 1.000000e+00 : f32
    %330 = vector.broadcast %cst_129 : f32 to vector<2x8xf32>
    %331 = arith.addf %330, %329 : vector<2x8xf32>
    %cst_130 = arith.constant 1.000000e+00 : f32
    %332 = vector.broadcast %cst_130 : f32 to vector<2x8xf32>
    %333 = arith.divf %332, %331 : vector<2x8xf32>
    %334 = vector.extract_strided_slice %317 {offsets = [0, 16], sizes = [2, 8], strides = [1, 1]} : vector<2x32xf32> to vector<2x8xf32>
    %335 = math.tanh %334 : vector<2x8xf32>
    %336 = vector.extract_strided_slice %317 {offsets = [0, 24], sizes = [2, 8], strides = [1, 1]} : vector<2x32xf32> to vector<2x8xf32>
    %cst_131 = arith.constant 0.000000e+00 : f32
    %337 = vector.broadcast %cst_131 : f32 to vector<2x8xf32>
    %338 = arith.subf %337, %336 : vector<2x8xf32>
    %339 = math.exp %338 : vector<2x8xf32>
    %cst_132 = arith.constant 1.000000e+00 : f32
    %340 = vector.broadcast %cst_132 : f32 to vector<2x8xf32>
    %341 = arith.addf %340, %339 : vector<2x8xf32>
    %cst_133 = arith.constant 1.000000e+00 : f32
    %342 = vector.broadcast %cst_133 : f32 to vector<2x8xf32>
    %343 = arith.divf %342, %341 : vector<2x8xf32>
    %344 = arith.mulf %333, %276 : vector<2x8xf32>
    %345 = arith.mulf %325, %335 : vector<2x8xf32>
    %346 = arith.addf %344, %345 : vector<2x8xf32>
    %347 = math.tanh %346 : vector<2x8xf32>
    %348 = arith.mulf %343, %347 : vector<2x8xf32>
    %349 = vector.extract_strided_slice %120 {offsets = [0, 3, 0], sizes = [2, 1, 32], strides = [1, 1, 1]} : vector<2x8x32xf32> to vector<2x1x32xf32>
    %350 = vector.shape_cast %349 : vector<2x1x32xf32> to vector<2x32xf32>
    %cst_134 = arith.constant dense<0.000000e+00> : vector<2x32xf32>
    %351 = tpu.matmul %313, %133, %cst_134 {dimension_numbers = #tpu.dot_dimension_numbers<[1], [0], [0], [1], [0, 0, 1, 1], [], []>} : vector<2x8xf32>, vector<8x32xf32>, vector<2x32xf32> -> vector<2x32xf32>
    %352 = arith.addf %350, %351 : vector<2x32xf32>
    %353 = vector.extract_strided_slice %352 {offsets = [0, 0], sizes = [2, 8], strides = [1, 1]} : vector<2x32xf32> to vector<2x8xf32>
    %cst_135 = arith.constant 0.000000e+00 : f32
    %354 = vector.broadcast %cst_135 : f32 to vector<2x8xf32>
    %355 = arith.subf %354, %353 : vector<2x8xf32>
    %356 = math.exp %355 : vector<2x8xf32>
    %cst_136 = arith.constant 1.000000e+00 : f32
    %357 = vector.broadcast %cst_136 : f32 to vector<2x8xf32>
    %358 = arith.addf %357, %356 : vector<2x8xf32>
    %cst_137 = arith.constant 1.000000e+00 : f32
    %359 = vector.broadcast %cst_137 : f32 to vector<2x8xf32>
    %360 = arith.divf %359, %358 : vector<2x8xf32>
    %361 = vector.extract_strided_slice %352 {offsets = [0, 8], sizes = [2, 8], strides = [1, 1]} : vector<2x32xf32> to vector<2x8xf32>
    %cst_138 = arith.constant 0.000000e+00 : f32
    %362 = vector.broadcast %cst_138 : f32 to vector<2x8xf32>
    %363 = arith.subf %362, %361 : vector<2x8xf32>
    %364 = math.exp %363 : vector<2x8xf32>
    %cst_139 = arith.constant 1.000000e+00 : f32
    %365 = vector.broadcast %cst_139 : f32 to vector<2x8xf32>
    %366 = arith.addf %365, %364 : vector<2x8xf32>
    %cst_140 = arith.constant 1.000000e+00 : f32
    %367 = vector.broadcast %cst_140 : f32 to vector<2x8xf32>
    %368 = arith.divf %367, %366 : vector<2x8xf32>
    %369 = vector.extract_strided_slice %352 {offsets = [0, 16], sizes = [2, 8], strides = [1, 1]} : vector<2x32xf32> to vector<2x8xf32>
    %370 = math.tanh %369 : vector<2x8xf32>
    %371 = vector.extract_strided_slice %352 {offsets = [0, 24], sizes = [2, 8], strides = [1, 1]} : vector<2x32xf32> to vector<2x8xf32>
    %cst_141 = arith.constant 0.000000e+00 : f32
    %372 = vector.broadcast %cst_141 : f32 to vector<2x8xf32>
    %373 = arith.subf %372, %371 : vector<2x8xf32>
    %374 = math.exp %373 : vector<2x8xf32>
    %cst_142 = arith.constant 1.000000e+00 : f32
    %375 = vector.broadcast %cst_142 : f32 to vector<2x8xf32>
    %376 = arith.addf %375, %374 : vector<2x8xf32>
    %cst_143 = arith.constant 1.000000e+00 : f32
    %377 = vector.broadcast %cst_143 : f32 to vector<2x8xf32>
    %378 = arith.divf %377, %376 : vector<2x8xf32>
    %379 = arith.mulf %368, %311 : vector<2x8xf32>
    %380 = arith.mulf %360, %370 : vector<2x8xf32>
    %381 = arith.addf %379, %380 : vector<2x8xf32>
    %382 = math.tanh %381 : vector<2x8xf32>
    %383 = arith.mulf %378, %382 : vector<2x8xf32>
    %384 = vector.extract_strided_slice %132 {offsets = [0, 4, 0], sizes = [2, 1, 32], strides = [1, 1, 1]} : vector<2x8x32xf32> to vector<2x1x32xf32>
    %385 = vector.shape_cast %384 : vector<2x1x32xf32> to vector<2x32xf32>
    %cst_144 = arith.constant dense<0.000000e+00> : vector<2x32xf32>
    %386 = tpu.matmul %348, %134, %cst_144 {dimension_numbers = #tpu.dot_dimension_numbers<[1], [0], [0], [1], [0, 0, 1, 1], [], []>} : vector<2x8xf32>, vector<8x32xf32>, vector<2x32xf32> -> vector<2x32xf32>
    %387 = arith.addf %385, %386 : vector<2x32xf32>
    %388 = vector.extract_strided_slice %387 {offsets = [0, 0], sizes = [2, 8], strides = [1, 1]} : vector<2x32xf32> to vector<2x8xf32>
    %cst_145 = arith.constant 0.000000e+00 : f32
    %389 = vector.broadcast %cst_145 : f32 to vector<2x8xf32>
    %390 = arith.subf %389, %388 : vector<2x8xf32>
    %391 = math.exp %390 : vector<2x8xf32>
    %cst_146 = arith.constant 1.000000e+00 : f32
    %392 = vector.broadcast %cst_146 : f32 to vector<2x8xf32>
    %393 = arith.addf %392, %391 : vector<2x8xf32>
    %cst_147 = arith.constant 1.000000e+00 : f32
    %394 = vector.broadcast %cst_147 : f32 to vector<2x8xf32>
    %395 = arith.divf %394, %393 : vector<2x8xf32>
    %396 = vector.extract_strided_slice %387 {offsets = [0, 8], sizes = [2, 8], strides = [1, 1]} : vector<2x32xf32> to vector<2x8xf32>
    %cst_148 = arith.constant 0.000000e+00 : f32
    %397 = vector.broadcast %cst_148 : f32 to vector<2x8xf32>
    %398 = arith.subf %397, %396 : vector<2x8xf32>
    %399 = math.exp %398 : vector<2x8xf32>
    %cst_149 = arith.constant 1.000000e+00 : f32
    %400 = vector.broadcast %cst_149 : f32 to vector<2x8xf32>
    %401 = arith.addf %400, %399 : vector<2x8xf32>
    %cst_150 = arith.constant 1.000000e+00 : f32
    %402 = vector.broadcast %cst_150 : f32 to vector<2x8xf32>
    %403 = arith.divf %402, %401 : vector<2x8xf32>
    %404 = vector.extract_strided_slice %387 {offsets = [0, 16], sizes = [2, 8], strides = [1, 1]} : vector<2x32xf32> to vector<2x8xf32>
    %405 = math.tanh %404 : vector<2x8xf32>
    %406 = vector.extract_strided_slice %387 {offsets = [0, 24], sizes = [2, 8], strides = [1, 1]} : vector<2x32xf32> to vector<2x8xf32>
    %cst_151 = arith.constant 0.000000e+00 : f32
    %407 = vector.broadcast %cst_151 : f32 to vector<2x8xf32>
    %408 = arith.subf %407, %406 : vector<2x8xf32>
    %409 = math.exp %408 : vector<2x8xf32>
    %cst_152 = arith.constant 1.000000e+00 : f32
    %410 = vector.broadcast %cst_152 : f32 to vector<2x8xf32>
    %411 = arith.addf %410, %409 : vector<2x8xf32>
    %cst_153 = arith.constant 1.000000e+00 : f32
    %412 = vector.broadcast %cst_153 : f32 to vector<2x8xf32>
    %413 = arith.divf %412, %411 : vector<2x8xf32>
    %414 = arith.mulf %403, %346 : vector<2x8xf32>
    %415 = arith.mulf %395, %405 : vector<2x8xf32>
    %416 = arith.addf %414, %415 : vector<2x8xf32>
    %417 = math.tanh %416 : vector<2x8xf32>
    %418 = arith.mulf %413, %417 : vector<2x8xf32>
    %419 = vector.extract_strided_slice %120 {offsets = [0, 4, 0], sizes = [2, 1, 32], strides = [1, 1, 1]} : vector<2x8x32xf32> to vector<2x1x32xf32>
    %420 = vector.shape_cast %419 : vector<2x1x32xf32> to vector<2x32xf32>
    %cst_154 = arith.constant dense<0.000000e+00> : vector<2x32xf32>
    %421 = tpu.matmul %383, %133, %cst_154 {dimension_numbers = #tpu.dot_dimension_numbers<[1], [0], [0], [1], [0, 0, 1, 1], [], []>} : vector<2x8xf32>, vector<8x32xf32>, vector<2x32xf32> -> vector<2x32xf32>
    %422 = arith.addf %420, %421 : vector<2x32xf32>
    %423 = vector.extract_strided_slice %422 {offsets = [0, 0], sizes = [2, 8], strides = [1, 1]} : vector<2x32xf32> to vector<2x8xf32>
    %cst_155 = arith.constant 0.000000e+00 : f32
    %424 = vector.broadcast %cst_155 : f32 to vector<2x8xf32>
    %425 = arith.subf %424, %423 : vector<2x8xf32>
    %426 = math.exp %425 : vector<2x8xf32>
    %cst_156 = arith.constant 1.000000e+00 : f32
    %427 = vector.broadcast %cst_156 : f32 to vector<2x8xf32>
    %428 = arith.addf %427, %426 : vector<2x8xf32>
    %cst_157 = arith.constant 1.000000e+00 : f32
    %429 = vector.broadcast %cst_157 : f32 to vector<2x8xf32>
    %430 = arith.divf %429, %428 : vector<2x8xf32>
    %431 = vector.extract_strided_slice %422 {offsets = [0, 8], sizes = [2, 8], strides = [1, 1]} : vector<2x32xf32> to vector<2x8xf32>
    %cst_158 = arith.constant 0.000000e+00 : f32
    %432 = vector.broadcast %cst_158 : f32 to vector<2x8xf32>
    %433 = arith.subf %432, %431 : vector<2x8xf32>
    %434 = math.exp %433 : vector<2x8xf32>
    %cst_159 = arith.constant 1.000000e+00 : f32
    %435 = vector.broadcast %cst_159 : f32 to vector<2x8xf32>
    %436 = arith.addf %435, %434 : vector<2x8xf32>
    %cst_160 = arith.constant 1.000000e+00 : f32
    %437 = vector.broadcast %cst_160 : f32 to vector<2x8xf32>
    %438 = arith.divf %437, %436 : vector<2x8xf32>
    %439 = vector.extract_strided_slice %422 {offsets = [0, 16], sizes = [2, 8], strides = [1, 1]} : vector<2x32xf32> to vector<2x8xf32>
    %440 = math.tanh %439 : vector<2x8xf32>
    %441 = vector.extract_strided_slice %422 {offsets = [0, 24], sizes = [2, 8], strides = [1, 1]} : vector<2x32xf32> to vector<2x8xf32>
    %cst_161 = arith.constant 0.000000e+00 : f32
    %442 = vector.broadcast %cst_161 : f32 to vector<2x8xf32>
    %443 = arith.subf %442, %441 : vector<2x8xf32>
    %444 = math.exp %443 : vector<2x8xf32>
    %cst_162 = arith.constant 1.000000e+00 : f32
    %445 = vector.broadcast %cst_162 : f32 to vector<2x8xf32>
    %446 = arith.addf %445, %444 : vector<2x8xf32>
    %cst_163 = arith.constant 1.000000e+00 : f32
    %447 = vector.broadcast %cst_163 : f32 to vector<2x8xf32>
    %448 = arith.divf %447, %446 : vector<2x8xf32>
    %449 = arith.mulf %438, %381 : vector<2x8xf32>
    %450 = arith.mulf %430, %440 : vector<2x8xf32>
    %451 = arith.addf %449, %450 : vector<2x8xf32>
    %452 = math.tanh %451 : vector<2x8xf32>
    %453 = arith.mulf %448, %452 : vector<2x8xf32>
    %454 = vector.extract_strided_slice %132 {offsets = [0, 3, 0], sizes = [2, 1, 32], strides = [1, 1, 1]} : vector<2x8x32xf32> to vector<2x1x32xf32>
    %455 = vector.shape_cast %454 : vector<2x1x32xf32> to vector<2x32xf32>
    %cst_164 = arith.constant dense<0.000000e+00> : vector<2x32xf32>
    %456 = tpu.matmul %418, %134, %cst_164 {dimension_numbers = #tpu.dot_dimension_numbers<[1], [0], [0], [1], [0, 0, 1, 1], [], []>} : vector<2x8xf32>, vector<8x32xf32>, vector<2x32xf32> -> vector<2x32xf32>
    %457 = arith.addf %455, %456 : vector<2x32xf32>
    %458 = vector.extract_strided_slice %457 {offsets = [0, 0], sizes = [2, 8], strides = [1, 1]} : vector<2x32xf32> to vector<2x8xf32>
    %cst_165 = arith.constant 0.000000e+00 : f32
    %459 = vector.broadcast %cst_165 : f32 to vector<2x8xf32>
    %460 = arith.subf %459, %458 : vector<2x8xf32>
    %461 = math.exp %460 : vector<2x8xf32>
    %cst_166 = arith.constant 1.000000e+00 : f32
    %462 = vector.broadcast %cst_166 : f32 to vector<2x8xf32>
    %463 = arith.addf %462, %461 : vector<2x8xf32>
    %cst_167 = arith.constant 1.000000e+00 : f32
    %464 = vector.broadcast %cst_167 : f32 to vector<2x8xf32>
    %465 = arith.divf %464, %463 : vector<2x8xf32>
    %466 = vector.extract_strided_slice %457 {offsets = [0, 8], sizes = [2, 8], strides = [1, 1]} : vector<2x32xf32> to vector<2x8xf32>
    %cst_168 = arith.constant 0.000000e+00 : f32
    %467 = vector.broadcast %cst_168 : f32 to vector<2x8xf32>
    %468 = arith.subf %467, %466 : vector<2x8xf32>
    %469 = math.exp %468 : vector<2x8xf32>
    %cst_169 = arith.constant 1.000000e+00 : f32
    %470 = vector.broadcast %cst_169 : f32 to vector<2x8xf32>
    %471 = arith.addf %470, %469 : vector<2x8xf32>
    %cst_170 = arith.constant 1.000000e+00 : f32
    %472 = vector.broadcast %cst_170 : f32 to vector<2x8xf32>
    %473 = arith.divf %472, %471 : vector<2x8xf32>
    %474 = vector.extract_strided_slice %457 {offsets = [0, 16], sizes = [2, 8], strides = [1, 1]} : vector<2x32xf32> to vector<2x8xf32>
    %475 = math.tanh %474 : vector<2x8xf32>
    %476 = vector.extract_strided_slice %457 {offsets = [0, 24], sizes = [2, 8], strides = [1, 1]} : vector<2x32xf32> to vector<2x8xf32>
    %cst_171 = arith.constant 0.000000e+00 : f32
    %477 = vector.broadcast %cst_171 : f32 to vector<2x8xf32>
    %478 = arith.subf %477, %476 : vector<2x8xf32>
    %479 = math.exp %478 : vector<2x8xf32>
    %cst_172 = arith.constant 1.000000e+00 : f32
    %480 = vector.broadcast %cst_172 : f32 to vector<2x8xf32>
    %481 = arith.addf %480, %479 : vector<2x8xf32>
    %cst_173 = arith.constant 1.000000e+00 : f32
    %482 = vector.broadcast %cst_173 : f32 to vector<2x8xf32>
    %483 = arith.divf %482, %481 : vector<2x8xf32>
    %484 = arith.mulf %473, %416 : vector<2x8xf32>
    %485 = arith.mulf %465, %475 : vector<2x8xf32>
    %486 = arith.addf %484, %485 : vector<2x8xf32>
    %487 = math.tanh %486 : vector<2x8xf32>
    %488 = arith.mulf %483, %487 : vector<2x8xf32>
    %489 = vector.extract_strided_slice %120 {offsets = [0, 5, 0], sizes = [2, 1, 32], strides = [1, 1, 1]} : vector<2x8x32xf32> to vector<2x1x32xf32>
    %490 = vector.shape_cast %489 : vector<2x1x32xf32> to vector<2x32xf32>
    %cst_174 = arith.constant dense<0.000000e+00> : vector<2x32xf32>
    %491 = tpu.matmul %453, %133, %cst_174 {dimension_numbers = #tpu.dot_dimension_numbers<[1], [0], [0], [1], [0, 0, 1, 1], [], []>} : vector<2x8xf32>, vector<8x32xf32>, vector<2x32xf32> -> vector<2x32xf32>
    %492 = arith.addf %490, %491 : vector<2x32xf32>
    %493 = vector.extract_strided_slice %492 {offsets = [0, 0], sizes = [2, 8], strides = [1, 1]} : vector<2x32xf32> to vector<2x8xf32>
    %cst_175 = arith.constant 0.000000e+00 : f32
    %494 = vector.broadcast %cst_175 : f32 to vector<2x8xf32>
    %495 = arith.subf %494, %493 : vector<2x8xf32>
    %496 = math.exp %495 : vector<2x8xf32>
    %cst_176 = arith.constant 1.000000e+00 : f32
    %497 = vector.broadcast %cst_176 : f32 to vector<2x8xf32>
    %498 = arith.addf %497, %496 : vector<2x8xf32>
    %cst_177 = arith.constant 1.000000e+00 : f32
    %499 = vector.broadcast %cst_177 : f32 to vector<2x8xf32>
    %500 = arith.divf %499, %498 : vector<2x8xf32>
    %501 = vector.extract_strided_slice %492 {offsets = [0, 8], sizes = [2, 8], strides = [1, 1]} : vector<2x32xf32> to vector<2x8xf32>
    %cst_178 = arith.constant 0.000000e+00 : f32
    %502 = vector.broadcast %cst_178 : f32 to vector<2x8xf32>
    %503 = arith.subf %502, %501 : vector<2x8xf32>
    %504 = math.exp %503 : vector<2x8xf32>
    %cst_179 = arith.constant 1.000000e+00 : f32
    %505 = vector.broadcast %cst_179 : f32 to vector<2x8xf32>
    %506 = arith.addf %505, %504 : vector<2x8xf32>
    %cst_180 = arith.constant 1.000000e+00 : f32
    %507 = vector.broadcast %cst_180 : f32 to vector<2x8xf32>
    %508 = arith.divf %507, %506 : vector<2x8xf32>
    %509 = vector.extract_strided_slice %492 {offsets = [0, 16], sizes = [2, 8], strides = [1, 1]} : vector<2x32xf32> to vector<2x8xf32>
    %510 = math.tanh %509 : vector<2x8xf32>
    %511 = vector.extract_strided_slice %492 {offsets = [0, 24], sizes = [2, 8], strides = [1, 1]} : vector<2x32xf32> to vector<2x8xf32>
    %cst_181 = arith.constant 0.000000e+00 : f32
    %512 = vector.broadcast %cst_181 : f32 to vector<2x8xf32>
    %513 = arith.subf %512, %511 : vector<2x8xf32>
    %514 = math.exp %513 : vector<2x8xf32>
    %cst_182 = arith.constant 1.000000e+00 : f32
    %515 = vector.broadcast %cst_182 : f32 to vector<2x8xf32>
    %516 = arith.addf %515, %514 : vector<2x8xf32>
    %cst_183 = arith.constant 1.000000e+00 : f32
    %517 = vector.broadcast %cst_183 : f32 to vector<2x8xf32>
    %518 = arith.divf %517, %516 : vector<2x8xf32>
    %519 = arith.mulf %508, %451 : vector<2x8xf32>
    %520 = arith.mulf %500, %510 : vector<2x8xf32>
    %521 = arith.addf %519, %520 : vector<2x8xf32>
    %522 = math.tanh %521 : vector<2x8xf32>
    %523 = arith.mulf %518, %522 : vector<2x8xf32>
    %524 = vector.extract_strided_slice %132 {offsets = [0, 2, 0], sizes = [2, 1, 32], strides = [1, 1, 1]} : vector<2x8x32xf32> to vector<2x1x32xf32>
    %525 = vector.shape_cast %524 : vector<2x1x32xf32> to vector<2x32xf32>
    %cst_184 = arith.constant dense<0.000000e+00> : vector<2x32xf32>
    %526 = tpu.matmul %488, %134, %cst_184 {dimension_numbers = #tpu.dot_dimension_numbers<[1], [0], [0], [1], [0, 0, 1, 1], [], []>} : vector<2x8xf32>, vector<8x32xf32>, vector<2x32xf32> -> vector<2x32xf32>
    %527 = arith.addf %525, %526 : vector<2x32xf32>
    %528 = vector.extract_strided_slice %527 {offsets = [0, 0], sizes = [2, 8], strides = [1, 1]} : vector<2x32xf32> to vector<2x8xf32>
    %cst_185 = arith.constant 0.000000e+00 : f32
    %529 = vector.broadcast %cst_185 : f32 to vector<2x8xf32>
    %530 = arith.subf %529, %528 : vector<2x8xf32>
    %531 = math.exp %530 : vector<2x8xf32>
    %cst_186 = arith.constant 1.000000e+00 : f32
    %532 = vector.broadcast %cst_186 : f32 to vector<2x8xf32>
    %533 = arith.addf %532, %531 : vector<2x8xf32>
    %cst_187 = arith.constant 1.000000e+00 : f32
    %534 = vector.broadcast %cst_187 : f32 to vector<2x8xf32>
    %535 = arith.divf %534, %533 : vector<2x8xf32>
    %536 = vector.extract_strided_slice %527 {offsets = [0, 8], sizes = [2, 8], strides = [1, 1]} : vector<2x32xf32> to vector<2x8xf32>
    %cst_188 = arith.constant 0.000000e+00 : f32
    %537 = vector.broadcast %cst_188 : f32 to vector<2x8xf32>
    %538 = arith.subf %537, %536 : vector<2x8xf32>
    %539 = math.exp %538 : vector<2x8xf32>
    %cst_189 = arith.constant 1.000000e+00 : f32
    %540 = vector.broadcast %cst_189 : f32 to vector<2x8xf32>
    %541 = arith.addf %540, %539 : vector<2x8xf32>
    %cst_190 = arith.constant 1.000000e+00 : f32
    %542 = vector.broadcast %cst_190 : f32 to vector<2x8xf32>
    %543 = arith.divf %542, %541 : vector<2x8xf32>
    %544 = vector.extract_strided_slice %527 {offsets = [0, 16], sizes = [2, 8], strides = [1, 1]} : vector<2x32xf32> to vector<2x8xf32>
    %545 = math.tanh %544 : vector<2x8xf32>
    %546 = vector.extract_strided_slice %527 {offsets = [0, 24], sizes = [2, 8], strides = [1, 1]} : vector<2x32xf32> to vector<2x8xf32>
    %cst_191 = arith.constant 0.000000e+00 : f32
    %547 = vector.broadcast %cst_191 : f32 to vector<2x8xf32>
    %548 = arith.subf %547, %546 : vector<2x8xf32>
    %549 = math.exp %548 : vector<2x8xf32>
    %cst_192 = arith.constant 1.000000e+00 : f32
    %550 = vector.broadcast %cst_192 : f32 to vector<2x8xf32>
    %551 = arith.addf %550, %549 : vector<2x8xf32>
    %cst_193 = arith.constant 1.000000e+00 : f32
    %552 = vector.broadcast %cst_193 : f32 to vector<2x8xf32>
    %553 = arith.divf %552, %551 : vector<2x8xf32>
    %554 = arith.mulf %543, %486 : vector<2x8xf32>
    %555 = arith.mulf %535, %545 : vector<2x8xf32>
    %556 = arith.addf %554, %555 : vector<2x8xf32>
    %557 = math.tanh %556 : vector<2x8xf32>
    %558 = arith.mulf %553, %557 : vector<2x8xf32>
    %559 = vector.extract_strided_slice %120 {offsets = [0, 6, 0], sizes = [2, 1, 32], strides = [1, 1, 1]} : vector<2x8x32xf32> to vector<2x1x32xf32>
    %560 = vector.shape_cast %559 : vector<2x1x32xf32> to vector<2x32xf32>
    %cst_194 = arith.constant dense<0.000000e+00> : vector<2x32xf32>
    %561 = tpu.matmul %523, %133, %cst_194 {dimension_numbers = #tpu.dot_dimension_numbers<[1], [0], [0], [1], [0, 0, 1, 1], [], []>} : vector<2x8xf32>, vector<8x32xf32>, vector<2x32xf32> -> vector<2x32xf32>
    %562 = arith.addf %560, %561 : vector<2x32xf32>
    %563 = vector.extract_strided_slice %562 {offsets = [0, 0], sizes = [2, 8], strides = [1, 1]} : vector<2x32xf32> to vector<2x8xf32>
    %cst_195 = arith.constant 0.000000e+00 : f32
    %564 = vector.broadcast %cst_195 : f32 to vector<2x8xf32>
    %565 = arith.subf %564, %563 : vector<2x8xf32>
    %566 = math.exp %565 : vector<2x8xf32>
    %cst_196 = arith.constant 1.000000e+00 : f32
    %567 = vector.broadcast %cst_196 : f32 to vector<2x8xf32>
    %568 = arith.addf %567, %566 : vector<2x8xf32>
    %cst_197 = arith.constant 1.000000e+00 : f32
    %569 = vector.broadcast %cst_197 : f32 to vector<2x8xf32>
    %570 = arith.divf %569, %568 : vector<2x8xf32>
    %571 = vector.extract_strided_slice %562 {offsets = [0, 8], sizes = [2, 8], strides = [1, 1]} : vector<2x32xf32> to vector<2x8xf32>
    %cst_198 = arith.constant 0.000000e+00 : f32
    %572 = vector.broadcast %cst_198 : f32 to vector<2x8xf32>
    %573 = arith.subf %572, %571 : vector<2x8xf32>
    %574 = math.exp %573 : vector<2x8xf32>
    %cst_199 = arith.constant 1.000000e+00 : f32
    %575 = vector.broadcast %cst_199 : f32 to vector<2x8xf32>
    %576 = arith.addf %575, %574 : vector<2x8xf32>
    %cst_200 = arith.constant 1.000000e+00 : f32
    %577 = vector.broadcast %cst_200 : f32 to vector<2x8xf32>
    %578 = arith.divf %577, %576 : vector<2x8xf32>
    %579 = vector.extract_strided_slice %562 {offsets = [0, 16], sizes = [2, 8], strides = [1, 1]} : vector<2x32xf32> to vector<2x8xf32>
    %580 = math.tanh %579 : vector<2x8xf32>
    %581 = vector.extract_strided_slice %562 {offsets = [0, 24], sizes = [2, 8], strides = [1, 1]} : vector<2x32xf32> to vector<2x8xf32>
    %cst_201 = arith.constant 0.000000e+00 : f32
    %582 = vector.broadcast %cst_201 : f32 to vector<2x8xf32>
    %583 = arith.subf %582, %581 : vector<2x8xf32>
    %584 = math.exp %583 : vector<2x8xf32>
    %cst_202 = arith.constant 1.000000e+00 : f32
    %585 = vector.broadcast %cst_202 : f32 to vector<2x8xf32>
    %586 = arith.addf %585, %584 : vector<2x8xf32>
    %cst_203 = arith.constant 1.000000e+00 : f32
    %587 = vector.broadcast %cst_203 : f32 to vector<2x8xf32>
    %588 = arith.divf %587, %586 : vector<2x8xf32>
    %589 = arith.mulf %578, %521 : vector<2x8xf32>
    %590 = arith.mulf %570, %580 : vector<2x8xf32>
    %591 = arith.addf %589, %590 : vector<2x8xf32>
    %592 = math.tanh %591 : vector<2x8xf32>
    %593 = arith.mulf %588, %592 : vector<2x8xf32>
    %594 = vector.extract_strided_slice %132 {offsets = [0, 1, 0], sizes = [2, 1, 32], strides = [1, 1, 1]} : vector<2x8x32xf32> to vector<2x1x32xf32>
    %595 = vector.shape_cast %594 : vector<2x1x32xf32> to vector<2x32xf32>
    %cst_204 = arith.constant dense<0.000000e+00> : vector<2x32xf32>
    %596 = tpu.matmul %558, %134, %cst_204 {dimension_numbers = #tpu.dot_dimension_numbers<[1], [0], [0], [1], [0, 0, 1, 1], [], []>} : vector<2x8xf32>, vector<8x32xf32>, vector<2x32xf32> -> vector<2x32xf32>
    %597 = arith.addf %595, %596 : vector<2x32xf32>
    %598 = vector.extract_strided_slice %597 {offsets = [0, 0], sizes = [2, 8], strides = [1, 1]} : vector<2x32xf32> to vector<2x8xf32>
    %cst_205 = arith.constant 0.000000e+00 : f32
    %599 = vector.broadcast %cst_205 : f32 to vector<2x8xf32>
    %600 = arith.subf %599, %598 : vector<2x8xf32>
    %601 = math.exp %600 : vector<2x8xf32>
    %cst_206 = arith.constant 1.000000e+00 : f32
    %602 = vector.broadcast %cst_206 : f32 to vector<2x8xf32>
    %603 = arith.addf %602, %601 : vector<2x8xf32>
    %cst_207 = arith.constant 1.000000e+00 : f32
    %604 = vector.broadcast %cst_207 : f32 to vector<2x8xf32>
    %605 = arith.divf %604, %603 : vector<2x8xf32>
    %606 = vector.extract_strided_slice %597 {offsets = [0, 8], sizes = [2, 8], strides = [1, 1]} : vector<2x32xf32> to vector<2x8xf32>
    %cst_208 = arith.constant 0.000000e+00 : f32
    %607 = vector.broadcast %cst_208 : f32 to vector<2x8xf32>
    %608 = arith.subf %607, %606 : vector<2x8xf32>
    %609 = math.exp %608 : vector<2x8xf32>
    %cst_209 = arith.constant 1.000000e+00 : f32
    %610 = vector.broadcast %cst_209 : f32 to vector<2x8xf32>
    %611 = arith.addf %610, %609 : vector<2x8xf32>
    %cst_210 = arith.constant 1.000000e+00 : f32
    %612 = vector.broadcast %cst_210 : f32 to vector<2x8xf32>
    %613 = arith.divf %612, %611 : vector<2x8xf32>
    %614 = vector.extract_strided_slice %597 {offsets = [0, 16], sizes = [2, 8], strides = [1, 1]} : vector<2x32xf32> to vector<2x8xf32>
    %615 = math.tanh %614 : vector<2x8xf32>
    %616 = vector.extract_strided_slice %597 {offsets = [0, 24], sizes = [2, 8], strides = [1, 1]} : vector<2x32xf32> to vector<2x8xf32>
    %cst_211 = arith.constant 0.000000e+00 : f32
    %617 = vector.broadcast %cst_211 : f32 to vector<2x8xf32>
    %618 = arith.subf %617, %616 : vector<2x8xf32>
    %619 = math.exp %618 : vector<2x8xf32>
    %cst_212 = arith.constant 1.000000e+00 : f32
    %620 = vector.broadcast %cst_212 : f32 to vector<2x8xf32>
    %621 = arith.addf %620, %619 : vector<2x8xf32>
    %cst_213 = arith.constant 1.000000e+00 : f32
    %622 = vector.broadcast %cst_213 : f32 to vector<2x8xf32>
    %623 = arith.divf %622, %621 : vector<2x8xf32>
    %624 = arith.mulf %613, %556 : vector<2x8xf32>
    %625 = arith.mulf %605, %615 : vector<2x8xf32>
    %626 = arith.addf %624, %625 : vector<2x8xf32>
    %627 = math.tanh %626 : vector<2x8xf32>
    %628 = arith.mulf %623, %627 : vector<2x8xf32>
    %629 = vector.extract_strided_slice %120 {offsets = [0, 7, 0], sizes = [2, 1, 32], strides = [1, 1, 1]} : vector<2x8x32xf32> to vector<2x1x32xf32>
    %630 = vector.shape_cast %629 : vector<2x1x32xf32> to vector<2x32xf32>
    %cst_214 = arith.constant dense<0.000000e+00> : vector<2x32xf32>
    %631 = tpu.matmul %593, %133, %cst_214 {dimension_numbers = #tpu.dot_dimension_numbers<[1], [0], [0], [1], [0, 0, 1, 1], [], []>} : vector<2x8xf32>, vector<8x32xf32>, vector<2x32xf32> -> vector<2x32xf32>
    %632 = arith.addf %630, %631 : vector<2x32xf32>
    %633 = vector.extract_strided_slice %632 {offsets = [0, 0], sizes = [2, 8], strides = [1, 1]} : vector<2x32xf32> to vector<2x8xf32>
    %cst_215 = arith.constant 0.000000e+00 : f32
    %634 = vector.broadcast %cst_215 : f32 to vector<2x8xf32>
    %635 = arith.subf %634, %633 : vector<2x8xf32>
    %636 = math.exp %635 : vector<2x8xf32>
    %cst_216 = arith.constant 1.000000e+00 : f32
    %637 = vector.broadcast %cst_216 : f32 to vector<2x8xf32>
    %638 = arith.addf %637, %636 : vector<2x8xf32>
    %cst_217 = arith.constant 1.000000e+00 : f32
    %639 = vector.broadcast %cst_217 : f32 to vector<2x8xf32>
    %640 = arith.divf %639, %638 : vector<2x8xf32>
    %641 = vector.extract_strided_slice %632 {offsets = [0, 8], sizes = [2, 8], strides = [1, 1]} : vector<2x32xf32> to vector<2x8xf32>
    %cst_218 = arith.constant 0.000000e+00 : f32
    %642 = vector.broadcast %cst_218 : f32 to vector<2x8xf32>
    %643 = arith.subf %642, %641 : vector<2x8xf32>
    %644 = math.exp %643 : vector<2x8xf32>
    %cst_219 = arith.constant 1.000000e+00 : f32
    %645 = vector.broadcast %cst_219 : f32 to vector<2x8xf32>
    %646 = arith.addf %645, %644 : vector<2x8xf32>
    %cst_220 = arith.constant 1.000000e+00 : f32
    %647 = vector.broadcast %cst_220 : f32 to vector<2x8xf32>
    %648 = arith.divf %647, %646 : vector<2x8xf32>
    %649 = vector.extract_strided_slice %632 {offsets = [0, 16], sizes = [2, 8], strides = [1, 1]} : vector<2x32xf32> to vector<2x8xf32>
    %650 = math.tanh %649 : vector<2x8xf32>
    %651 = vector.extract_strided_slice %632 {offsets = [0, 24], sizes = [2, 8], strides = [1, 1]} : vector<2x32xf32> to vector<2x8xf32>
    %cst_221 = arith.constant 0.000000e+00 : f32
    %652 = vector.broadcast %cst_221 : f32 to vector<2x8xf32>
    %653 = arith.subf %652, %651 : vector<2x8xf32>
    %654 = math.exp %653 : vector<2x8xf32>
    %cst_222 = arith.constant 1.000000e+00 : f32
    %655 = vector.broadcast %cst_222 : f32 to vector<2x8xf32>
    %656 = arith.addf %655, %654 : vector<2x8xf32>
    %cst_223 = arith.constant 1.000000e+00 : f32
    %657 = vector.broadcast %cst_223 : f32 to vector<2x8xf32>
    %658 = arith.divf %657, %656 : vector<2x8xf32>
    %659 = arith.mulf %648, %591 : vector<2x8xf32>
    %660 = arith.mulf %640, %650 : vector<2x8xf32>
    %661 = arith.addf %659, %660 : vector<2x8xf32>
    %662 = math.tanh %661 : vector<2x8xf32>
    %663 = arith.mulf %658, %662 : vector<2x8xf32>
    %664 = vector.extract_strided_slice %132 {offsets = [0, 0, 0], sizes = [2, 1, 32], strides = [1, 1, 1]} : vector<2x8x32xf32> to vector<2x1x32xf32>
    %665 = vector.shape_cast %664 : vector<2x1x32xf32> to vector<2x32xf32>
    %cst_224 = arith.constant dense<0.000000e+00> : vector<2x32xf32>
    %666 = tpu.matmul %628, %134, %cst_224 {dimension_numbers = #tpu.dot_dimension_numbers<[1], [0], [0], [1], [0, 0, 1, 1], [], []>} : vector<2x8xf32>, vector<8x32xf32>, vector<2x32xf32> -> vector<2x32xf32>
    %667 = arith.addf %665, %666 : vector<2x32xf32>
    %668 = vector.extract_strided_slice %667 {offsets = [0, 0], sizes = [2, 8], strides = [1, 1]} : vector<2x32xf32> to vector<2x8xf32>
    %cst_225 = arith.constant 0.000000e+00 : f32
    %669 = vector.broadcast %cst_225 : f32 to vector<2x8xf32>
    %670 = arith.subf %669, %668 : vector<2x8xf32>
    %671 = math.exp %670 : vector<2x8xf32>
    %cst_226 = arith.constant 1.000000e+00 : f32
    %672 = vector.broadcast %cst_226 : f32 to vector<2x8xf32>
    %673 = arith.addf %672, %671 : vector<2x8xf32>
    %cst_227 = arith.constant 1.000000e+00 : f32
    %674 = vector.broadcast %cst_227 : f32 to vector<2x8xf32>
    %675 = arith.divf %674, %673 : vector<2x8xf32>
    %676 = vector.extract_strided_slice %667 {offsets = [0, 8], sizes = [2, 8], strides = [1, 1]} : vector<2x32xf32> to vector<2x8xf32>
    %cst_228 = arith.constant 0.000000e+00 : f32
    %677 = vector.broadcast %cst_228 : f32 to vector<2x8xf32>
    %678 = arith.subf %677, %676 : vector<2x8xf32>
    %679 = math.exp %678 : vector<2x8xf32>
    %cst_229 = arith.constant 1.000000e+00 : f32
    %680 = vector.broadcast %cst_229 : f32 to vector<2x8xf32>
    %681 = arith.addf %680, %679 : vector<2x8xf32>
    %cst_230 = arith.constant 1.000000e+00 : f32
    %682 = vector.broadcast %cst_230 : f32 to vector<2x8xf32>
    %683 = arith.divf %682, %681 : vector<2x8xf32>
    %684 = vector.extract_strided_slice %667 {offsets = [0, 16], sizes = [2, 8], strides = [1, 1]} : vector<2x32xf32> to vector<2x8xf32>
    %685 = math.tanh %684 : vector<2x8xf32>
    %686 = vector.extract_strided_slice %667 {offsets = [0, 24], sizes = [2, 8], strides = [1, 1]} : vector<2x32xf32> to vector<2x8xf32>
    %cst_231 = arith.constant 0.000000e+00 : f32
    %687 = vector.broadcast %cst_231 : f32 to vector<2x8xf32>
    %688 = arith.subf %687, %686 : vector<2x8xf32>
    %689 = math.exp %688 : vector<2x8xf32>
    %cst_232 = arith.constant 1.000000e+00 : f32
    %690 = vector.broadcast %cst_232 : f32 to vector<2x8xf32>
    %691 = arith.addf %690, %689 : vector<2x8xf32>
    %cst_233 = arith.constant 1.000000e+00 : f32
    %692 = vector.broadcast %cst_233 : f32 to vector<2x8xf32>
    %693 = arith.divf %692, %691 : vector<2x8xf32>
    %694 = arith.mulf %683, %626 : vector<2x8xf32>
    %695 = arith.mulf %675, %685 : vector<2x8xf32>
    %696 = arith.addf %694, %695 : vector<2x8xf32>
    %697 = math.tanh %696 : vector<2x8xf32>
    %698 = arith.mulf %693, %697 : vector<2x8xf32>
    %699 = tpu.concatenate %663, %698 in 1 : vector<2x8xf32>, vector<2x8xf32> -> vector<2x16xf32>
    %700 = vector.extract_strided_slice %699 {offsets = [0, 0], sizes = [1, 16], strides = [1, 1]} : vector<2x16xf32> to vector<1x16xf32>
    %701 = vector.extract_strided_slice %699 {offsets = [1, 0], sizes = [1, 16], strides = [1, 1]} : vector<2x16xf32> to vector<1x16xf32>
    %702 = arith.mulf %700, %700 : vector<1x16xf32>
    %cst_234 = arith.constant dense<0.000000e+00> : vector<1xf32>
    %703 = vector.multi_reduction <add>, %702, %cst_234 [1] : vector<1x16xf32> to vector<1xf32>
    %704 = vector.shape_cast %703 : vector<1xf32> to vector<1x1xf32>
    %705 = math.sqrt %704 : vector<1x1xf32>
    %cst_235 = arith.constant 9.99999996E-13 : f32
    %706 = vector.broadcast %cst_235 : f32 to vector<1x1xf32>
    %707 = arith.maximumf %705, %706 : vector<1x1xf32>
    %708 = vector.broadcast %707 : vector<1x1xf32> to vector<1x16xf32>
    %709 = arith.divf %700, %708 : vector<1x16xf32>
    %710 = arith.mulf %701, %701 : vector<1x16xf32>
    %cst_236 = arith.constant dense<0.000000e+00> : vector<1xf32>
    %711 = vector.multi_reduction <add>, %710, %cst_236 [1] : vector<1x16xf32> to vector<1xf32>
    %712 = vector.shape_cast %711 : vector<1xf32> to vector<1x1xf32>
    %713 = math.sqrt %712 : vector<1x1xf32>
    %cst_237 = arith.constant 9.99999996E-13 : f32
    %714 = vector.broadcast %cst_237 : f32 to vector<1x1xf32>
    %715 = arith.maximumf %713, %714 : vector<1x1xf32>
    %716 = vector.broadcast %715 : vector<1x1xf32> to vector<1x16xf32>
    %717 = arith.divf %701, %716 : vector<1x16xf32>
    %c0_238 = arith.constant 0 : index
    %c0_239 = arith.constant 0 : index
    %c0_240 = arith.constant 0 : index
    %718 = vector.load %arg24[%c0_238, %c0_239, %c0_240] : memref<1x1x16xf32, #tpu.memory_space<vmem>>, vector<1x1x16xf32>
    %719 = vector.shape_cast %718 : vector<1x1x16xf32> to vector<1x16xf32>
    %720 = vector.shape_cast %709 : vector<1x16xf32> to vector<1x1x16xf32>
    tpu.vector_store %arg24[%c0_238, %c0_239, %c0_240], %720 {strides = array<i32>} : memref<1x1x16xf32, #tpu.memory_space<vmem>>, vector<1x1x16xf32>,
    %c0_241 = arith.constant 0 : index
    %c0_242 = arith.constant 0 : index
    %c0_243 = arith.constant 0 : index
    %721 = vector.load %arg25[%c0_241, %c0_242, %c0_243] : memref<1x1x16xf32, #tpu.memory_space<vmem>>, vector<1x1x16xf32>
    %722 = vector.shape_cast %721 : vector<1x1x16xf32> to vector<1x16xf32>
    %723 = vector.shape_cast %717 : vector<1x16xf32> to vector<1x1x16xf32>
    tpu.vector_store %arg25[%c0_241, %c0_242, %c0_243], %723 {strides = array<i32>} : memref<1x1x16xf32, #tpu.memory_space<vmem>>, vector<1x1x16xf32>,
    %724 = arith.mulf %709, %709 : vector<1x16xf32>
    %cst_244 = arith.constant dense<0.000000e+00> : vector<1xf32>
    %725 = vector.multi_reduction <add>, %724, %cst_244 [1] : vector<1x16xf32> to vector<1xf32>
    %726 = vector.shape_cast %725 : vector<1xf32> to vector<1x1xf32>
    %727 = math.sqrt %726 : vector<1x1xf32>
    %728 = arith.mulf %717, %717 : vector<1x16xf32>
    %cst_245 = arith.constant dense<0.000000e+00> : vector<1xf32>
    %729 = vector.multi_reduction <add>, %728, %cst_245 [1] : vector<1x16xf32> to vector<1xf32>
    %730 = vector.shape_cast %729 : vector<1xf32> to vector<1x1xf32>
    %731 = math.sqrt %730 : vector<1x1xf32>
    %732 = arith.mulf %709, %717 : vector<1x16xf32>
    %cst_246 = arith.constant dense<0.000000e+00> : vector<1xf32>
    %733 = vector.multi_reduction <add>, %732, %cst_246 [1] : vector<1x16xf32> to vector<1xf32>
    %734 = vector.shape_cast %733 : vector<1xf32> to vector<1x1xf32>
    %735 = arith.mulf %727, %731 : vector<1x1xf32>
    %cst_247 = arith.constant 9.99999993E-9 : f32
    %736 = vector.broadcast %cst_247 : f32 to vector<1x1xf32>
    %737 = arith.maximumf %735, %736 : vector<1x1xf32>
    %738 = arith.divf %734, %737 : vector<1x1xf32>
    %c0_248 = arith.constant 0 : index
    %c0_249 = arith.constant 0 : index
    %739 = vector.load %arg21[%c0_248, %c0_249] : memref<1x1xf32, #tpu.memory_space<vmem>>, vector<1x1xf32>
    %740 = arith.mulf %738, %739 : vector<1x1xf32>
    %c0_250 = arith.constant 0 : index
    %c0_251 = arith.constant 0 : index
    %741 = vector.load %arg22[%c0_250, %c0_251] : memref<1x1xf32, #tpu.memory_space<vmem>>, vector<1x1xf32>
    %742 = arith.addf %740, %741 : vector<1x1xf32>
    %c0_252 = arith.constant 0 : index
    %c0_253 = arith.constant 0 : index
    %c0_254 = arith.constant 0 : index
    %743 = vector.load %arg23[%c0_252, %c0_253, %c0_254] : memref<1x1x1xf32, #tpu.memory_space<vmem>>, vector<1x1x1xf32>
    %744 = vector.shape_cast %743 : vector<1x1x1xf32> to vector<1x1xf32>
    %745 = vector.shape_cast %742 : vector<1x1xf32> to vector<1x1x1xf32>
    tpu.vector_store %arg23[%c0_252, %c0_253, %c0_254], %745 {strides = array<i32>} : memref<1x1x1xf32, #tpu.memory_space<vmem>>, vector<1x1x1xf32>,
    return
  }
  func.func @transform_0(%arg0: i32) -> (i32, i32, i32, i32) {
    %c0_i32 = arith.constant 0 : i32
    %c0_i32_0 = arith.constant 0 : i32
    %c0_i32_1 = arith.constant 0 : i32
    %c0_i32_2 = arith.constant 0 : i32
    return %c0_i32, %arg0, %c0_i32_0, %c0_i32_1 : i32, i32, i32, i32
  }
  func.func @transform_1(%arg0: i32) -> (i32, i32, i32, i32) {
    %c0_i32 = arith.constant 0 : i32
    %c0_i32_0 = arith.constant 0 : i32
    %c0_i32_1 = arith.constant 0 : i32
    %c0_i32_2 = arith.constant 0 : i32
    return %c0_i32, %arg0, %c0_i32_0, %c0_i32_1 : i32, i32, i32, i32
  }
  func.func @transform_2(%arg0: i32) -> (i32, i32) {
    %c0_i32 = arith.constant 0 : i32
    %c0_i32_0 = arith.constant 0 : i32
    %c0_i32_1 = arith.constant 0 : i32
    return %c0_i32, %c0_i32_0 : i32, i32
  }
  func.func @transform_3(%arg0: i32) -> (i32, i32) {
    %c0_i32 = arith.constant 0 : i32
    %c0_i32_0 = arith.constant 0 : i32
    %c0_i32_1 = arith.constant 0 : i32
    return %c0_i32, %c0_i32_0 : i32, i32
  }
  func.func @transform_4(%arg0: i32) -> (i32, i32) {
    %c0_i32 = arith.constant 0 : i32
    %c0_i32_0 = arith.constant 0 : i32
    %c0_i32_1 = arith.constant 0 : i32
    return %c0_i32, %c0_i32_0 : i32, i32
  }
  func.func @transform_5(%arg0: i32) -> (i32, i32) {
    %c0_i32 = arith.constant 0 : i32
    %c0_i32_0 = arith.constant 0 : i32
    %c0_i32_1 = arith.constant 0 : i32
    return %c0_i32, %c0_i32_0 : i32, i32
  }
  func.func @transform_6(%arg0: i32) -> (i32, i32) {
    %c0_i32 = arith.constant 0 : i32
    %c0_i32_0 = arith.constant 0 : i32
    %c0_i32_1 = arith.constant 0 : i32
    return %c0_i32, %c0_i32_0 : i32, i32
  }
  func.func @transform_7(%arg0: i32) -> (i32, i32) {
    %c0_i32 = arith.constant 0 : i32
    %c0_i32_0 = arith.constant 0 : i32
    %c0_i32_1 = arith.constant 0 : i32
    return %c0_i32, %c0_i32_0 : i32, i32
  }
  func.func @transform_8(%arg0: i32) -> (i32, i32) {
    %c0_i32 = arith.constant 0 : i32
    %c0_i32_0 = arith.constant 0 : i32
    %c0_i32_1 = arith.constant 0 : i32
    return %c0_i32, %c0_i32_0 : i32, i32
  }
  func.func @transform_9(%arg0: i32) -> (i32, i32) {
    %c0_i32 = arith.constant 0 : i32
    %c0_i32_0 = arith.constant 0 : i32
    %c0_i32_1 = arith.constant 0 : i32
    return %c0_i32, %c0_i32_0 : i32, i32
  }
  func.func @transform_10(%arg0: i32) -> (i32, i32) {
    %c0_i32 = arith.constant 0 : i32
    %c0_i32_0 = arith.constant 0 : i32
    %c0_i32_1 = arith.constant 0 : i32
    return %c0_i32, %c0_i32_0 : i32, i32
  }
  func.func @transform_11(%arg0: i32) -> (i32, i32) {
    %c0_i32 = arith.constant 0 : i32
    %c0_i32_0 = arith.constant 0 : i32
    %c0_i32_1 = arith.constant 0 : i32
    return %c0_i32, %c0_i32_0 : i32, i32
  }
  func.func @transform_12(%arg0: i32) -> (i32, i32) {
    %c0_i32 = arith.constant 0 : i32
    %c0_i32_0 = arith.constant 0 : i32
    %c0_i32_1 = arith.constant 0 : i32
    return %c0_i32, %c0_i32_0 : i32, i32
  }
  func.func @transform_13(%arg0: i32) -> (i32, i32) {
    %c0_i32 = arith.constant 0 : i32
    %c0_i32_0 = arith.constant 0 : i32
    %c0_i32_1 = arith.constant 0 : i32
    return %c0_i32, %c0_i32_0 : i32, i32
  }
  func.func @transform_14(%arg0: i32) -> (i32, i32) {
    %c0_i32 = arith.constant 0 : i32
    %c0_i32_0 = arith.constant 0 : i32
    %c0_i32_1 = arith.constant 0 : i32
    return %c0_i32, %c0_i32_0 : i32, i32
  }
  func.func @transform_15(%arg0: i32) -> (i32, i32) {
    %c0_i32 = arith.constant 0 : i32
    %c0_i32_0 = arith.constant 0 : i32
    %c0_i32_1 = arith.constant 0 : i32
    return %c0_i32, %c0_i32_0 : i32, i32
  }
  func.func @transform_16(%arg0: i32) -> (i32, i32) {
    %c0_i32 = arith.constant 0 : i32
    %c0_i32_0 = arith.constant 0 : i32
    %c0_i32_1 = arith.constant 0 : i32
    return %c0_i32, %c0_i32_0 : i32, i32
  }
  func.func @transform_17(%arg0: i32) -> (i32, i32) {
    %c0_i32 = arith.constant 0 : i32
    %c0_i32_0 = arith.constant 0 : i32
    %c0_i32_1 = arith.constant 0 : i32
    return %c0_i32, %c0_i32_0 : i32, i32
  }
  func.func @transform_18(%arg0: i32) -> (i32, i32) {
    %c0_i32 = arith.constant 0 : i32
    %c0_i32_0 = arith.constant 0 : i32
    %c0_i32_1 = arith.constant 0 : i32
    return %c0_i32, %c0_i32_0 : i32, i32
  }
  func.func @transform_19(%arg0: i32) -> (i32, i32) {
    %c0_i32 = arith.constant 0 : i32
    %c0_i32_0 = arith.constant 0 : i32
    %c0_i32_1 = arith.constant 0 : i32
    return %c0_i32, %c0_i32_0 : i32, i32
  }
  func.func @transform_20(%arg0: i32) -> (i32, i32) {
    %c0_i32 = arith.constant 0 : i32
    %c0_i32_0 = arith.constant 0 : i32
    %c0_i32_1 = arith.constant 0 : i32
    return %c0_i32, %c0_i32_0 : i32, i32
  }
  func.func @transform_21(%arg0: i32) -> (i32, i32) {
    %c0_i32 = arith.constant 0 : i32
    %c0_i32_0 = arith.constant 0 : i32
    %c0_i32_1 = arith.constant 0 : i32
    return %c0_i32, %c0_i32_0 : i32, i32
  }
  func.func @transform_22(%arg0: i32) -> (i32, i32, i32) {
    %c0_i32 = arith.constant 0 : i32
    %c0_i32_0 = arith.constant 0 : i32
    %c0_i32_1 = arith.constant 0 : i32
    return %arg0, %c0_i32, %c0_i32_0 : i32, i32, i32
  }
  func.func @transform_23(%arg0: i32) -> (i32, i32, i32) {
    %c0_i32 = arith.constant 0 : i32
    %c0_i32_0 = arith.constant 0 : i32
    %c0_i32_1 = arith.constant 0 : i32
    return %arg0, %c0_i32, %c0_i32_0 : i32, i32, i32
  }
  func.func @transform_24(%arg0: i32) -> (i32, i32, i32) {
    %c0_i32 = arith.constant 0 : i32
    %c0_i32_0 = arith.constant 0 : i32
    %c0_i32_1 = arith.constant 0 : i32
    return %arg0, %c0_i32, %c0_i32_0 : i32, i32, i32
  }
}

</mosaic_0001>

<llo_original>
// kernel: tpu_custom_call.1
$region0: #{tpu_custom_call.1}
  #allocation0 [shape = 'u32[]', space=smem, size = 0x4, offset = 0x4, fixed_abs, tag = 'smem constant byte address 0x4 - core index']
  #allocation1 [shape = 'u32[144,128]{1,0:T(1,128)}', space=vmem, size = 0x12000, scoped, tag = 'internal scratch']
  #allocation2 [shape = 'f32[1,1]{1,0:T(1,128)S(1)}', space=vmem, size = 0x200, scoped, tag = 'scoped memory for tpu_custom_call.1']
  #allocation3 [shape = 'f32[1,1]{1,0:T(1,128)S(1)}', space=vmem, size = 0x200, scoped, tag = 'scoped memory for tpu_custom_call.1']
  %s0 = inlined_call_operand.hbm [shape: f32[2,2,8,32], index: 0, kind: input, shape index: {}]
  %s1 = inlined_call_operand.hbm [shape: f32[2,2,8,4], index: 1, kind: input, shape index: {}]
  %s2 = inlined_call_operand.hbm [shape: bf16[32,32], index: 2, kind: input, shape index: {}]
  %s3 = inlined_call_operand.hbm [shape: f32[1,32], index: 3, kind: input, shape index: {}]
  %s4 = inlined_call_operand.hbm [shape: f32[1,32], index: 4, kind: input, shape index: {}]
  %s5 = inlined_call_operand.hbm [shape: f32[1,32], index: 5, kind: input, shape index: {}]
  %s6 = inlined_call_operand.hbm [shape: bf16[32,16], index: 6, kind: input, shape index: {}]
  %s7 = inlined_call_operand.hbm [shape: f32[1,16], index: 7, kind: input, shape index: {}]
  %s8 = inlined_call_operand.hbm [shape: f32[1,16], index: 8, kind: input, shape index: {}]
  %s9 = inlined_call_operand.hbm [shape: f32[1,16], index: 9, kind: input, shape index: {}]
  %s10 = inlined_call_operand.hbm [shape: bf16[16,8], index: 10, kind: input, shape index: {}]
  %s11 = inlined_call_operand.hbm [shape: f32[1,8], index: 11, kind: input, shape index: {}]
  %s12 = inlined_call_operand.hbm [shape: f32[1,8], index: 12, kind: input, shape index: {}]
  %s13 = inlined_call_operand.hbm [shape: f32[1,8], index: 13, kind: input, shape index: {}]
  %s14 = inlined_call_operand.hbm [shape: bf16[12,32], index: 14, kind: input, shape index: {}]
  %s15 = inlined_call_operand.hbm [shape: f32[1,32], index: 15, kind: input, shape index: {}]
  %s16 = inlined_call_operand.hbm [shape: bf16[12,32], index: 16, kind: input, shape index: {}]
  %s17 = inlined_call_operand.hbm [shape: f32[1,32], index: 17, kind: input, shape index: {}]
  %s18 = inlined_call_operand.hbm [shape: f32[8,32], index: 18, kind: input, shape index: {}]
  %s19 = inlined_call_operand.hbm [shape: f32[8,32], index: 19, kind: input, shape index: {}]
  %s20 = inlined_call_operand.<no memory space> [shape: f32[1,1], index: 20, kind: input, shape index: {}]
  %s21 = inlined_call_operand.<no memory space> [shape: f32[1,1], index: 21, kind: input, shape index: {}]
  %s22 = inlined_call_operand.hbm [shape: f32[2,1,1], index: 22, kind: output, shape index: {0}]
  %s23 = inlined_call_operand.hbm [shape: f32[2,1,16], index: 23, kind: output, shape index: {1}]
  %s24 = inlined_call_operand.hbm [shape: f32[2,1,16], index: 24, kind: output, shape index: {2}]
  %25 = xla_tuple %s22, %s23, %s24
  %s26 = sld [smem:[#allocation0]]
  $region217: #{tpu_custom_call.1} parent=0
    _
  %s28 = ssub.s32 1, %s26
  %s29 = scalar_select 0, %s28, %s26
  %v30 = vstv %s20
  %31 = vst [vmem:[#allocation2] sm:$0x1] %v30
  %v32 = vstv %s21
  %33 = vst [vmem:[#allocation3] sm:$0x1] %v32
  $region1: #{tpu_custom_call.1} parent=0
    #allocation4 [shape = 'u8[16384]{0}', space=vmem, size = 0x4000, scoped, tag = 'input window, operand 0']
    #allocation5 [shape = 's32[2]{0}', space=sflag, size = 0x8, scoped, tag = 'scoped memory for tpu_custom_call.1']
    #allocation6 [shape = 's32[2]{0}', space=sflag, size = 0x8, scoped, tag = 'scoped memory for tpu_custom_call.1']
    #allocation7 [shape = 'u8[16384]{0}', space=vmem, size = 0x4000, scoped, tag = 'input window, operand 1']
    #allocation8 [shape = 's32[2]{0}', space=sflag, size = 0x8, scoped, tag = 'scoped memory for tpu_custom_call.1']
    #allocation9 [shape = 'u8[8192]{0}', space=vmem, size = 0x2000, scoped, tag = 'input window, operand 2, single buffered']
    #allocation10 [shape = 'u8[512]{0}', space=vmem, size = 0x400, scoped, tag = 'input window, operand 3, single buffered']
    #allocation11 [shape = 's32[1]{0}', space=sflag, size = 0x4, scoped, tag = 'scoped memory for tpu_custom_call.1']
    #allocation12 [shape = 'u8[512]{0}', space=vmem, size = 0x400, scoped, tag = 'input window, operand 4, single buffered']
    #allocation13 [shape = 'u8[512]{0}', space=vmem, size = 0x400, scoped, tag = 'input window, operand 5, single buffered']
    #allocation14 [shape = 's32[1]{0}', space=sflag, size = 0x4, scoped, tag = 'scoped memory for tpu_custom_call.1']
    #allocation15 [shape = 'u8[8192]{0}', space=vmem, size = 0x2000, scoped, tag = 'input window, operand 6, single buffered']
    #allocation16 [shape = 'u8[512]{0}', space=vmem, size = 0x400, scoped, tag = 'input window, operand 7, single buffered']
    #allocation17 [shape = 's32[1]{0}', space=sflag, size = 0x4, scoped, tag = 'scoped memory for tpu_custom_call.1']
    #allocation18 [shape = 'u8[512]{0}', space=vmem, size = 0x400, scoped, tag = 'input window, operand 8, single buffered']
    #allocation19 [shape = 'u8[512]{0}', space=vmem, size = 0x400, scoped, tag = 'input window, operand 9, single buffered']
    #allocation20 [shape = 's32[1]{0}', space=sflag, size = 0x4, scoped, tag = 'scoped memory for tpu_custom_call.1']
    #allocation21 [shape = 'u8[4096]{0}', space=vmem, size = 0x1000, scoped, tag = 'input window, operand 10, single buffered']
    #allocation22 [shape = 'u8[512]{0}', space=vmem, size = 0x400, scoped, tag = 'input window, operand 11, single buffered']
    #allocation23 [shape = 's32[1]{0}', space=sflag, size = 0x4, scoped, tag = 'scoped memory for tpu_custom_call.1']
    #allocation24 [shape = 'u8[512]{0}', space=vmem, size = 0x400, scoped, tag = 'input window, operand 12, single buffered']
    #allocation25 [shape = 'u8[512]{0}', space=vmem, size = 0x400, scoped, tag = 'input window, operand 13, single buffered']
    #allocation26 [shape = 's32[1]{0}', space=sflag, size = 0x4, scoped, tag = 'scoped memory for tpu_custom_call.1']
    #allocation27 [shape = 'u8[4096]{0}', space=vmem, size = 0x1000, scoped, tag = 'input window, operand 14, single buffered']
    #allocation28 [shape = 'u8[512]{0}', space=vmem, size = 0x400, scoped, tag = 'input window, operand 15, single buffered']
    #allocation29 [shape = 's32[1]{0}', space=sflag, size = 0x4, scoped, tag = 'scoped memory for tpu_custom_call.1']
    #allocation30 [shape = 'u8[4096]{0}', space=vmem, size = 0x1000, scoped, tag = 'input window, operand 16, single buffered']
    #allocation31 [shape = 'u8[512]{0}', space=vmem, size = 0x400, scoped, tag = 'input window, operand 17, single buffered']
    #allocation32 [shape = 's32[1]{0}', space=sflag, size = 0x4, scoped, tag = 'scoped memory for tpu_custom_call.1']
    #allocation33 [shape = 'u8[4096]{0}', space=vmem, size = 0x1000, scoped, tag = 'input window, operand 18, single buffered']
    #allocation34 [shape = 'u8[4096]{0}', space=vmem, size = 0x1000, scoped, tag = 'input window, operand 19, single buffered']
    #allocation35 [shape = 's32[1]{0}', space=sflag, size = 0x4, scoped, tag = 'scoped memory for tpu_custom_call.1']
    #allocation36 [shape = 'u8[1024]{0}', space=vmem, size = 0x400, scoped, tag = 'output window, operand 0']
    #allocation37 [shape = 'u8[1024]{0}', space=vmem, size = 0x400, scoped, tag = 'output window, operand 1']
    #allocation38 [shape = 's32[2]{0}', space=sflag, size = 0x8, scoped, tag = 'scoped memory for tpu_custom_call.1']
    #allocation39 [shape = 'u8[1024]{0}', space=vmem, size = 0x400, scoped, tag = 'output window, operand 2']
    %34 = vsyncpa [#allocation5], 0
    %s35 = scalar_lea.sflag [#allocation5], 1
    %36 = vsyncpa %s35, 0
    %37 = vsyncpa [#allocation8], 0
    %s38 = scalar_lea.sflag [#allocation8], 1
    %39 = vsyncpa %s38, 0
    %40 = vsyncpa [#allocation11], 0
    %41 = vsyncpa [#allocation14], 0
    %42 = vsyncpa [#allocation17], 0
    %43 = vsyncpa [#allocation20], 0
    %44 = vsyncpa [#allocation23], 0
    %45 = vsyncpa [#allocation26], 0
    %46 = vsyncpa [#allocation29], 0
    %47 = vsyncpa [#allocation32], 0
    %48 = vsyncpa [#allocation35], 0
    %49 = vsyncpa [#allocation6], 0
    %s50 = scalar_lea.sflag [#allocation6], 1
    %51 = vsyncpa %s50, 0
    %52 = vsyncpa [#allocation38], 0
    %s53 = scalar_lea.sflag [#allocation38], 1
    %54 = vsyncpa %s53, 0
    loop: start=0, step=1, limit=4
    $region2: #{tpu_custom_call.1} parent=1 // loop_pre_header
      _
    $region3: #{tpu_custom_call.1} parent=1 // loop_header
      %s56 = sphi 0, %s60
      %p57 = scmp.ge.s32.totalorder %s56, 4
      %s66 = sphi 0, %s68
      %s69 = sphi 0, %s66
      %s70 = sphi 0, %s69
      %s86 = sphi 0, %s70
      %s92 = sphi 0, %s94
      %s95 = sphi 0, %s92
      %s96 = sphi 0, %s95
      %s112 = sphi 0, %s96
      %s116 = sphi 0, %s116
      %s118 = sphi 0, %s116
      %s119 = sphi 0, %s118
      %s133 = sphi 0, %s119
      %s137 = sphi 0, %s137
      %s139 = sphi 0, %s137
      %s140 = sphi 0, %s139
      %s154 = sphi 0, %s140
      %s158 = sphi 0, %s158
      %s160 = sphi 0, %s158
      %s161 = sphi 0, %s160
      %s175 = sphi 0, %s161
      %s179 = sphi 0, %s179
      %s181 = sphi 0, %s179
      %s182 = sphi 0, %s181
      %s196 = sphi 0, %s182
      %s200 = sphi 0, %s200
      %s202 = sphi 0, %s200
      %s203 = sphi 0, %s202
      %s217 = sphi 0, %s203
      %s221 = sphi 0, %s221
      %s223 = sphi 0, %s221
      %s224 = sphi 0, %s223
      %s238 = sphi 0, %s224
      %s242 = sphi 0, %s242
      %s244 = sphi 0, %s242
      %s245 = sphi 0, %s244
      %s259 = sphi 0, %s245
      %s263 = sphi 0, %s263
      %s265 = sphi 0, %s263
      %s266 = sphi 0, %s265
      %s280 = sphi 0, %s266
      %s284 = sphi 0, %s284
      %s286 = sphi 0, %s284
      %s287 = sphi 0, %s286
      %s301 = sphi 0, %s287
      %s305 = sphi 0, %s305
      %s307 = sphi 0, %s305
      %s308 = sphi 0, %s307
      %s322 = sphi 0, %s308
      %s326 = sphi 0, %s326
      %s328 = sphi 0, %s326
      %s329 = sphi 0, %s328
      %s343 = sphi 0, %s329
      %s347 = sphi 0, %s347
      %s349 = sphi 0, %s347
      %s350 = sphi 0, %s349
      %s364 = sphi 0, %s350
      %s368 = sphi 0, %s368
      %s370 = sphi 0, %s368
      %s371 = sphi 0, %s370
      %s385 = sphi 0, %s371
      %s389 = sphi 0, %s389
      %s391 = sphi 0, %s389
      %s392 = sphi 0, %s391
      %s406 = sphi 0, %s392
      %s410 = sphi 0, %s410
      %s412 = sphi 0, %s410
      %s413 = sphi 0, %s412
      %s427 = sphi 0, %s413
      %s431 = sphi 0, %s431
      %s433 = sphi 0, %s431
      %s434 = sphi 0, %s433
      %s448 = sphi 0, %s434
      %s452 = sphi 0, %s452
      %s454 = sphi 0, %s452
      %s455 = sphi 0, %s454
      %s469 = sphi 0, %s455
      %s473 = sphi 0, %s473
      %s475 = sphi 0, %s473
      %s476 = sphi 0, %s475
      %s490 = sphi 0, %s476
      %s494 = sphi 0, %s494
      %s496 = sphi 0, %s494
      %s497 = sphi 0, %s496
      %s511 = sphi 0, %s497
      %s515 = sphi 0, %s515
      %s517 = sphi 0, %s515
      %s518 = sphi 0, %s517
      %s532 = sphi 0, %s518
      %s538 = sphi 0, %s540
      %s541 = sphi 0, %s538
      %s542 = sphi 0, %s541
      %s558 = sphi 0, %s542
      %s564 = sphi 0, %s566
      %s567 = sphi 0, %s564
      %s568 = sphi 0, %s567
      %s584 = sphi 0, %s568
      %s590 = sphi 0, %s592
      %s593 = sphi 0, %s590
      %s594 = sphi 0, %s593
      %s610 = sphi 0, %s594
    $region4: #{tpu_custom_call.1} parent=1 // loop_header_branch
      %59 = sbr.rel (%p57) target = $region8
    $region5: #{tpu_custom_call.1} parent=1 // loop_body
      %s61 = ssub.s32 %s56, 1
      %s62 = ssub.s32 %s56, 2
      %s63 = sadd.s32 %s56, 1
      %s64 = ssub.s32 %s56, %s63
      %p65 = scmp.eq.s32.totalorder %s64, 0
      %s67 = sadd.s32 %s66, 1
      %s68 = scalar_select %p65, %s66, %s67
      %p71 = pneg %p65
      %p72 = scmp.eq.s32.totalorder %s56, 1
      %p73 = por %p71, %p72
      %p74 = scmp.ne.s32.totalorder %s66, %s69
      %p75 = scmp.eq.s32.totalorder %s56, 0
      %p76 = por %p74, %p75
      %p77 = scmp.ne.s32.totalorder %s66, %s69
      %p78 = scmp.eq.s32.totalorder %s61, 1
      %p79 = por %p77, %p78
      %p80 = scmp.ne.s32.totalorder %s69, %s70
      %p81 = scmp.eq.s32.totalorder %s61, 0
      %p82 = por %p80, %p81
      %p83 = scmp.ne.s32.totalorder %s69, %s70
      %p84 = scmp.eq.s32.totalorder %s62, 1
      %p85 = por %p83, %p84
      %p87 = scmp.ne.s32.totalorder %s70, %s86
      %p88 = scmp.eq.s32.totalorder %s62, 0
      %p89 = por %p87, %p88
      %s90 = ssub.s32 %s56, %s63
      %p91 = scmp.eq.s32.totalorder %s90, 0
      %s93 = sadd.s32 %s92, 1
      %s94 = scalar_select %p91, %s92, %s93
      %p97 = pneg %p91
      %p98 = scmp.eq.s32.totalorder %s56, 1
      %p99 = por %p97, %p98
      %p100 = scmp.ne.s32.totalorder %s92, %s95
      %p101 = scmp.eq.s32.totalorder %s56, 0
      %p102 = por %p100, %p101
      %p103 = scmp.ne.s32.totalorder %s92, %s95
      %p104 = scmp.eq.s32.totalorder %s61, 1
      %p105 = por %p103, %p104
      %p106 = scmp.ne.s32.totalorder %s95, %s96
      %p107 = scmp.eq.s32.totalorder %s61, 0
      %p108 = por %p106, %p107
      %p109 = scmp.ne.s32.totalorder %s95, %s96
      %p110 = scmp.eq.s32.totalorder %s62, 1
      %p111 = por %p109, %p110
      %p113 = scmp.ne.s32.totalorder %s96, %s112
      %p114 = scmp.eq.s32.totalorder %s62, 0
      %p115 = por %p113, %p114
      %s117 = sadd.s32 %s116, 1
      %p120 = scmp.eq.s32.totalorder %s56, 1
      %p121 = scmp.ne.s32.totalorder %s116, %s118
      %p122 = scmp.eq.s32.totalorder %s56, 0
      %p123 = por %p121, %p122
      %p124 = scmp.ne.s32.totalorder %s116, %s118
      %p125 = scmp.eq.s32.totalorder %s61, 1
      %p126 = por %p124, %p125
      %p127 = scmp.ne.s32.totalorder %s118, %s119
      %p128 = scmp.eq.s32.totalorder %s61, 0
      %p129 = por %p127, %p128
      %p130 = scmp.ne.s32.totalorder %s118, %s119
      %p131 = scmp.eq.s32.totalorder %s62, 1
      %p132 = por %p130, %p131
      %p134 = scmp.ne.s32.totalorder %s119, %s133
      %p135 = scmp.eq.s32.totalorder %s62, 0
      %p136 = por %p134, %p135
      %s138 = sadd.s32 %s137, 1
      %p141 = scmp.eq.s32.totalorder %s56, 1
      %p142 = scmp.ne.s32.totalorder %s137, %s139
      %p143 = scmp.eq.s32.totalorder %s56, 0
      %p144 = por %p142, %p143
      %p145 = scmp.ne.s32.totalorder %s137, %s139
      %p146 = scmp.eq.s32.totalorder %s61, 1
      %p147 = por %p145, %p146
      %p148 = scmp.ne.s32.totalorder %s139, %s140
      %p149 = scmp.eq.s32.totalorder %s61, 0
      %p150 = por %p148, %p149
      %p151 = scmp.ne.s32.totalorder %s139, %s140
      %p152 = scmp.eq.s32.totalorder %s62, 1
      %p153 = por %p151, %p152
      %p155 = scmp.ne.s32.totalorder %s140, %s154
      %p156 = scmp.eq.s32.totalorder %s62, 0
      %p157 = por %p155, %p156
      %s159 = sadd.s32 %s158, 1
      %p162 = scmp.eq.s32.totalorder %s56, 1
      %p163 = scmp.ne.s32.totalorder %s158, %s160
      %p164 = scmp.eq.s32.totalorder %s56, 0
      %p165 = por %p163, %p164
      %p166 = scmp.ne.s32.totalorder %s158, %s160
      %p167 = scmp.eq.s32.totalorder %s61, 1
      %p168 = por %p166, %p167
      %p169 = scmp.ne.s32.totalorder %s160, %s161
      %p170 = scmp.eq.s32.totalorder %s61, 0
      %p171 = por %p169, %p170
      %p172 = scmp.ne.s32.totalorder %s160, %s161
      %p173 = scmp.eq.s32.totalorder %s62, 1
      %p174 = por %p172, %p173
      %p176 = scmp.ne.s32.totalorder %s161, %s175
      %p177 = scmp.eq.s32.totalorder %s62, 0
      %p178 = por %p176, %p177
      %s180 = sadd.s32 %s179, 1
      %p183 = scmp.eq.s32.totalorder %s56, 1
      %p184 = scmp.ne.s32.totalorder %s179, %s181
      %p185 = scmp.eq.s32.totalorder %s56, 0
      %p186 = por %p184, %p185
      %p187 = scmp.ne.s32.totalorder %s179, %s181
      %p188 = scmp.eq.s32.totalorder %s61, 1
      %p189 = por %p187, %p188
      %p190 = scmp.ne.s32.totalorder %s181, %s182
      %p191 = scmp.eq.s32.totalorder %s61, 0
      %p192 = por %p190, %p191
      %p193 = scmp.ne.s32.totalorder %s181, %s182
      %p194 = scmp.eq.s32.totalorder %s62, 1
      %p195 = por %p193, %p194
      %p197 = scmp.ne.s32.totalorder %s182, %s196
      %p198 = scmp.eq.s32.totalorder %s62, 0
      %p199 = por %p197, %p198
      %s201 = sadd.s32 %s200, 1
      %p204 = scmp.eq.s32.totalorder %s56, 1
      %p205 = scmp.ne.s32.totalorder %s200, %s202
      %p206 = scmp.eq.s32.totalorder %s56, 0
      %p207 = por %p205, %p206
      %p208 = scmp.ne.s32.totalorder %s200, %s202
      %p209 = scmp.eq.s32.totalorder %s61, 1
      %p210 = por %p208, %p209
      %p211 = scmp.ne.s32.totalorder %s202, %s203
      %p212 = scmp.eq.s32.totalorder %s61, 0
      %p213 = por %p211, %p212
      %p214 = scmp.ne.s32.totalorder %s202, %s203
      %p215 = scmp.eq.s32.totalorder %s62, 1
      %p216 = por %p214, %p215
      %p218 = scmp.ne.s32.totalorder %s203, %s217
      %p219 = scmp.eq.s32.totalorder %s62, 0
      %p220 = por %p218, %p219
      %s222 = sadd.s32 %s221, 1
      %p225 = scmp.eq.s32.totalorder %s56, 1
      %p226 = scmp.ne.s32.totalorder %s221, %s223
      %p227 = scmp.eq.s32.totalorder %s56, 0
      %p228 = por %p226, %p227
      %p229 = scmp.ne.s32.totalorder %s221, %s223
      %p230 = scmp.eq.s32.totalorder %s61, 1
      %p231 = por %p229, %p230
      %p232 = scmp.ne.s32.totalorder %s223, %s224
      %p233 = scmp.eq.s32.totalorder %s61, 0
      %p234 = por %p232, %p233
      %p235 = scmp.ne.s32.totalorder %s223, %s224
      %p236 = scmp.eq.s32.totalorder %s62, 1
      %p237 = por %p235, %p236
      %p239 = scmp.ne.s32.totalorder %s224, %s238
      %p240 = scmp.eq.s32.totalorder %s62, 0
      %p241 = por %p239, %p240
      %s243 = sadd.s32 %s242, 1
      %p246 = scmp.eq.s32.totalorder %s56, 1
      %p247 = scmp.ne.s32.totalorder %s242, %s244
      %p248 = scmp.eq.s32.totalorder %s56, 0
      %p249 = por %p247, %p248
      %p250 = scmp.ne.s32.totalorder %s242, %s244
      %p251 = scmp.eq.s32.totalorder %s61, 1
      %p252 = por %p250, %p251
      %p253 = scmp.ne.s32.totalorder %s244, %s245
      %p254 = scmp.eq.s32.totalorder %s61, 0
      %p255 = por %p253, %p254
      %p256 = scmp.ne.s32.totalorder %s244, %s245
      %p257 = scmp.eq.s32.totalorder %s62, 1
      %p258 = por %p256, %p257
      %p260 = scmp.ne.s32.totalorder %s245, %s259
      %p261 = scmp.eq.s32.totalorder %s62, 0
      %p262 = por %p260, %p261
      %s264 = sadd.s32 %s263, 1
      %p267 = scmp.eq.s32.totalorder %s56, 1
      %p268 = scmp.ne.s32.totalorder %s263, %s265
      %p269 = scmp.eq.s32.totalorder %s56, 0
      %p270 = por %p268, %p269
      %p271 = scmp.ne.s32.totalorder %s263, %s265
      %p272 = scmp.eq.s32.totalorder %s61, 1
      %p273 = por %p271, %p272
      %p274 = scmp.ne.s32.totalorder %s265, %s266
      %p275 = scmp.eq.s32.totalorder %s61, 0
      %p276 = por %p274, %p275
      %p277 = scmp.ne.s32.totalorder %s265, %s266
      %p278 = scmp.eq.s32.totalorder %s62, 1
      %p279 = por %p277, %p278
      %p281 = scmp.ne.s32.totalorder %s266, %s280
      %p282 = scmp.eq.s32.totalorder %s62, 0
      %p283 = por %p281, %p282
      %s285 = sadd.s32 %s284, 1
      %p288 = scmp.eq.s32.totalorder %s56, 1
      %p289 = scmp.ne.s32.totalorder %s284, %s286
      %p290 = scmp.eq.s32.totalorder %s56, 0
      %p291 = por %p289, %p290
      %p292 = scmp.ne.s32.totalorder %s284, %s286
      %p293 = scmp.eq.s32.totalorder %s61, 1
      %p294 = por %p292, %p293
      %p295 = scmp.ne.s32.totalorder %s286, %s287
      %p296 = scmp.eq.s32.totalorder %s61, 0
      %p297 = por %p295, %p296
      %p298 = scmp.ne.s32.totalorder %s286, %s287
      %p299 = scmp.eq.s32.totalorder %s62, 1
      %p300 = por %p298, %p299
      %p302 = scmp.ne.s32.totalorder %s287, %s301
      %p303 = scmp.eq.s32.totalorder %s62, 0
      %p304 = por %p302, %p303
      %s306 = sadd.s32 %s305, 1
      %p309 = scmp.eq.s32.totalorder %s56, 1
      %p310 = scmp.ne.s32.totalorder %s305, %s307
      %p311 = scmp.eq.s32.totalorder %s56, 0
      %p312 = por %p310, %p311
      %p313 = scmp.ne.s32.totalorder %s305, %s307
      %p314 = scmp.eq.s32.totalorder %s61, 1
      %p315 = por %p313, %p314
      %p316 = scmp.ne.s32.totalorder %s307, %s308
      %p317 = scmp.eq.s32.totalorder %s61, 0
      %p318 = por %p316, %p317
      %p319 = scmp.ne.s32.totalorder %s307, %s308
      %p320 = scmp.eq.s32.totalorder %s62, 1
      %p321 = por %p319, %p320
      %p323 = scmp.ne.s32.totalorder %s308, %s322
      %p324 = scmp.eq.s32.totalorder %s62, 0
      %p325 = por %p323, %p324
      %s327 = sadd.s32 %s326, 1
      %p330 = scmp.eq.s32.totalorder %s56, 1
      %p331 = scmp.ne.s32.totalorder %s326, %s328
      %p332 = scmp.eq.s32.totalorder %s56, 0
      %p333 = por %p331, %p332
      %p334 = scmp.ne.s32.totalorder %s326, %s328
      %p335 = scmp.eq.s32.totalorder %s61, 1
      %p336 = por %p334, %p335
      %p337 = scmp.ne.s32.totalorder %s328, %s329
      %p338 = scmp.eq.s32.totalorder %s61, 0
      %p339 = por %p337, %p338
      %p340 = scmp.ne.s32.totalorder %s328, %s329
      %p341 = scmp.eq.s32.totalorder %s62, 1
      %p342 = por %p340, %p341
      %p344 = scmp.ne.s32.totalorder %s329, %s343
      %p345 = scmp.eq.s32.totalorder %s62, 0
      %p346 = por %p344, %p345
      %s348 = sadd.s32 %s347, 1
      %p351 = scmp.eq.s32.totalorder %s56, 1
      %p352 = scmp.ne.s32.totalorder %s347, %s349
      %p353 = scmp.eq.s32.totalorder %s56, 0
      %p354 = por %p352, %p353
      %p355 = scmp.ne.s32.totalorder %s347, %s349
      %p356 = scmp.eq.s32.totalorder %s61, 1
      %p357 = por %p355, %p356
      %p358 = scmp.ne.s32.totalorder %s349, %s350
      %p359 = scmp.eq.s32.totalorder %s61, 0
      %p360 = por %p358, %p359
      %p361 = scmp.ne.s32.totalorder %s349, %s350
      %p362 = scmp.eq.s32.totalorder %s62, 1
      %p363 = por %p361, %p362
      %p365 = scmp.ne.s32.totalorder %s350, %s364
      %p366 = scmp.eq.s32.totalorder %s62, 0
      %p367 = por %p365, %p366
      %s369 = sadd.s32 %s368, 1
      %p372 = scmp.eq.s32.totalorder %s56, 1
      %p373 = scmp.ne.s32.totalorder %s368, %s370
      %p374 = scmp.eq.s32.totalorder %s56, 0
      %p375 = por %p373, %p374
      %p376 = scmp.ne.s32.totalorder %s368, %s370
      %p377 = scmp.eq.s32.totalorder %s61, 1
      %p378 = por %p376, %p377
      %p379 = scmp.ne.s32.totalorder %s370, %s371
      %p380 = scmp.eq.s32.totalorder %s61, 0
      %p381 = por %p379, %p380
      %p382 = scmp.ne.s32.totalorder %s370, %s371
      %p383 = scmp.eq.s32.totalorder %s62, 1
      %p384 = por %p382, %p383
      %p386 = scmp.ne.s32.totalorder %s371, %s385
      %p387 = scmp.eq.s32.totalorder %s62, 0
      %p388 = por %p386, %p387
      %s390 = sadd.s32 %s389, 1
      %p393 = scmp.eq.s32.totalorder %s56, 1
      %p394 = scmp.ne.s32.totalorder %s389, %s391
      %p395 = scmp.eq.s32.totalorder %s56, 0
      %p396 = por %p394, %p395
      %p397 = scmp.ne.s32.totalorder %s389, %s391
      %p398 = scmp.eq.s32.totalorder %s61, 1
      %p399 = por %p397, %p398
      %p400 = scmp.ne.s32.totalorder %s391, %s392
      %p401 = scmp.eq.s32.totalorder %s61, 0
      %p402 = por %p400, %p401
      %p403 = scmp.ne.s32.totalorder %s391, %s392
      %p404 = scmp.eq.s32.totalorder %s62, 1
      %p405 = por %p403, %p404
      %p407 = scmp.ne.s32.totalorder %s392, %s406
      %p408 = scmp.eq.s32.totalorder %s62, 0
      %p409 = por %p407, %p408
      %s411 = sadd.s32 %s410, 1
      %p414 = scmp.eq.s32.totalorder %s56, 1
      %p415 = scmp.ne.s32.totalorder %s410, %s412
      %p416 = scmp.eq.s32.totalorder %s56, 0
      %p417 = por %p415, %p416
      %p418 = scmp.ne.s32.totalorder %s410, %s412
      %p419 = scmp.eq.s32.totalorder %s61, 1
      %p420 = por %p418, %p419
      %p421 = scmp.ne.s32.totalorder %s412, %s413
      %p422 = scmp.eq.s32.totalorder %s61, 0
      %p423 = por %p421, %p422
      %p424 = scmp.ne.s32.totalorder %s412, %s413
      %p425 = scmp.eq.s32.totalorder %s62, 1
      %p426 = por %p424, %p425
      %p428 = scmp.ne.s32.totalorder %s413, %s427
      %p429 = scmp.eq.s32.totalorder %s62, 0
      %p430 = por %p428, %p429
      %s432 = sadd.s32 %s431, 1
      %p435 = scmp.eq.s32.totalorder %s56, 1
      %p436 = scmp.ne.s32.totalorder %s431, %s433
      %p437 = scmp.eq.s32.totalorder %s56, 0
      %p438 = por %p436, %p437
      %p439 = scmp.ne.s32.totalorder %s431, %s433
      %p440 = scmp.eq.s32.totalorder %s61, 1
      %p441 = por %p439, %p440
      %p442 = scmp.ne.s32.totalorder %s433, %s434
      %p443 = scmp.eq.s32.totalorder %s61, 0
      %p444 = por %p442, %p443
      %p445 = scmp.ne.s32.totalorder %s433, %s434
      %p446 = scmp.eq.s32.totalorder %s62, 1
      %p447 = por %p445, %p446
      %p449 = scmp.ne.s32.totalorder %s434, %s448
      %p450 = scmp.eq.s32.totalorder %s62, 0
      %p451 = por %p449, %p450
      %s453 = sadd.s32 %s452, 1
      %p456 = scmp.eq.s32.totalorder %s56, 1
      %p457 = scmp.ne.s32.totalorder %s452, %s454
      %p458 = scmp.eq.s32.totalorder %s56, 0
      %p459 = por %p457, %p458
      %p460 = scmp.ne.s32.totalorder %s452, %s454
      %p461 = scmp.eq.s32.totalorder %s61, 1
      %p462 = por %p460, %p461
      %p463 = scmp.ne.s32.totalorder %s454, %s455
      %p464 = scmp.eq.s32.totalorder %s61, 0
      %p465 = por %p463, %p464
      %p466 = scmp.ne.s32.totalorder %s454, %s455
      %p467 = scmp.eq.s32.totalorder %s62, 1
      %p468 = por %p466, %p467
      %p470 = scmp.ne.s32.totalorder %s455, %s469
      %p471 = scmp.eq.s32.totalorder %s62, 0
      %p472 = por %p470, %p471
      %s474 = sadd.s32 %s473, 1
      %p477 = scmp.eq.s32.totalorder %s56, 1
      %p478 = scmp.ne.s32.totalorder %s473, %s475
      %p479 = scmp.eq.s32.totalorder %s56, 0
      %p480 = por %p478, %p479
      %p481 = scmp.ne.s32.totalorder %s473, %s475
      %p482 = scmp.eq.s32.totalorder %s61, 1
      %p483 = por %p481, %p482
      %p484 = scmp.ne.s32.totalorder %s475, %s476
      %p485 = scmp.eq.s32.totalorder %s61, 0
      %p486 = por %p484, %p485
      %p487 = scmp.ne.s32.totalorder %s475, %s476
      %p488 = scmp.eq.s32.totalorder %s62, 1
      %p489 = por %p487, %p488
      %p491 = scmp.ne.s32.totalorder %s476, %s490
      %p492 = scmp.eq.s32.totalorder %s62, 0
      %p493 = por %p491, %p492
      %s495 = sadd.s32 %s494, 1
      %p498 = scmp.eq.s32.totalorder %s56, 1
      %p499 = scmp.ne.s32.totalorder %s494, %s496
      %p500 = scmp.eq.s32.totalorder %s56, 0
      %p501 = por %p499, %p500
      %p502 = scmp.ne.s32.totalorder %s494, %s496
      %p503 = scmp.eq.s32.totalorder %s61, 1
      %p504 = por %p502, %p503
      %p505 = scmp.ne.s32.totalorder %s496, %s497
      %p506 = scmp.eq.s32.totalorder %s61, 0
      %p507 = por %p505, %p506
      %p508 = scmp.ne.s32.totalorder %s496, %s497
      %p509 = scmp.eq.s32.totalorder %s62, 1
      %p510 = por %p508, %p509
      %p512 = scmp.ne.s32.totalorder %s497, %s511
      %p513 = scmp.eq.s32.totalorder %s62, 0
      %p514 = por %p512, %p513
      %s516 = sadd.s32 %s515, 1
      %p519 = scmp.eq.s32.totalorder %s56, 1
      %p520 = scmp.ne.s32.totalorder %s515, %s517
      %p521 = scmp.eq.s32.totalorder %s56, 0
      %p522 = por %p520, %p521
      %p523 = scmp.ne.s32.totalorder %s515, %s517
      %p524 = scmp.eq.s32.totalorder %s61, 1
      %p525 = por %p523, %p524
      %p526 = scmp.ne.s32.totalorder %s517, %s518
      %p527 = scmp.eq.s32.totalorder %s61, 0
      %p528 = por %p526, %p527
      %p529 = scmp.ne.s32.totalorder %s517, %s518
      %p530 = scmp.eq.s32.totalorder %s62, 1
      %p531 = por %p529, %p530
      %p533 = scmp.ne.s32.totalorder %s518, %s532
      %p534 = scmp.eq.s32.totalorder %s62, 0
      %p535 = por %p533, %p534
      %s536 = ssub.s32 %s56, %s63
      %p537 = scmp.eq.s32.totalorder %s536, 0
      %s539 = sadd.s32 %s538, 1
      %s540 = scalar_select %p537, %s538, %s539
      %p543 = pneg %p537
      %p544 = scmp.eq.s32.totalorder %s56, 1
      %p545 = por %p543, %p544
      %p546 = scmp.ne.s32.totalorder %s538, %s541
      %p547 = scmp.eq.s32.totalorder %s56, 0
      %p548 = por %p546, %p547
      %p549 = scmp.ne.s32.totalorder %s538, %s541
      %p550 = scmp.eq.s32.totalorder %s61, 1
      %p551 = por %p549, %p550
      %p552 = scmp.ne.s32.totalorder %s541, %s542
      %p553 = scmp.eq.s32.totalorder %s61, 0
      %p554 = por %p552, %p553
      %p555 = scmp.ne.s32.totalorder %s541, %s542
      %p556 = scmp.eq.s32.totalorder %s62, 1
      %p557 = por %p555, %p556
      %p559 = scmp.ne.s32.totalorder %s542, %s558
      %p560 = scmp.eq.s32.totalorder %s62, 0
      %p561 = por %p559, %p560
      %s562 = ssub.s32 %s56, %s63
      %p563 = scmp.eq.s32.totalorder %s562, 0
      %s565 = sadd.s32 %s564, 1
      %s566 = scalar_select %p563, %s564, %s565
      %p569 = pneg %p563
      %p570 = scmp.eq.s32.totalorder %s56, 1
      %p571 = por %p569, %p570
      %p572 = scmp.ne.s32.totalorder %s564, %s567
      %p573 = scmp.eq.s32.totalorder %s56, 0
      %p574 = por %p572, %p573
      %p575 = scmp.ne.s32.totalorder %s564, %s567
      %p576 = scmp.eq.s32.totalorder %s61, 1
      %p577 = por %p575, %p576
      %p578 = scmp.ne.s32.totalorder %s567, %s568
      %p579 = scmp.eq.s32.totalorder %s61, 0
      %p580 = por %p578, %p579
      %p581 = scmp.ne.s32.totalorder %s567, %s568
      %p582 = scmp.eq.s32.totalorder %s62, 1
      %p583 = por %p581, %p582
      %p585 = scmp.ne.s32.totalorder %s568, %s584
      %p586 = scmp.eq.s32.totalorder %s62, 0
      %p587 = por %p585, %p586
      %s588 = ssub.s32 %s56, %s63
      %p589 = scmp.eq.s32.totalorder %s588, 0
      %s591 = sadd.s32 %s590, 1
      %s592 = scalar_select %p589, %s590, %s591
      %p595 = pneg %p589
      %p596 = scmp.eq.s32.totalorder %s56, 1
      %p597 = por %p595, %p596
      %p598 = scmp.ne.s32.totalorder %s590, %s593
      %p599 = scmp.eq.s32.totalorder %s56, 0
      %p600 = por %p598, %p599
      %p601 = scmp.ne.s32.totalorder %s590, %s593
      %p602 = scmp.eq.s32.totalorder %s61, 1
      %p603 = por %p601, %p602
      %p604 = scmp.ne.s32.totalorder %s593, %s594
      %p605 = scmp.eq.s32.totalorder %s61, 0
      %p606 = por %p604, %p605
      %p607 = scmp.ne.s32.totalorder %s593, %s594
      %p608 = scmp.eq.s32.totalorder %s62, 1
      %p609 = por %p607, %p608
      %p611 = scmp.ne.s32.totalorder %s594, %s610
      %p612 = scmp.eq.s32.totalorder %s62, 0
      %p613 = por %p611, %p612
      %p614 = scmp.le.s32.totalorder 1, %s56
      %p615 = scmp.lt.s32.totalorder %s56, 3
      %p616 = pnand %p614, %p615
      %p617 = pneg %p616
      // Predicated region
      $region9: #{tpu_custom_call.1} parent=5 // pred_check
        _
      $region10: #{tpu_custom_call.1} parent=5 // pred_check_branch
        %619 = sbr.rel (%p616) target = $region12
      $region11: #{tpu_custom_call.1} parent=5 // pred_region
        %s620 = ssub.s32 %s56, 1
        // Predicated region
        $region13: #{tpu_custom_call.1} parent=11 // pred_check
          %p621 = pneg %p129
        $region14: #{tpu_custom_call.1} parent=11 // pred_check_branch
          %623 = sbr.rel (%p621) target = $region16
        $region15: #{tpu_custom_call.1} parent=11 // pred_region
          %s625 = ssub.s32 256, 256
          %626 = vsyncadd [#allocation8], %s625
          %s627 = sshll.u32 [#allocation9], 4
          %s628 = int_to_ptr.vmem [resolvable:$true] %s627
          %633 = dma.hbm_to_vmem [thread:$0]  %s2, 256, %s628, [#allocation8], 64, 64, 4
        $region16: #{tpu_custom_call.1} parent=11 // pred_fallthru
          _
        // Predicated region
        $region17: #{tpu_custom_call.1} parent=11 // pred_check
          %p634 = pneg %p150
        $region18: #{tpu_custom_call.1} parent=11 // pred_check_branch
          %636 = sbr.rel (%p634) target = $region20
        $region19: #{tpu_custom_call.1} parent=11 // pred_region
          %s638 = ssub.s32 16, 16
          %639 = vsyncadd [#allocation11], %s638
          %s641 = sshll.u32 [#allocation10], 4
          %s642 = int_to_ptr.vmem [resolvable:$true] %s641
          %644 = dma.hbm_to_vmem [thread:$0]  %s3, 16, %s642, [#allocation11]
        $region20: #{tpu_custom_call.1} parent=11 // pred_fallthru
          _
        // Predicated region
        $region21: #{tpu_custom_call.1} parent=11 // pred_check
          %p645 = pneg %p171
        $region22: #{tpu_custom_call.1} parent=11 // pred_check_branch
          %647 = sbr.rel (%p645) target = $region24
        $region23: #{tpu_custom_call.1} parent=11 // pred_region
          %s649 = ssub.s32 16, 16
          %650 = vsyncadd [#allocation11], %s649
          %s652 = sshll.u32 [#allocation12], 4
          %s653 = int_to_ptr.vmem [resolvable:$true] %s652
          %655 = dma.hbm_to_vmem [thread:$0]  %s4, 16, %s653, [#allocation11]
        $region24: #{tpu_custom_call.1} parent=11 // pred_fallthru
          _
        // Predicated region
        $region25: #{tpu_custom_call.1} parent=11 // pred_check
          %p656 = pneg %p192
        $region26: #{tpu_custom_call.1} parent=11 // pred_check_branch
          %658 = sbr.rel (%p656) target = $region28
        $region27: #{tpu_custom_call.1} parent=11 // pred_region
          %s660 = ssub.s32 16, 16
          %661 = vsyncadd [#allocation14], %s660
          %s663 = sshll.u32 [#allocation13], 4
          %s664 = int_to_ptr.vmem [resolvable:$true] %s663
          %666 = dma.hbm_to_vmem [thread:$0]  %s5, 16, %s664, [#allocation14]
        $region28: #{tpu_custom_call.1} parent=11 // pred_fallthru
          _
        // Predicated region
        $region29: #{tpu_custom_call.1} parent=11 // pred_check
          %p667 = pneg %p213
        $region30: #{tpu_custom_call.1} parent=11 // pred_check_branch
          %669 = sbr.rel (%p667) target = $region32
        $region31: #{tpu_custom_call.1} parent=11 // pred_region
          %s671 = ssub.s32 256, 256
          %672 = vsyncadd [#allocation14], %s671
          %s673 = sshll.u32 [#allocation15], 4
          %s674 = int_to_ptr.vmem [resolvable:$true] %s673
          %679 = dma.hbm_to_vmem [thread:$0]  %s6, 256, %s674, [#allocation14], 64, 64, 4
        $region32: #{tpu_custom_call.1} parent=11 // pred_fallthru
          _
        // Predicated region
        $region33: #{tpu_custom_call.1} parent=11 // pred_check
          %p680 = pneg %p234
        $region34: #{tpu_custom_call.1} parent=11 // pred_check_branch
          %682 = sbr.rel (%p680) target = $region36
        $region35: #{tpu_custom_call.1} parent=11 // pred_region
          %s684 = ssub.s32 16, 16
          %685 = vsyncadd [#allocation17], %s684
          %s687 = sshll.u32 [#allocation16], 4
          %s688 = int_to_ptr.vmem [resolvable:$true] %s687
          %690 = dma.hbm_to_vmem [thread:$0]  %s7, 16, %s688, [#allocation17]
        $region36: #{tpu_custom_call.1} parent=11 // pred_fallthru
          _
        // Predicated region
        $region37: #{tpu_custom_call.1} parent=11 // pred_check
          %p691 = pneg %p255
        $region38: #{tpu_custom_call.1} parent=11 // pred_check_branch
          %693 = sbr.rel (%p691) target = $region40
        $region39: #{tpu_custom_call.1} parent=11 // pred_region
          %s695 = ssub.s32 16, 16
          %696 = vsyncadd [#allocation17], %s695
          %s698 = sshll.u32 [#allocation18], 4
          %s699 = int_to_ptr.vmem [resolvable:$true] %s698
          %701 = dma.hbm_to_vmem [thread:$0]  %s8, 16, %s699, [#allocation17]
        $region40: #{tpu_custom_call.1} parent=11 // pred_fallthru
          _
        // Predicated region
        $region41: #{tpu_custom_call.1} parent=11 // pred_check
          %p702 = pneg %p276
        $region42: #{tpu_custom_call.1} parent=11 // pred_check_branch
          %704 = sbr.rel (%p702) target = $region44
        $region43: #{tpu_custom_call.1} parent=11 // pred_region
          %s706 = ssub.s32 16, 16
          %707 = vsyncadd [#allocation20], %s706
          %s709 = sshll.u32 [#allocation19], 4
          %s710 = int_to_ptr.vmem [resolvable:$true] %s709
          %712 = dma.hbm_to_vmem [thread:$0]  %s9, 16, %s710, [#allocation20]
        $region44: #{tpu_custom_call.1} parent=11 // pred_fallthru
          _
        // Predicated region
        $region45: #{tpu_custom_call.1} parent=11 // pred_check
          %p713 = pneg %p297
        $region46: #{tpu_custom_call.1} parent=11 // pred_check_branch
          %715 = sbr.rel (%p713) target = $region48
        $region47: #{tpu_custom_call.1} parent=11 // pred_region
          %s717 = ssub.s32 128, 128
          %718 = vsyncadd [#allocation20], %s717
          %s719 = sshll.u32 [#allocation21], 4
          %s720 = int_to_ptr.vmem [resolvable:$true] %s719
          %725 = dma.hbm_to_vmem [thread:$0]  %s10, 128, %s720, [#allocation20], 64, 64, 4
        $region48: #{tpu_custom_call.1} parent=11 // pred_fallthru
          _
        // Predicated region
        $region49: #{tpu_custom_call.1} parent=11 // pred_check
          %p726 = pneg %p318
        $region50: #{tpu_custom_call.1} parent=11 // pred_check_branch
          %728 = sbr.rel (%p726) target = $region52
        $region51: #{tpu_custom_call.1} parent=11 // pred_region
          %s730 = ssub.s32 16, 16
          %731 = vsyncadd [#allocation23], %s730
          %s733 = sshll.u32 [#allocation22], 4
          %s734 = int_to_ptr.vmem [resolvable:$true] %s733
          %736 = dma.hbm_to_vmem [thread:$0]  %s11, 16, %s734, [#allocation23]
        $region52: #{tpu_custom_call.1} parent=11 // pred_fallthru
          _
        // Predicated region
        $region53: #{tpu_custom_call.1} parent=11 // pred_check
          %p737 = pneg %p339
        $region54: #{tpu_custom_call.1} parent=11 // pred_check_branch
          %739 = sbr.rel (%p737) target = $region56
        $region55: #{tpu_custom_call.1} parent=11 // pred_region
          %s741 = ssub.s32 16, 16
          %742 = vsyncadd [#allocation23], %s741
          %s744 = sshll.u32 [#allocation24], 4
          %s745 = int_to_ptr.vmem [resolvable:$true] %s744
          %747 = dma.hbm_to_vmem [thread:$0]  %s12, 16, %s745, [#allocation23]
        $region56: #{tpu_custom_call.1} parent=11 // pred_fallthru
          _
        // Predicated region
        $region57: #{tpu_custom_call.1} parent=11 // pred_check
          %p748 = pneg %p360
        $region58: #{tpu_custom_call.1} parent=11 // pred_check_branch
          %750 = sbr.rel (%p748) target = $region60
        $region59: #{tpu_custom_call.1} parent=11 // pred_region
          %s752 = ssub.s32 16, 16
          %753 = vsyncadd [#allocation26], %s752
          %s755 = sshll.u32 [#allocation25], 4
          %s756 = int_to_ptr.vmem [resolvable:$true] %s755
          %758 = dma.hbm_to_vmem [thread:$0]  %s13, 16, %s756, [#allocation26]
        $region60: #{tpu_custom_call.1} parent=11 // pred_fallthru
          _
        // Predicated region
        $region61: #{tpu_custom_call.1} parent=11 // pred_check
          %p759 = pneg %p381
        $region62: #{tpu_custom_call.1} parent=11 // pred_check_branch
          %761 = sbr.rel (%p759) target = $region64
        $region63: #{tpu_custom_call.1} parent=11 // pred_region
          %s763 = ssub.s32 128, 128
          %764 = vsyncadd [#allocation26], %s763
          %s765 = sshll.u32 [#allocation27], 4
          %s766 = int_to_ptr.vmem [resolvable:$true] %s765
          %771 = dma.hbm_to_vmem [thread:$0]  %s14, 128, %s766, [#allocation26], 64, 64, 4
        $region64: #{tpu_custom_call.1} parent=11 // pred_fallthru
          _
        // Predicated region
        $region65: #{tpu_custom_call.1} parent=11 // pred_check
          %p772 = pneg %p402
        $region66: #{tpu_custom_call.1} parent=11 // pred_check_branch
          %774 = sbr.rel (%p772) target = $region68
        $region67: #{tpu_custom_call.1} parent=11 // pred_region
          %s776 = ssub.s32 16, 16
          %777 = vsyncadd [#allocation29], %s776
          %s779 = sshll.u32 [#allocation28], 4
          %s780 = int_to_ptr.vmem [resolvable:$true] %s779
          %782 = dma.hbm_to_vmem [thread:$0]  %s15, 16, %s780, [#allocation29]
        $region68: #{tpu_custom_call.1} parent=11 // pred_fallthru
          _
        // Predicated region
        $region69: #{tpu_custom_call.1} parent=11 // pred_check
          %p783 = pneg %p423
        $region70: #{tpu_custom_call.1} parent=11 // pred_check_branch
          %785 = sbr.rel (%p783) target = $region72
        $region71: #{tpu_custom_call.1} parent=11 // pred_region
          %s787 = ssub.s32 128, 128
          %788 = vsyncadd [#allocation29], %s787
          %s789 = sshll.u32 [#allocation30], 4
          %s790 = int_to_ptr.vmem [resolvable:$true] %s789
          %795 = dma.hbm_to_vmem [thread:$0]  %s16, 128, %s790, [#allocation29], 64, 64, 4
        $region72: #{tpu_custom_call.1} parent=11 // pred_fallthru
          _
        // Predicated region
        $region73: #{tpu_custom_call.1} parent=11 // pred_check
          %p796 = pneg %p444
        $region74: #{tpu_custom_call.1} parent=11 // pred_check_branch
          %798 = sbr.rel (%p796) target = $region76
        $region75: #{tpu_custom_call.1} parent=11 // pred_region
          %s800 = ssub.s32 16, 16
          %801 = vsyncadd [#allocation32], %s800
          %s803 = sshll.u32 [#allocation31], 4
          %s804 = int_to_ptr.vmem [resolvable:$true] %s803
          %806 = dma.hbm_to_vmem [thread:$0]  %s17, 16, %s804, [#allocation32]
        $region76: #{tpu_custom_call.1} parent=11 // pred_fallthru
          _
        // Predicated region
        $region77: #{tpu_custom_call.1} parent=11 // pred_check
          %p807 = pneg %p465
        $region78: #{tpu_custom_call.1} parent=11 // pred_check_branch
          %809 = sbr.rel (%p807) target = $region80
        $region79: #{tpu_custom_call.1} parent=11 // pred_region
          %s811 = ssub.s32 128, 128
          %812 = vsyncadd [#allocation32], %s811
          %s814 = sshll.u32 [#allocation33], 4
          %s815 = int_to_ptr.vmem [resolvable:$true] %s814
          %817 = dma.hbm_to_vmem [thread:$0]  %s18, 128, %s815, [#allocation32]
        $region80: #{tpu_custom_call.1} parent=11 // pred_fallthru
          _
        // Predicated region
        $region81: #{tpu_custom_call.1} parent=11 // pred_check
          %p818 = pneg %p486
        $region82: #{tpu_custom_call.1} parent=11 // pred_check_branch
          %820 = sbr.rel (%p818) target = $region84
        $region83: #{tpu_custom_call.1} parent=11 // pred_region
          %s822 = ssub.s32 128, 128
          %823 = vsyncadd [#allocation35], %s822
          %s825 = sshll.u32 [#allocation34], 4
          %s826 = int_to_ptr.vmem [resolvable:$true] %s825
          %828 = dma.hbm_to_vmem [thread:$0]  %s19, 128, %s826, [#allocation35]
        $region84: #{tpu_custom_call.1} parent=11 // pred_fallthru
          _
        // Predicated region
        $region85: #{tpu_custom_call.1} parent=11 // pred_check
          %p829 = pneg %p507
        $region86: #{tpu_custom_call.1} parent=11 // pred_check_branch
          %831 = sbr.rel (%p829) target = $region88
        $region87: #{tpu_custom_call.1} parent=11 // pred_region
          _
        $region88: #{tpu_custom_call.1} parent=11 // pred_fallthru
          _
        // Predicated region
        $region89: #{tpu_custom_call.1} parent=11 // pred_check
          %p832 = pneg %p528
        $region90: #{tpu_custom_call.1} parent=11 // pred_check_branch
          %834 = sbr.rel (%p832) target = $region92
        $region91: #{tpu_custom_call.1} parent=11 // pred_region
          _
        $region92: #{tpu_custom_call.1} parent=11 // pred_fallthru
          _
      $region12: #{tpu_custom_call.1} parent=5 // pred_fallthru
        _
      %p835 = scmp.lt.s32.totalorder %s56, 2
      // Predicated region
      $region93: #{tpu_custom_call.1} parent=5 // pred_check
        %p836 = pneg %p835
      $region94: #{tpu_custom_call.1} parent=5 // pred_check_branch
        %838 = sbr.rel (%p836) target = $region96
      $region95: #{tpu_custom_call.1} parent=5 // pred_region
        // Predicated region
        $region97: #{tpu_custom_call.1} parent=95 // pred_check
          %p839 = pneg %p76
        $region98: #{tpu_custom_call.1} parent=95 // pred_check_branch
          %841 = sbr.rel (%p839) target = $region100
        $region99: #{tpu_custom_call.1} parent=95 // pred_region
          %s842 = sand.u32 %s66, 1
          %s843 = scalar_lea.sflag [#allocation5], %s842
          %s844 = sand.u32 %s66, 1
          %s845 = smul.addr %s844, 16
          %s846 = scalar_lea.vmem [#allocation4], %s845
          %s848 = ssub.s32 256, 256
          %849 = vsyncadd %s843, %s848
          %s850 = smul.addr %s56, 128
          %s851 = scalar_lea.hbm %s0, %s850
          %s852 = sshll.u32 %s846, 4
          %s853 = int_to_ptr.vmem [resolvable:$true] %s852
          %858 = dma.hbm_to_vmem [thread:$0]  %s851, 256, %s853, %s843, 256, 128, 8
        $region100: #{tpu_custom_call.1} parent=95 // pred_fallthru
          _
        // Predicated region
        $region101: #{tpu_custom_call.1} parent=95 // pred_check
          %p859 = pneg %p102
        $region102: #{tpu_custom_call.1} parent=95 // pred_check_branch
          %861 = sbr.rel (%p859) target = $region104
        $region103: #{tpu_custom_call.1} parent=95 // pred_region
          %s862 = sand.u32 %s56, 1
          %s863 = scalar_lea.sflag [#allocation8], %s862
          %s864 = sand.u32 %s92, 1
          %s865 = smul.addr %s864, 16
          %s866 = scalar_lea.vmem [#allocation7], %s865
          %s868 = ssub.s32 256, 256
          %869 = vsyncadd %s863, %s868
          %s870 = smul.addr %s56, 128
          %s871 = scalar_lea.hbm %s1, %s870
          %s872 = sshll.u32 %s866, 4
          %s873 = int_to_ptr.vmem [resolvable:$true] %s872
          %878 = dma.hbm_to_vmem [thread:$0]  %s871, 256, %s873, %s863, 256, 128, 8
        $region104: #{tpu_custom_call.1} parent=95 // pred_fallthru
          _
      $region96: #{tpu_custom_call.1} parent=5 // pred_fallthru
        _
      %p879 = scmp.le.s32.totalorder 1, %s56
      %p880 = scmp.lt.s32.totalorder %s56, 3
      %p881 = pnand %p879, %p880
      %p882 = pneg %p881
      // Predicated region
      $region105: #{tpu_custom_call.1} parent=5 // pred_check
        _
      $region106: #{tpu_custom_call.1} parent=5 // pred_check_branch
        %884 = sbr.rel (%p881) target = $region108
      $region107: #{tpu_custom_call.1} parent=5 // pred_region
        %s885 = ssub.s32 %s56, 1
        %s886 = sand.u32 %s69, 1
        %s887 = scalar_lea.sflag [#allocation5], %s886
        %s888 = sand.u32 %s69, 1
        %s889 = smul.addr %s888, 16
        %s890 = scalar_lea.vmem [#allocation4], %s889
        // Predicated region
        $region109: #{tpu_custom_call.1} parent=107 // pred_check
          %p891 = pneg %p82
        $region110: #{tpu_custom_call.1} parent=107 // pred_check_branch
          %893 = sbr.rel (%p891) target = $region112
        $region111: #{tpu_custom_call.1} parent=107 // pred_region
          %894 = dma.done %s887, 256
        $region112: #{tpu_custom_call.1} parent=107 // pred_fallthru
          _
        %s895 = sand.u32 %s61, 1
        %s896 = scalar_lea.sflag [#allocation8], %s895
        %s897 = sand.u32 %s95, 1
        %s898 = smul.addr %s897, 16
        %s899 = scalar_lea.vmem [#allocation7], %s898
        // Predicated region
        $region113: #{tpu_custom_call.1} parent=107 // pred_check
          %p900 = pneg %p108
        $region114: #{tpu_custom_call.1} parent=107 // pred_check_branch
          %902 = sbr.rel (%p900) target = $region116
        $region115: #{tpu_custom_call.1} parent=107 // pred_region
          %903 = dma.done %s896, 256
        $region116: #{tpu_custom_call.1} parent=107 // pred_fallthru
          _
        // Predicated region
        $region117: #{tpu_custom_call.1} parent=107 // pred_check
          %p904 = pneg %p129
        $region118: #{tpu_custom_call.1} parent=107 // pred_check_branch
          %906 = sbr.rel (%p904) target = $region120
        $region119: #{tpu_custom_call.1} parent=107 // pred_region
          %907 = dma.done [#allocation8], 256
        $region120: #{tpu_custom_call.1} parent=107 // pred_fallthru
          _
        // Predicated region
        $region121: #{tpu_custom_call.1} parent=107 // pred_check
          %p908 = pneg %p150
        $region122: #{tpu_custom_call.1} parent=107 // pred_check_branch
          %910 = sbr.rel (%p908) target = $region124
        $region123: #{tpu_custom_call.1} parent=107 // pred_region
          %911 = dma.done [#allocation11], 16
        $region124: #{tpu_custom_call.1} parent=107 // pred_fallthru
          _
        // Predicated region
        $region125: #{tpu_custom_call.1} parent=107 // pred_check
          %p912 = pneg %p171
        $region126: #{tpu_custom_call.1} parent=107 // pred_check_branch
          %914 = sbr.rel (%p912) target = $region128
        $region127: #{tpu_custom_call.1} parent=107 // pred_region
          %915 = dma.done [#allocation11], 16
        $region128: #{tpu_custom_call.1} parent=107 // pred_fallthru
          _
        // Predicated region
        $region129: #{tpu_custom_call.1} parent=107 // pred_check
          %p916 = pneg %p192
        $region130: #{tpu_custom_call.1} parent=107 // pred_check_branch
          %918 = sbr.rel (%p916) target = $region132
        $region131: #{tpu_custom_call.1} parent=107 // pred_region
          %919 = dma.done [#allocation14], 16
        $region132: #{tpu_custom_call.1} parent=107 // pred_fallthru
          _
        // Predicated region
        $region133: #{tpu_custom_call.1} parent=107 // pred_check
          %p920 = pneg %p213
        $region134: #{tpu_custom_call.1} parent=107 // pred_check_branch
          %922 = sbr.rel (%p920) target = $region136
        $region135: #{tpu_custom_call.1} parent=107 // pred_region
          %923 = dma.done [#allocation14], 256
        $region136: #{tpu_custom_call.1} parent=107 // pred_fallthru
          _
        // Predicated region
        $region137: #{tpu_custom_call.1} parent=107 // pred_check
          %p924 = pneg %p234
        $region138: #{tpu_custom_call.1} parent=107 // pred_check_branch
          %926 = sbr.rel (%p924) target = $region140
        $region139: #{tpu_custom_call.1} parent=107 // pred_region
          %927 = dma.done [#allocation17], 16
        $region140: #{tpu_custom_call.1} parent=107 // pred_fallthru
          _
        // Predicated region
        $region141: #{tpu_custom_call.1} parent=107 // pred_check
          %p928 = pneg %p255
        $region142: #{tpu_custom_call.1} parent=107 // pred_check_branch
          %930 = sbr.rel (%p928) target = $region144
        $region143: #{tpu_custom_call.1} parent=107 // pred_region
          %931 = dma.done [#allocation17], 16
        $region144: #{tpu_custom_call.1} parent=107 // pred_fallthru
          _
        // Predicated region
        $region145: #{tpu_custom_call.1} parent=107 // pred_check
          %p932 = pneg %p276
        $region146: #{tpu_custom_call.1} parent=107 // pred_check_branch
          %934 = sbr.rel (%p932) target = $region148
        $region147: #{tpu_custom_call.1} parent=107 // pred_region
          %935 = dma.done [#allocation20], 16
        $region148: #{tpu_custom_call.1} parent=107 // pred_fallthru
          _
        // Predicated region
        $region149: #{tpu_custom_call.1} parent=107 // pred_check
          %p936 = pneg %p297
        $region150: #{tpu_custom_call.1} parent=107 // pred_check_branch
          %938 = sbr.rel (%p936) target = $region152
        $region151: #{tpu_custom_call.1} parent=107 // pred_region
          %939 = dma.done [#allocation20], 128
        $region152: #{tpu_custom_call.1} parent=107 // pred_fallthru
          _
        // Predicated region
        $region153: #{tpu_custom_call.1} parent=107 // pred_check
          %p940 = pneg %p318
        $region154: #{tpu_custom_call.1} parent=107 // pred_check_branch
          %942 = sbr.rel (%p940) target = $region156
        $region155: #{tpu_custom_call.1} parent=107 // pred_region
          %943 = dma.done [#allocation23], 16
        $region156: #{tpu_custom_call.1} parent=107 // pred_fallthru
          _
        // Predicated region
        $region157: #{tpu_custom_call.1} parent=107 // pred_check
          %p944 = pneg %p339
        $region158: #{tpu_custom_call.1} parent=107 // pred_check_branch
          %946 = sbr.rel (%p944) target = $region160
        $region159: #{tpu_custom_call.1} parent=107 // pred_region
          %947 = dma.done [#allocation23], 16
        $region160: #{tpu_custom_call.1} parent=107 // pred_fallthru
          _
        // Predicated region
        $region161: #{tpu_custom_call.1} parent=107 // pred_check
          %p948 = pneg %p360
        $region162: #{tpu_custom_call.1} parent=107 // pred_check_branch
          %950 = sbr.rel (%p948) target = $region164
        $region163: #{tpu_custom_call.1} parent=107 // pred_region
          %951 = dma.done [#allocation26], 16
        $region164: #{tpu_custom_call.1} parent=107 // pred_fallthru
          _
        // Predicated region
        $region165: #{tpu_custom_call.1} parent=107 // pred_check
          %p952 = pneg %p381
        $region166: #{tpu_custom_call.1} parent=107 // pred_check_branch
          %954 = sbr.rel (%p952) target = $region168
        $region167: #{tpu_custom_call.1} parent=107 // pred_region
          %955 = dma.done [#allocation26], 128
        $region168: #{tpu_custom_call.1} parent=107 // pred_fallthru
          _
        // Predicated region
        $region169: #{tpu_custom_call.1} parent=107 // pred_check
          %p956 = pneg %p402
        $region170: #{tpu_custom_call.1} parent=107 // pred_check_branch
          %958 = sbr.rel (%p956) target = $region172
        $region171: #{tpu_custom_call.1} parent=107 // pred_region
          %959 = dma.done [#allocation29], 16
        $region172: #{tpu_custom_call.1} parent=107 // pred_fallthru
          _
        // Predicated region
        $region173: #{tpu_custom_call.1} parent=107 // pred_check
          %p960 = pneg %p423
        $region174: #{tpu_custom_call.1} parent=107 // pred_check_branch
          %962 = sbr.rel (%p960) target = $region176
        $region175: #{tpu_custom_call.1} parent=107 // pred_region
          %963 = dma.done [#allocation29], 128
        $region176: #{tpu_custom_call.1} parent=107 // pred_fallthru
          _
        // Predicated region
        $region177: #{tpu_custom_call.1} parent=107 // pred_check
          %p964 = pneg %p444
        $region178: #{tpu_custom_call.1} parent=107 // pred_check_branch
          %966 = sbr.rel (%p964) target = $region180
        $region179: #{tpu_custom_call.1} parent=107 // pred_region
          %967 = dma.done [#allocation32], 16
        $region180: #{tpu_custom_call.1} parent=107 // pred_fallthru
          _
        // Predicated region
        $region181: #{tpu_custom_call.1} parent=107 // pred_check
          %p968 = pneg %p465
        $region182: #{tpu_custom_call.1} parent=107 // pred_check_branch
          %970 = sbr.rel (%p968) target = $region184
        $region183: #{tpu_custom_call.1} parent=107 // pred_region
          %971 = dma.done [#allocation32], 128
        $region184: #{tpu_custom_call.1} parent=107 // pred_fallthru
          _
        // Predicated region
        $region185: #{tpu_custom_call.1} parent=107 // pred_check
          %p972 = pneg %p486
        $region186: #{tpu_custom_call.1} parent=107 // pred_check_branch
          %974 = sbr.rel (%p972) target = $region188
        $region187: #{tpu_custom_call.1} parent=107 // pred_region
          %975 = dma.done [#allocation35], 128
        $region188: #{tpu_custom_call.1} parent=107 // pred_fallthru
          _
        %s976 = sand.u32 %s69, 1
        %s977 = scalar_lea.sflag [#allocation5], %s976
        %s978 = sand.u32 %s69, 1
        %s979 = smul.addr %s978, 16
        %s980 = scalar_lea.vmem [#allocation4], %s979
        %p981 = pneg %p82
        %p982 = pneg %p79
        %s983 = sand.u32 %s61, 1
        %s984 = scalar_lea.sflag [#allocation8], %s983
        %s985 = sand.u32 %s95, 1
        %s986 = smul.addr %s985, 16
        %s987 = scalar_lea.vmem [#allocation7], %s986
        %p988 = pneg %p108
        %p989 = pneg %p105
        %p990 = pneg %p129
        %p991 = pneg %p126
        %p992 = pneg %p150
        %p993 = pneg %p147
        %p994 = pneg %p171
        %p995 = pneg %p168
        %p996 = pneg %p192
        %p997 = pneg %p189
        %p998 = pneg %p213
        %p999 = pneg %p210
        %p1000 = pneg %p234
        %p1001 = pneg %p231
        %p1002 = pneg %p255
        %p1003 = pneg %p252
        %p1004 = pneg %p276
        %p1005 = pneg %p273
        %p1006 = pneg %p297
        %p1007 = pneg %p294
        %p1008 = pneg %p318
        %p1009 = pneg %p315
        %p1010 = pneg %p339
        %p1011 = pneg %p336
        %p1012 = pneg %p360
        %p1013 = pneg %p357
        %p1014 = pneg %p381
        %p1015 = pneg %p378
        %p1016 = pneg %p402
        %p1017 = pneg %p399
        %p1018 = pneg %p423
        %p1019 = pneg %p420
        %p1020 = pneg %p444
        %p1021 = pneg %p441
        %p1022 = pneg %p465
        %p1023 = pneg %p462
        %p1024 = pneg %p486
        %p1025 = pneg %p483
        %p1026 = pneg %p507
        %p1027 = pneg %p504
        %p1028 = pneg %p528
        %p1029 = pneg %p525
        %p1030 = pneg %p554
        %p1031 = pneg %p551
        %s1032 = sand.u32 %s541, 1
        %s1033 = scalar_lea.sflag [#allocation6], %s1032
        %s1034 = sand.u32 %s541, 1
        %s1035 = scalar_lea.vmem [#allocation36], %s1034
        %p1036 = pneg %p580
        %p1037 = pneg %p577
        %s1038 = sand.u32 %s61, 1
        %s1039 = scalar_lea.sflag [#allocation38], %s1038
        %s1040 = sand.u32 %s567, 1
        %s1041 = scalar_lea.vmem [#allocation37], %s1040
        %p1042 = pneg %p606
        %p1043 = pneg %p603
        %s1044 = sand.u32 %s61, 1
        %s1045 = scalar_lea.sflag [#allocation38], %s1044
        %s1046 = sand.u32 %s593, 1
        %s1047 = scalar_lea.vmem [#allocation39], %s1046
        %v1049 = vld [vmem:[%s890] sm:$0xff]
        %v1050 = vld [vmem:[%s890 + $0x8] sm:$0xff]
        %v1051 = vld [vmem:[#allocation9] sm:$0xf]
        %v1052 = vld [vmem:[#allocation9 + $0x4] sm:$0xf]
        %v1053 = vld [vmem:[#allocation9 + $0x8] sm:$0xf]
        %v1054 = vld [vmem:[#allocation9 + $0xc] sm:$0xf]
        %v1055 = vpack.c.bf16 %v1050, %v1049
        %v1056 = vld [vmem:[#allocation10] sm:$0x1]
        %v1058 = vlaneseq
        %v1059 = vshrl.u32 %v1058, 7
        %v1060 = vsub.s32 0, %v1059
        %v1061 = vrot.slane %v1056, %v1060
        %v1067 = vunpack.c.l.b16 %v1051
        %v1068 = vunpack.c.l.b16 %v1052
        %v1069 = vunpack.c.l.b16 %v1053
        %v1070 = vunpack.c.l.b16 %v1054
        %v1071 = vpack.c.b16 %v1068, %v1067
        %v1072 = vpack.c.b16 %v1070, %v1069
        %vm1075 = vcmask 261120
        %v1077 = vsel %vm1075, %v1055, 0
        %1079 = vmatprep.subr.bf16.mxu0 0
        %1080 = vmatpush1.bf16.msra.mxu0 %v1071
        %1081 = vmatprep.subr.bf16.mxu0 0
        %1082 = vmatpush1.bf16.msra.mxu0 %v1072
        %1083 = vmatprep.subr.bf16.mxu0 0
        %1084 = vmatpush1.bf16.msra.mxu0 0
        %1085 = vmatprep.subr.bf16.mxu0 0
        %1086 = vmatpush1.bf16.msra.mxu0 0
        %1087 = vmatprep.subr.bf16.mxu0 0
        %1088 = vmatpush1.bf16.msra.mxu0 0
        %1089 = vmatprep.subr.bf16.mxu0 0
        %1090 = vmatpush1.bf16.msra.mxu0 0
        %1091 = vmatprep.subr.bf16.mxu0 0
        %1092 = vmatpush1.bf16.msra.mxu0 0
        %1093 = vmatprep.subr.bf16.mxu0 0
        %1094 = vmatpush1.bf16.msra.mxu0 0
        %1095 = vmatprep.subr.bf16.mxu0 0
        %1096 = vmatpush1.bf16.msra.mxu0 0
        %1097 = vmatprep.subr.bf16.mxu0 0
        %1098 = vmatpush1.bf16.msra.mxu0 0
        %1099 = vmatprep.subr.bf16.mxu0 0
        %1100 = vmatpush1.bf16.msra.mxu0 0
        %1101 = vmatprep.subr.bf16.mxu0 0
        %1102 = vmatpush1.bf16.msra.mxu0 0
        %1103 = vmatprep.subr.bf16.mxu0 0
        %1104 = vmatpush1.bf16.msra.mxu0 0
        %1105 = vmatprep.subr.bf16.mxu0 0
        %1106 = vmatpush1.bf16.msra.mxu0 0
        %1107 = vmatprep.subr.bf16.mxu0 0
        %1108 = vmatpush1.bf16.msra.mxu0 0
        %1109 = vmatprep.subr.bf16.mxu0 0
        %1110 = vmatpush1.bf16.msra.mxu0 0
        %1111 = vmatprep.mubr.bf16.mxu0 0
        %1112 = vmatmul.mubr.bf16.gmra.mrb[0].mxu0 %v1077
        %v1113 = vpop.f32.mrb[0].mxu0
        %v1114 = vadd.f32 %v1061, %v1113
        %v1115 = vpop.f32.mrb[0].mxu0
        %v1116 = vpop.f32.mrb[0].mxu0
        %v1117 = vadd.f32 %v1061, %v1116
        %v1118 = vpop.f32.mrb[0].mxu0
        %1119 = vdwg.mxu0
        %v1120 = vld [vmem:[#allocation12] sm:$0x1]
        %v1121 = vld [vmem:[#allocation13] sm:$0x1]
        %v1122 = vsel %vm1075, %v1114, 0.0
        %1123 = vadd.xlane.f32.xlu0 %v1122
        %v1124 = vpop.xlane.xlu0 %1123
        %v1125 = vsel %vm1075, %v1117, 0.0
        %1126 = vadd.xlane.f32.xlu0 %v1125
        %v1127 = vpop.xlane.xlu0 %1126
        %v1128 = vrcp.pop 32.0
        %v1129 = vmul.f32 %v1124, %v1128
        %v1130 = vmul.f32 %v1127, %v1128
        %v1131 = vsub.f32 %v1114, %v1129
        %v1132 = vsub.f32 %v1117, %v1130
        %v1133 = vmul.f32 %v1131, %v1131
        %v1134 = vmul.f32 %v1132, %v1132
        %v1135 = vsel %vm1075, %v1133, 0.0
        %1136 = vadd.xlane.f32.xlu0 %v1135
        %v1137 = vpop.xlane.xlu0 %1136
        %v1138 = vsel %vm1075, %v1134, 0.0
        %1139 = vadd.xlane.f32.xlu0 %v1138
        %v1140 = vpop.xlane.xlu0 %1139
        %v1141 = vmul.f32 %v1137, %v1128
        %v1142 = vmul.f32 %v1140, %v1128
        %v1143 = vadd.f32 %v1141, 1e-05
        %v1144 = vadd.f32 %v1142, 1e-05
        %v1145 = vrsqrt.pop %v1143
        %v1146 = vrsqrt.pop %v1144
        %v1147 = vmul.f32 %v1131, %v1145
        %v1148 = vmul.f32 %v1132, %v1146
        %v1150 = vlaneseq
        %v1151 = vshrl.u32 %v1150, 7
        %v1152 = vsub.s32 0, %v1151
        %v1153 = vrot.slane %v1120, %v1152
        %v1155 = vmul.f32 %v1147, %v1153
        %v1156 = vmul.f32 %v1148, %v1153
        %v1158 = vlaneseq
        %v1159 = vshrl.u32 %v1158, 7
        %v1160 = vsub.s32 0, %v1159
        %v1161 = vrot.slane %v1121, %v1160
        %v1163 = vadd.f32 %v1155, %v1161
        %v1164 = vadd.f32 %v1156, %v1161
        %vm1165 = vcmp.gt.f32.partialorder %v1163, 0.0
        %vm1166 = vcmp.gt.f32.partialorder %v1164, 0.0
        %v1167 = vmul.f32 %v1163, 0.01
        %v1168 = vmul.f32 %v1164, 0.01
        %v1169 = vsel %vm1165, %v1163, %v1167
        %v1170 = vsel %vm1166, %v1164, %v1168
        %v1171 = vld [vmem:[#allocation15] sm:$0xf]
        %v1172 = vld [vmem:[#allocation15 + $0x4] sm:$0xf]
        %v1173 = vld [vmem:[#allocation15 + $0x8] sm:$0xf]
        %v1174 = vld [vmem:[#allocation15 + $0xc] sm:$0xf]
        %v1175 = vpack.c.bf16 %v1170, %v1169
        %v1176 = vld [vmem:[#allocation16] sm:$0x1]
        %v1178 = vlaneseq
        %v1179 = vshrl.u32 %v1178, 7
        %v1180 = vsub.s32 0, %v1179
        %v1181 = vrot.slane %v1176, %v1180
        %v1187 = vunpack.c.l.b16 %v1171
        %v1188 = vunpack.c.l.b16 %v1172
        %v1189 = vunpack.c.l.b16 %v1173
        %v1190 = vunpack.c.l.b16 %v1174
        %v1191 = vpack.c.b16 %v1188, %v1187
        %v1192 = vpack.c.b16 %v1190, %v1189
        %v1196 = vsel %vm1075, %v1175, 0
        %1198 = vmatprep.subr.bf16.mxu0 0
        %1199 = vmatpush1.bf16.msra.mxu0 %v1191
        %1200 = vmatprep.subr.bf16.mxu0 0
        %1201 = vmatpush1.bf16.msra.mxu0 %v1192
        %1202 = vmatprep.subr.bf16.mxu0 0
        %1203 = vmatpush1.bf16.msra.mxu0 0
        %1204 = vmatprep.subr.bf16.mxu0 0
        %1205 = vmatpush1.bf16.msra.mxu0 0
        %1206 = vmatprep.subr.bf16.mxu0 0
        %1207 = vmatpush1.bf16.msra.mxu0 0
        %1208 = vmatprep.subr.bf16.mxu0 0
        %1209 = vmatpush1.bf16.msra.mxu0 0
        %1210 = vmatprep.subr.bf16.mxu0 0
        %1211 = vmatpush1.bf16.msra.mxu0 0
        %1212 = vmatprep.subr.bf16.mxu0 0
        %1213 = vmatpush1.bf16.msra.mxu0 0
        %1214 = vmatprep.subr.bf16.mxu0 0
        %1215 = vmatpush1.bf16.msra.mxu0 0
        %1216 = vmatprep.subr.bf16.mxu0 0
        %1217 = vmatpush1.bf16.msra.mxu0 0
        %1218 = vmatprep.subr.bf16.mxu0 0
        %1219 = vmatpush1.bf16.msra.mxu0 0
        %1220 = vmatprep.subr.bf16.mxu0 0
        %1221 = vmatpush1.bf16.msra.mxu0 0
        %1222 = vmatprep.subr.bf16.mxu0 0
        %1223 = vmatpush1.bf16.msra.mxu0 0
        %1224 = vmatprep.subr.bf16.mxu0 0
        %1225 = vmatpush1.bf16.msra.mxu0 0
        %1226 = vmatprep.subr.bf16.mxu0 0
        %1227 = vmatpush1.bf16.msra.mxu0 0
        %1228 = vmatprep.subr.bf16.mxu0 0
        %1229 = vmatpush1.bf16.msra.mxu0 0
        %1230 = vmatprep.mubr.bf16.mxu0 0
        %1231 = vmatmul.mubr.bf16.gmra.mrb[0].mxu0 %v1196
        %v1232 = vpop.f32.mrb[0].mxu0
        %v1233 = vadd.f32 %v1181, %v1232
        %v1234 = vpop.f32.mrb[0].mxu0
        %v1235 = vpop.f32.mrb[0].mxu0
        %v1236 = vadd.f32 %v1181, %v1235
        %v1237 = vpop.f32.mrb[0].mxu0
        %1238 = vdwg.mxu0
        %v1239 = vld [vmem:[#allocation18] sm:$0x1]
        %v1240 = vld [vmem:[#allocation19] sm:$0x1]
        %vm1241 = vcmask 130048
        %v1242 = vsel %vm1241, %v1233, 0.0
        %1243 = vadd.xlane.f32.xlu0 %v1242
        %v1244 = vpop.xlane.xlu0 %1243
        %v1245 = vsel %vm1241, %v1236, 0.0
        %1246 = vadd.xlane.f32.xlu0 %v1245
        %v1247 = vpop.xlane.xlu0 %1246
        %v1248 = vrcp.pop 16.0
        %v1249 = vmul.f32 %v1244, %v1248
        %v1250 = vmul.f32 %v1247, %v1248
        %v1251 = vsub.f32 %v1233, %v1249
        %v1252 = vsub.f32 %v1236, %v1250
        %v1253 = vmul.f32 %v1251, %v1251
        %v1254 = vmul.f32 %v1252, %v1252
        %v1255 = vsel %vm1241, %v1253, 0.0
        %1256 = vadd.xlane.f32.xlu0 %v1255
        %v1257 = vpop.xlane.xlu0 %1256
        %v1258 = vsel %vm1241, %v1254, 0.0
        %1259 = vadd.xlane.f32.xlu0 %v1258
        %v1260 = vpop.xlane.xlu0 %1259
        %v1261 = vmul.f32 %v1257, %v1248
        %v1262 = vmul.f32 %v1260, %v1248
        %v1263 = vadd.f32 %v1261, 1e-05
        %v1264 = vadd.f32 %v1262, 1e-05
        %v1265 = vrsqrt.pop %v1263
        %v1266 = vrsqrt.pop %v1264
        %v1267 = vmul.f32 %v1251, %v1265
        %v1268 = vmul.f32 %v1252, %v1266
        %v1270 = vlaneseq
        %v1271 = vshrl.u32 %v1270, 7
        %v1272 = vsub.s32 0, %v1271
        %v1273 = vrot.slane %v1239, %v1272
        %v1275 = vmul.f32 %v1267, %v1273
        %v1276 = vmul.f32 %v1268, %v1273
        %v1278 = vlaneseq
        %v1279 = vshrl.u32 %v1278, 7
        %v1280 = vsub.s32 0, %v1279
        %v1281 = vrot.slane %v1240, %v1280
        %v1283 = vadd.f32 %v1275, %v1281
        %v1284 = vadd.f32 %v1276, %v1281
        %vm1285 = vcmp.gt.f32.partialorder %v1283, 0.0
        %vm1286 = vcmp.gt.f32.partialorder %v1284, 0.0
        %v1287 = vmul.f32 %v1283, 0.01
        %v1288 = vmul.f32 %v1284, 0.01
        %v1289 = vsel %vm1285, %v1283, %v1287
        %v1290 = vsel %vm1286, %v1284, %v1288
        %v1291 = vld [vmem:[#allocation21] sm:$0xf]
        %v1292 = vld [vmem:[#allocation21 + $0x4] sm:$0xf]
        %v1293 = vpack.c.bf16 %v1290, %v1289
        %v1294 = vld [vmem:[#allocation22] sm:$0x1]
        %v1296 = vlaneseq
        %v1297 = vshrl.u32 %v1296, 7
        %v1298 = vsub.s32 0, %v1297
        %v1299 = vrot.slane %v1294, %v1298
        %v1303 = vunpack.c.l.b16 %v1291
        %v1304 = vunpack.c.l.b16 %v1292
        %v1305 = vpack.c.b16 %v1304, %v1303
        %v1308 = vsel %vm1241, %v1293, 0
        %1310 = vmatprep.subr.bf16.mxu0 0
        %1311 = vmatpush1.bf16.msra.mxu0 %v1305
        %1312 = vmatprep.subr.bf16.mxu0 0
        %1313 = vmatpush1.bf16.msra.mxu0 0
        %1314 = vmatprep.subr.bf16.mxu0 0
        %1315 = vmatpush1.bf16.msra.mxu0 0
        %1316 = vmatprep.subr.bf16.mxu0 0
        %1317 = vmatpush1.bf16.msra.mxu0 0
        %1318 = vmatprep.subr.bf16.mxu0 0
        %1319 = vmatpush1.bf16.msra.mxu0 0
        %1320 = vmatprep.subr.bf16.mxu0 0
        %1321 = vmatpush1.bf16.msra.mxu0 0
        %1322 = vmatprep.subr.bf16.mxu0 0
        %1323 = vmatpush1.bf16.msra.mxu0 0
        %1324 = vmatprep.subr.bf16.mxu0 0
        %1325 = vmatpush1.bf16.msra.mxu0 0
        %1326 = vmatprep.subr.bf16.mxu0 0
        %1327 = vmatpush1.bf16.msra.mxu0 0
        %1328 = vmatprep.subr.bf16.mxu0 0
        %1329 = vmatpush1.bf16.msra.mxu0 0
        %1330 = vmatprep.subr.bf16.mxu0 0
        %1331 = vmatpush1.bf16.msra.mxu0 0
        %1332 = vmatprep.subr.bf16.mxu0 0
        %1333 = vmatpush1.bf16.msra.mxu0 0
        %1334 = vmatprep.subr.bf16.mxu0 0
        %1335 = vmatpush1.bf16.msra.mxu0 0
        %1336 = vmatprep.subr.bf16.mxu0 0
        %1337 = vmatpush1.bf16.msra.mxu0 0
        %1338 = vmatprep.subr.bf16.mxu0 0
        %1339 = vmatpush1.bf16.msra.mxu0 0
        %1340 = vmatprep.subr.bf16.mxu0 0
        %1341 = vmatpush1.bf16.msra.mxu0 0
        %1342 = vmatprep.mubr.bf16.mxu0 0
        %1343 = vmatmul.mubr.bf16.gmra.mrb[0].mxu0 %v1308
        %v1344 = vpop.f32.mrb[0].mxu0
        %v1345 = vadd.f32 %v1299, %v1344
        %v1346 = vpop.f32.mrb[0].mxu0
        %v1347 = vpop.f32.mrb[0].mxu0
        %v1348 = vadd.f32 %v1299, %v1347
        %v1349 = vpop.f32.mrb[0].mxu0
        %1350 = vdwg.mxu0
        %v1351 = vld [vmem:[#allocation24] sm:$0x1]
        %v1352 = vld [vmem:[#allocation25] sm:$0x1]
        %vm1353 = vcmask 64512
        %v1354 = vsel %vm1353, %v1345, 0.0
        %1355 = vadd.xlane.f32.xlu0 %v1354
        %v1356 = vpop.xlane.xlu0 %1355
        %v1357 = vsel %vm1353, %v1348, 0.0
        %1358 = vadd.xlane.f32.xlu0 %v1357
        %v1359 = vpop.xlane.xlu0 %1358
        %v1360 = vrcp.pop 8.0
        %v1361 = vmul.f32 %v1356, %v1360
        %v1362 = vmul.f32 %v1359, %v1360
        %v1363 = vsub.f32 %v1345, %v1361
        %v1364 = vsub.f32 %v1348, %v1362
        %v1365 = vmul.f32 %v1363, %v1363
        %v1366 = vmul.f32 %v1364, %v1364
        %v1367 = vsel %vm1353, %v1365, 0.0
        %1368 = vadd.xlane.f32.xlu0 %v1367
        %v1369 = vpop.xlane.xlu0 %1368
        %v1370 = vsel %vm1353, %v1366, 0.0
        %1371 = vadd.xlane.f32.xlu0 %v1370
        %v1372 = vpop.xlane.xlu0 %1371
        %v1373 = vmul.f32 %v1369, %v1360
        %v1374 = vmul.f32 %v1372, %v1360
        %v1375 = vadd.f32 %v1373, 1e-05
        %v1376 = vadd.f32 %v1374, 1e-05
        %v1377 = vrsqrt.pop %v1375
        %v1378 = vrsqrt.pop %v1376
        %v1379 = vmul.f32 %v1363, %v1377
        %v1380 = vmul.f32 %v1364, %v1378
        %v1382 = vlaneseq
        %v1383 = vshrl.u32 %v1382, 7
        %v1384 = vsub.s32 0, %v1383
        %v1385 = vrot.slane %v1351, %v1384
        %v1387 = vmul.f32 %v1379, %v1385
        %v1388 = vmul.f32 %v1380, %v1385
        %v1390 = vlaneseq
        %v1391 = vshrl.u32 %v1390, 7
        %v1392 = vsub.s32 0, %v1391
        %v1393 = vrot.slane %v1352, %v1392
        %v1395 = vadd.f32 %v1387, %v1393
        %v1396 = vadd.f32 %v1388, %v1393
        %vm1397 = vcmp.gt.f32.partialorder %v1395, 0.0
        %vm1398 = vcmp.gt.f32.partialorder %v1396, 0.0
        %v1399 = vmul.f32 %v1395, 0.01
        %v1400 = vmul.f32 %v1396, 0.01
        %v1401 = vsel %vm1397, %v1395, %v1399
        %v1402 = vsel %vm1398, %v1396, %v1400
        %v1403 = vld [vmem:[%s899] sm:$0xff]
        %v1404 = vld [vmem:[%s899 + $0x8] sm:$0xff]
        %v1405 = vld [vmem:[#allocation27] sm:$0xf]
        %v1406 = vld [vmem:[#allocation27 + $0x4] sm:$0x3]
        %v1407 = vld [vmem:[#allocation28] sm:$0x1]
        %v1408 = vpack.c.bf16 %v1402, %v1401
        %v1409 = vpack.c.bf16 %v1404, %v1403
        %vm1410 = vcmask 31744
        %v1412 = vsel %vm1410, %v1409, 0
        %vm1414 = vcmask 1041408
        %v1416 = vsel %vm1414, %v1406, 0
        %1418 = vmatprep.subr.bf16.mxu0 0
        %1419 = vmatpush1.bf16.msra.mxu0 %v1416
        %1420 = vmatprep.subr.bf16.mxu0 0
        %1421 = vmatpush1.bf16.msra.mxu0 0
        %1422 = vmatprep.subr.bf16.mxu0 0
        %1423 = vmatpush1.bf16.msra.mxu0 0
        %1424 = vmatprep.subr.bf16.mxu0 0
        %1425 = vmatpush1.bf16.msra.mxu0 0
        %1426 = vmatprep.subr.bf16.mxu0 0
        %1427 = vmatpush1.bf16.msra.mxu0 0
        %1428 = vmatprep.subr.bf16.mxu0 0
        %1429 = vmatpush1.bf16.msra.mxu0 0
        %1430 = vmatprep.subr.bf16.mxu0 0
        %1431 = vmatpush1.bf16.msra.mxu0 0
        %1432 = vmatprep.subr.bf16.mxu0 0
        %1433 = vmatpush1.bf16.msra.mxu0 0
        %1434 = vmatprep.subr.bf16.mxu0 0
        %1435 = vmatpush1.bf16.msra.mxu0 0
        %1436 = vmatprep.subr.bf16.mxu0 0
        %1437 = vmatpush1.bf16.msra.mxu0 0
        %1438 = vmatprep.subr.bf16.mxu0 0
        %1439 = vmatpush1.bf16.msra.mxu0 0
        %1440 = vmatprep.subr.bf16.mxu0 0
        %1441 = vmatpush1.bf16.msra.mxu0 0
        %1442 = vmatprep.subr.bf16.mxu0 0
        %1443 = vmatpush1.bf16.msra.mxu0 0
        %1444 = vmatprep.subr.bf16.mxu0 0
        %1445 = vmatpush1.bf16.msra.mxu0 0
        %1446 = vmatprep.subr.bf16.mxu0 0
        %1447 = vmatpush1.bf16.msra.mxu0 0
        %1448 = vmatprep.subr.bf16.mxu0 0
        %1449 = vmatpush1.bf16.msra.mxu0 0
        %1450 = vmatprep.mubr.bf16.mxu0 0
        %1451 = vmatmul.mubr.bf16.gmra.mrb[0].mxu0 %v1412
        %v1452 = vpop.f32.mrb[0].mxu0
        %v1453 = vadd.f32 0.0, %v1452
        %v1454 = vpop.f32.mrb[0].mxu0
        %v1455 = vpop.f32.mrb[0].mxu0
        %v1456 = vadd.f32 0.0, %v1455
        %v1457 = vpop.f32.mrb[0].mxu0
        %1458 = vdwg.mxu0
        %v1460 = vsel %vm1353, %v1408, 0
        %vm1462 = vcmask 1043456
        %v1464 = vsel %vm1462, %v1405, 0
        %1466 = vmatprep.subr.bf16.mxu0 0
        %1467 = vmatpush1.bf16.msra.mxu0 %v1464
        %1468 = vmatprep.subr.bf16.mxu0 0
        %1469 = vmatpush1.bf16.msra.mxu0 0
        %1470 = vmatprep.subr.bf16.mxu0 0
        %1471 = vmatpush1.bf16.msra.mxu0 0
        %1472 = vmatprep.subr.bf16.mxu0 0
        %1473 = vmatpush1.bf16.msra.mxu0 0
        %1474 = vmatprep.subr.bf16.mxu0 0
        %1475 = vmatpush1.bf16.msra.mxu0 0
        %1476 = vmatprep.subr.bf16.mxu0 0
        %1477 = vmatpush1.bf16.msra.mxu0 0
        %1478 = vmatprep.subr.bf16.mxu0 0
        %1479 = vmatpush1.bf16.msra.mxu0 0
        %1480 = vmatprep.subr.bf16.mxu0 0
        %1481 = vmatpush1.bf16.msra.mxu0 0
        %1482 = vmatprep.subr.bf16.mxu0 0
        %1483 = vmatpush1.bf16.msra.mxu0 0
        %1484 = vmatprep.subr.bf16.mxu0 0
        %1485 = vmatpush1.bf16.msra.mxu0 0
        %1486 = vmatprep.subr.bf16.mxu0 0
        %1487 = vmatpush1.bf16.msra.mxu0 0
        %1488 = vmatprep.subr.bf16.mxu0 0
        %1489 = vmatpush1.bf16.msra.mxu0 0
        %1490 = vmatprep.subr.bf16.mxu0 0
        %1491 = vmatpush1.bf16.msra.mxu0 0
        %1492 = vmatprep.subr.bf16.mxu0 0
        %1493 = vmatpush1.bf16.msra.mxu0 0
        %1494 = vmatprep.subr.bf16.mxu0 0
        %1495 = vmatpush1.bf16.msra.mxu0 0
        %1496 = vmatprep.subr.bf16.mxu0 0
        %1497 = vmatpush1.bf16.msra.mxu0 0
        %1498 = vmatprep.mubr.bf16.mxu0 0
        %1499 = vmatmul.mubr.bf16.gmra.mrb[0].mxu0 %v1460
        %v1500 = vpop.f32.mrb[0].mxu0
        %v1501 = vadd.f32 %v1453, %v1500
        %v1502 = vpop.f32.mrb[0].mxu0
        %v1503 = vpop.f32.mrb[0].mxu0
        %v1504 = vadd.f32 %v1456, %v1503
        %v1505 = vpop.f32.mrb[0].mxu0
        %1506 = vdwg.mxu0
        %v1508 = vlaneseq
        %v1509 = vshrl.u32 %v1508, 7
        %v1510 = vsub.s32 0, %v1509
        %v1511 = vrot.slane %v1407, %v1510
        %v1513 = vadd.f32 %v1501, %v1511
        %v1514 = vadd.f32 %v1504, %v1511
        %v1515 = vld [vmem:[#allocation30] sm:$0xf]
        %v1516 = vld [vmem:[#allocation30 + $0x4] sm:$0x3]
        %v1517 = vld [vmem:[#allocation31] sm:$0x1]
        %v1519 = vsel %vm1414, %v1516, 0
        %1521 = vmatprep.subr.bf16.mxu0 0
        %1522 = vmatpush1.bf16.msra.mxu0 %v1519
        %1523 = vmatprep.subr.bf16.mxu0 0
        %1524 = vmatpush1.bf16.msra.mxu0 0
        %1525 = vmatprep.subr.bf16.mxu0 0
        %1526 = vmatpush1.bf16.msra.mxu0 0
        %1527 = vmatprep.subr.bf16.mxu0 0
        %1528 = vmatpush1.bf16.msra.mxu0 0
        %1529 = vmatprep.subr.bf16.mxu0 0
        %1530 = vmatpush1.bf16.msra.mxu0 0
        %1531 = vmatprep.subr.bf16.mxu0 0
        %1532 = vmatpush1.bf16.msra.mxu0 0
        %1533 = vmatprep.subr.bf16.mxu0 0
        %1534 = vmatpush1.bf16.msra.mxu0 0
        %1535 = vmatprep.subr.bf16.mxu0 0
        %1536 = vmatpush1.bf16.msra.mxu0 0
        %1537 = vmatprep.subr.bf16.mxu0 0
        %1538 = vmatpush1.bf16.msra.mxu0 0
        %1539 = vmatprep.subr.bf16.mxu0 0
        %1540 = vmatpush1.bf16.msra.mxu0 0
        %1541 = vmatprep.subr.bf16.mxu0 0
        %1542 = vmatpush1.bf16.msra.mxu0 0
        %1543 = vmatprep.subr.bf16.mxu0 0
        %1544 = vmatpush1.bf16.msra.mxu0 0
        %1545 = vmatprep.subr.bf16.mxu0 0
        %1546 = vmatpush1.bf16.msra.mxu0 0
        %1547 = vmatprep.subr.bf16.mxu0 0
        %1548 = vmatpush1.bf16.msra.mxu0 0
        %1549 = vmatprep.subr.bf16.mxu0 0
        %1550 = vmatpush1.bf16.msra.mxu0 0
        %1551 = vmatprep.subr.bf16.mxu0 0
        %1552 = vmatpush1.bf16.msra.mxu0 0
        %1553 = vmatprep.mubr.bf16.mxu0 0
        %1554 = vmatmul.mubr.bf16.gmra.mrb[0].mxu0 %v1412
        %v1555 = vpop.f32.mrb[0].mxu0
        %v1556 = vadd.f32 0.0, %v1555
        %v1557 = vpop.f32.mrb[0].mxu0
        %v1558 = vpop.f32.mrb[0].mxu0
        %v1559 = vadd.f32 0.0, %v1558
        %v1560 = vpop.f32.mrb[0].mxu0
        %1561 = vdwg.mxu0
        %v1563 = vsel %vm1462, %v1515, 0
        %1565 = vmatprep.subr.bf16.mxu0 0
        %1566 = vmatpush1.bf16.msra.mxu0 %v1563
        %1567 = vmatprep.subr.bf16.mxu0 0
        %1568 = vmatpush1.bf16.msra.mxu0 0
        %1569 = vmatprep.subr.bf16.mxu0 0
        %1570 = vmatpush1.bf16.msra.mxu0 0
        %1571 = vmatprep.subr.bf16.mxu0 0
        %1572 = vmatpush1.bf16.msra.mxu0 0
        %1573 = vmatprep.subr.bf16.mxu0 0
        %1574 = vmatpush1.bf16.msra.mxu0 0
        %1575 = vmatprep.subr.bf16.mxu0 0
        %1576 = vmatpush1.bf16.msra.mxu0 0
        %1577 = vmatprep.subr.bf16.mxu0 0
        %1578 = vmatpush1.bf16.msra.mxu0 0
        %1579 = vmatprep.subr.bf16.mxu0 0
        %1580 = vmatpush1.bf16.msra.mxu0 0
        %1581 = vmatprep.subr.bf16.mxu0 0
        %1582 = vmatpush1.bf16.msra.mxu0 0
        %1583 = vmatprep.subr.bf16.mxu0 0
        %1584 = vmatpush1.bf16.msra.mxu0 0
        %1585 = vmatprep.subr.bf16.mxu0 0
        %1586 = vmatpush1.bf16.msra.mxu0 0
        %1587 = vmatprep.subr.bf16.mxu0 0
        %1588 = vmatpush1.bf16.msra.mxu0 0
        %1589 = vmatprep.subr.bf16.mxu0 0
        %1590 = vmatpush1.bf16.msra.mxu0 0
        %1591 = vmatprep.subr.bf16.mxu0 0
        %1592 = vmatpush1.bf16.msra.mxu0 0
        %1593 = vmatprep.subr.bf16.mxu0 0
        %1594 = vmatpush1.bf16.msra.mxu0 0
        %1595 = vmatprep.subr.bf16.mxu0 0
        %1596 = vmatpush1.bf16.msra.mxu0 0
        %1597 = vmatprep.mubr.bf16.mxu0 0
        %1598 = vmatmul.mubr.bf16.gmra.mrb[0].mxu0 %v1460
        %v1599 = vpop.f32.mrb[0].mxu0
        %v1600 = vadd.f32 %v1556, %v1599
        %v1601 = vpop.f32.mrb[0].mxu0
        %v1602 = vpop.f32.mrb[0].mxu0
        %v1603 = vadd.f32 %v1559, %v1602
        %v1604 = vpop.f32.mrb[0].mxu0
        %1605 = vdwg.mxu0
        %v1607 = vlaneseq
        %v1608 = vshrl.u32 %v1607, 7
        %v1609 = vsub.s32 0, %v1608
        %v1610 = vrot.slane %v1517, %v1609
        %v1612 = vadd.f32 %v1600, %v1610
        %v1613 = vadd.f32 %v1603, %v1610
        %v1614 = vld [vmem:[#allocation33] sm:$0xff]
        %v1615 = vld [vmem:[#allocation34] sm:$0xff]
        %v1617 = vsel %vm1353, 0.0, 0
        %1619 = vmatprep.subr.mxu0 0.0
        %1620 = vmatpush1.msra.mxu0 %v1614
        %1621 = vmatprep.subr.mxu0 0.0
        %1622 = vmatpush1.msra.mxu0 0.0
        %1623 = vmatprep.subr.mxu0 0.0
        %1624 = vmatpush1.msra.mxu0 0.0
        %1625 = vmatprep.subr.mxu0 0.0
        %1626 = vmatpush1.msra.mxu0 0.0
        %1627 = vmatprep.subr.mxu0 0.0
        %1628 = vmatpush1.msra.mxu0 0.0
        %1629 = vmatprep.subr.mxu0 0.0
        %1630 = vmatpush1.msra.mxu0 0.0
        %1631 = vmatprep.subr.mxu0 0.0
        %1632 = vmatpush1.msra.mxu0 0.0
        %1633 = vmatprep.subr.mxu0 0.0
        %1634 = vmatpush1.msra.mxu0 0.0
        %1635 = vmatprep.subr.mxu0 0.0
        %1636 = vmatpush1.msra.mxu0 0.0
        %1637 = vmatprep.subr.mxu0 0.0
        %1638 = vmatpush1.msra.mxu0 0.0
        %1639 = vmatprep.subr.mxu0 0.0
        %1640 = vmatpush1.msra.mxu0 0.0
        %1641 = vmatprep.subr.mxu0 0.0
        %1642 = vmatpush1.msra.mxu0 0.0
        %1643 = vmatprep.subr.mxu0 0.0
        %1644 = vmatpush1.msra.mxu0 0.0
        %1645 = vmatprep.subr.mxu0 0.0
        %1646 = vmatpush1.msra.mxu0 0.0
        %1647 = vmatprep.subr.mxu0 0.0
        %1648 = vmatpush1.msra.mxu0 0.0
        %1649 = vmatprep.subr.mxu0 0.0
        %1650 = vmatpush1.msra.mxu0 0.0
        %1651 = vmatprep.subr.mxu0 0.0
        %1652 = vmatpush1.msra.mxu0 0.0
        %1653 = vmatprep.subr.mxu0 0.0
        %1654 = vmatpush1.msra.mxu0 0.0
        %1655 = vmatprep.subr.mxu0 0.0
        %1656 = vmatpush1.msra.mxu0 0.0
        %1657 = vmatprep.subr.mxu0 0.0
        %1658 = vmatpush1.msra.mxu0 0.0
        %1659 = vmatprep.subr.mxu0 0.0
        %1660 = vmatpush1.msra.mxu0 0.0
        %1661 = vmatprep.subr.mxu0 0.0
        %1662 = vmatpush1.msra.mxu0 0.0
        %1663 = vmatprep.subr.mxu0 0.0
        %1664 = vmatpush1.msra.mxu0 0.0
        %1665 = vmatprep.subr.mxu0 0.0
        %1666 = vmatpush1.msra.mxu0 0.0
        %1667 = vmatprep.subr.mxu0 0.0
        %1668 = vmatpush1.msra.mxu0 0.0
        %1669 = vmatprep.subr.mxu0 0.0
        %1670 = vmatpush1.msra.mxu0 0.0
        %1671 = vmatprep.subr.mxu0 0.0
        %1672 = vmatpush1.msra.mxu0 0.0
        %1673 = vmatprep.subr.mxu0 0.0
        %1674 = vmatpush1.msra.mxu0 0.0
        %1675 = vmatprep.subr.mxu0 0.0
        %1676 = vmatpush1.msra.mxu0 0.0
        %1677 = vmatprep.subr.mxu0 0.0
        %1678 = vmatpush1.msra.mxu0 0.0
        %1679 = vmatprep.subr.mxu0 0.0
        %1680 = vmatpush1.msra.mxu0 0.0
        %1681 = vmatprep.subr.mxu0 0.0
        %1682 = vmatpush1.msra.mxu0 0.0
        %1683 = vmatprep.mubr.f32.mxu0 0.0
        %1684 = vmatmul.mubr.f32.gmra.mrb[0].mxu0 %v1617
        %v1685 = vpop.f32.mrb[0].mxu0
        %v1686 = vadd.f32 0.0, %v1685
        %v1687 = vpop.f32.mrb[0].mxu0
        %1688 = vdwg.mxu0
        %v1690 = vrot.slane %v1686, 1
        %v1693 = vadd.f32 %v1513, %v1686
        %v1694 = vadd.f32 %v1514, %v1690
        %v1695 = vsub.f32 0.0, %v1693
        %v1696 = vsub.f32 0.0, %v1694
        %v1697 = vmul.f32 %v1695, 1.442695
        %v1698 = vpow.pop %v1697
        %v1699 = vmul.f32 %v1696, 1.442695
        %v1700 = vpow.pop %v1699
        %v1701 = vadd.f32 %v1698, 1.0
        %v1702 = vadd.f32 %v1700, 1.0
        %v1703 = vrcp.pop %v1701
        %v1704 = vmul.f32 1.0, %v1703
        %v1705 = vrcp.pop %v1702
        %v1706 = vmul.f32 1.0, %v1705
        %v1707 = vtanh.pop %v1693
        %v1708 = vtanh.pop %v1694
        %v1709 = vmul.f32 %v1704, 0.0
        %v1710 = vmul.f32 %v1706, 0.0
        %1713 = vrot.lane.b32.xlu0 %v1707, 112
        %v1714 = vpop.permute.xlu0 %1713
        %1715 = vrot.lane.b32.xlu0 %v1708, 112
        %v1716 = vpop.permute.xlu0 %1715
        %v1719 = vmul.f32 %v1704, %v1714
        %v1720 = vmul.f32 %v1706, %v1716
        %1723 = vrot.lane.b32.xlu0 %v1719, 8
        %v1724 = vpop.permute.xlu0 %1723
        %1725 = vrot.lane.b32.xlu0 %v1720, 8
        %v1726 = vpop.permute.xlu0 %1725
        %v1729 = vadd.f32 %v1709, %v1724
        %v1730 = vadd.f32 %v1710, %v1726
        %v1731 = vtanh.pop %v1729
        %v1732 = vtanh.pop %v1730
        %1735 = vrot.lane.b32.xlu0 %v1731, 16
        %v1736 = vpop.permute.xlu0 %1735
        %1737 = vrot.lane.b32.xlu0 %v1732, 16
        %v1738 = vpop.permute.xlu0 %1737
        %v1741 = vmul.f32 %v1704, %v1736
        %v1742 = vmul.f32 %v1706, %v1738
        %1743 = vmatprep.subr.mxu0 0.0
        %1744 = vmatpush1.msra.mxu0 %v1615
        %1745 = vmatprep.subr.mxu0 0.0
        %1746 = vmatpush1.msra.mxu0 0.0
        %1747 = vmatprep.subr.mxu0 0.0
        %1748 = vmatpush1.msra.mxu0 0.0
        %1749 = vmatprep.subr.mxu0 0.0
        %1750 = vmatpush1.msra.mxu0 0.0
        %1751 = vmatprep.subr.mxu0 0.0
        %1752 = vmatpush1.msra.mxu0 0.0
        %1753 = vmatprep.subr.mxu0 0.0
        %1754 = vmatpush1.msra.mxu0 0.0
        %1755 = vmatprep.subr.mxu0 0.0
        %1756 = vmatpush1.msra.mxu0 0.0
        %1757 = vmatprep.subr.mxu0 0.0
        %1758 = vmatpush1.msra.mxu0 0.0
        %1759 = vmatprep.subr.mxu0 0.0
        %1760 = vmatpush1.msra.mxu0 0.0
        %1761 = vmatprep.subr.mxu0 0.0
        %1762 = vmatpush1.msra.mxu0 0.0
        %1763 = vmatprep.subr.mxu0 0.0
        %1764 = vmatpush1.msra.mxu0 0.0
        %1765 = vmatprep.subr.mxu0 0.0
        %1766 = vmatpush1.msra.mxu0 0.0
        %1767 = vmatprep.subr.mxu0 0.0
        %1768 = vmatpush1.msra.mxu0 0.0
        %1769 = vmatprep.subr.mxu0 0.0
        %1770 = vmatpush1.msra.mxu0 0.0
        %1771 = vmatprep.subr.mxu0 0.0
        %1772 = vmatpush1.msra.mxu0 0.0
        %1773 = vmatprep.subr.mxu0 0.0
        %1774 = vmatpush1.msra.mxu0 0.0
        %1775 = vmatprep.subr.mxu0 0.0
        %1776 = vmatpush1.msra.mxu0 0.0
        %1777 = vmatprep.subr.mxu0 0.0
        %1778 = vmatpush1.msra.mxu0 0.0
        %1779 = vmatprep.subr.mxu0 0.0
        %1780 = vmatpush1.msra.mxu0 0.0
        %1781 = vmatprep.subr.mxu0 0.0
        %1782 = vmatpush1.msra.mxu0 0.0
        %1783 = vmatprep.subr.mxu0 0.0
        %1784 = vmatpush1.msra.mxu0 0.0
        %1785 = vmatprep.subr.mxu0 0.0
        %1786 = vmatpush1.msra.mxu0 0.0
        %1787 = vmatprep.subr.mxu0 0.0
        %1788 = vmatpush1.msra.mxu0 0.0
        %1789 = vmatprep.subr.mxu0 0.0
        %1790 = vmatpush1.msra.mxu0 0.0
        %1791 = vmatprep.subr.mxu0 0.0
        %1792 = vmatpush1.msra.mxu0 0.0
        %1793 = vmatprep.subr.mxu0 0.0
        %1794 = vmatpush1.msra.mxu0 0.0
        %1795 = vmatprep.subr.mxu0 0.0
        %1796 = vmatpush1.msra.mxu0 0.0
        %1797 = vmatprep.subr.mxu0 0.0
        %1798 = vmatpush1.msra.mxu0 0.0
        %1799 = vmatprep.subr.mxu0 0.0
        %1800 = vmatpush1.msra.mxu0 0.0
        %1801 = vmatprep.subr.mxu0 0.0
        %1802 = vmatpush1.msra.mxu0 0.0
        %1803 = vmatprep.subr.mxu0 0.0
        %1804 = vmatpush1.msra.mxu0 0.0
        %1805 = vmatprep.subr.mxu0 0.0
        %1806 = vmatpush1.msra.mxu0 0.0
        %1807 = vmatprep.mubr.f32.mxu0 0.0
        %1808 = vmatmul.mubr.f32.gmra.mrb[0].mxu0 %v1617
        %v1809 = vpop.f32.mrb[0].mxu0
        %v1810 = vadd.f32 0.0, %v1809
        %v1811 = vpop.f32.mrb[0].mxu0
        %1812 = vdwg.mxu0
        %v1814 = vrot.slane %v1810, 1
        %v1815 = vrot.slane %v1810, 2
        %v1818 = vadd.f32 %v1612, %v1814
        %v1819 = vadd.f32 %v1613, %v1815
        %v1820 = vsub.f32 0.0, %v1818
        %v1821 = vsub.f32 0.0, %v1819
        %v1822 = vmul.f32 %v1820, 1.442695
        %v1823 = vpow.pop %v1822
        %v1824 = vmul.f32 %v1821, 1.442695
        %v1825 = vpow.pop %v1824
        %v1826 = vadd.f32 %v1823, 1.0
        %v1827 = vadd.f32 %v1825, 1.0
        %v1828 = vrcp.pop %v1826
        %v1829 = vmul.f32 1.0, %v1828
        %v1830 = vrcp.pop %v1827
        %v1831 = vmul.f32 1.0, %v1830
        %v1832 = vtanh.pop %v1818
        %v1833 = vtanh.pop %v1819
        %v1834 = vmul.f32 %v1829, 0.0
        %v1835 = vmul.f32 %v1831, 0.0
        %1838 = vrot.lane.b32.xlu0 %v1832, 112
        %v1839 = vpop.permute.xlu0 %1838
        %1840 = vrot.lane.b32.xlu0 %v1833, 112
        %v1841 = vpop.permute.xlu0 %1840
        %v1844 = vmul.f32 %v1829, %v1839
        %v1845 = vmul.f32 %v1831, %v1841
        %1848 = vrot.lane.b32.xlu0 %v1844, 8
        %v1849 = vpop.permute.xlu0 %1848
        %1850 = vrot.lane.b32.xlu0 %v1845, 8
        %v1851 = vpop.permute.xlu0 %1850
        %v1854 = vadd.f32 %v1834, %v1849
        %v1855 = vadd.f32 %v1835, %v1851
        %v1856 = vtanh.pop %v1854
        %v1857 = vtanh.pop %v1855
        %1860 = vrot.lane.b32.xlu0 %v1856, 16
        %v1861 = vpop.permute.xlu0 %1860
        %1862 = vrot.lane.b32.xlu0 %v1857, 16
        %v1863 = vpop.permute.xlu0 %1862
        %v1866 = vmul.f32 %v1829, %v1861
        %v1867 = vmul.f32 %v1831, %v1863
        %v1870 = vrot.slane %v1742, 7
        %vm1871 = vcmask 1041409
        %v1872 = vsel %vm1871, %v1870, %v1741
        %1873 = vrot.lane.b32.xlu0 %v1872, 104
        %v1874 = vpop.permute.xlu0 %1873
        %v1875 = vsel %vm1353, %v1874, 0
        %1877 = vmatprep.subr.mxu0 0.0
        %1878 = vmatpush1.msra.mxu0 %v1614
        %1879 = vmatprep.subr.mxu0 0.0
        %1880 = vmatpush1.msra.mxu0 0.0
        %1881 = vmatprep.subr.mxu0 0.0
        %1882 = vmatpush1.msra.mxu0 0.0
        %1883 = vmatprep.subr.mxu0 0.0
        %1884 = vmatpush1.msra.mxu0 0.0
        %1885 = vmatprep.subr.mxu0 0.0
        %1886 = vmatpush1.msra.mxu0 0.0
        %1887 = vmatprep.subr.mxu0 0.0
        %1888 = vmatpush1.msra.mxu0 0.0
        %1889 = vmatprep.subr.mxu0 0.0
        %1890 = vmatpush1.msra.mxu0 0.0
        %1891 = vmatprep.subr.mxu0 0.0
        %1892 = vmatpush1.msra.mxu0 0.0
        %1893 = vmatprep.subr.mxu0 0.0
        %1894 = vmatpush1.msra.mxu0 0.0
        %1895 = vmatprep.subr.mxu0 0.0
        %1896 = vmatpush1.msra.mxu0 0.0
        %1897 = vmatprep.subr.mxu0 0.0
        %1898 = vmatpush1.msra.mxu0 0.0
        %1899 = vmatprep.subr.mxu0 0.0
        %1900 = vmatpush1.msra.mxu0 0.0
        %1901 = vmatprep.subr.mxu0 0.0
        %1902 = vmatpush1.msra.mxu0 0.0
        %1903 = vmatprep.subr.mxu0 0.0
        %1904 = vmatpush1.msra.mxu0 0.0
        %1905 = vmatprep.subr.mxu0 0.0
        %1906 = vmatpush1.msra.mxu0 0.0
        %1907 = vmatprep.subr.mxu0 0.0
        %1908 = vmatpush1.msra.mxu0 0.0
        %1909 = vmatprep.subr.mxu0 0.0
        %1910 = vmatpush1.msra.mxu0 0.0
        %1911 = vmatprep.subr.mxu0 0.0
        %1912 = vmatpush1.msra.mxu0 0.0
        %1913 = vmatprep.subr.mxu0 0.0
        %1914 = vmatpush1.msra.mxu0 0.0
        %1915 = vmatprep.subr.mxu0 0.0
        %1916 = vmatpush1.msra.mxu0 0.0
        %1917 = vmatprep.subr.mxu0 0.0
        %1918 = vmatpush1.msra.mxu0 0.0
        %1919 = vmatprep.subr.mxu0 0.0
        %1920 = vmatpush1.msra.mxu0 0.0
        %1921 = vmatprep.subr.mxu0 0.0
        %1922 = vmatpush1.msra.mxu0 0.0
        %1923 = vmatprep.subr.mxu0 0.0
        %1924 = vmatpush1.msra.mxu0 0.0
        %1925 = vmatprep.subr.mxu0 0.0
        %1926 = vmatpush1.msra.mxu0 0.0
        %1927 = vmatprep.subr.mxu0 0.0
        %1928 = vmatpush1.msra.mxu0 0.0
        %1929 = vmatprep.subr.mxu0 0.0
        %1930 = vmatpush1.msra.mxu0 0.0
        %1931 = vmatprep.subr.mxu0 0.0
        %1932 = vmatpush1.msra.mxu0 0.0
        %1933 = vmatprep.subr.mxu0 0.0
        %1934 = vmatpush1.msra.mxu0 0.0
        %1935 = vmatprep.subr.mxu0 0.0
        %1936 = vmatpush1.msra.mxu0 0.0
        %1937 = vmatprep.subr.mxu0 0.0
        %1938 = vmatpush1.msra.mxu0 0.0
        %1939 = vmatprep.subr.mxu0 0.0
        %1940 = vmatpush1.msra.mxu0 0.0
        %1941 = vmatprep.mubr.f32.mxu0 0.0
        %1942 = vmatmul.mubr.f32.gmra.mrb[0].mxu0 %v1875
        %v1943 = vpop.f32.mrb[0].mxu0
        %v1944 = vadd.f32 0.0, %v1943
        %v1945 = vpop.f32.mrb[0].mxu0
        %1946 = vdwg.mxu0
        %v1948 = vrot.slane %v1944, 7
        %v1951 = vadd.f32 %v1513, %v1948
        %v1952 = vadd.f32 %v1514, %v1944
        %v1953 = vsub.f32 0.0, %v1951
        %v1954 = vsub.f32 0.0, %v1952
        %v1955 = vmul.f32 %v1953, 1.442695
        %v1956 = vpow.pop %v1955
        %v1957 = vmul.f32 %v1954, 1.442695
        %v1958 = vpow.pop %v1957
        %v1959 = vadd.f32 %v1956, 1.0
        %v1960 = vadd.f32 %v1958, 1.0
        %v1961 = vrcp.pop %v1959
        %v1962 = vmul.f32 1.0, %v1961
        %v1963 = vrcp.pop %v1960
        %v1964 = vmul.f32 1.0, %v1963
        %v1965 = vtanh.pop %v1951
        %v1966 = vtanh.pop %v1952
        %v1969 = vrot.slane %v1729, 7
        %v1970 = vrot.slane %v1730, 7
        %v1973 = vmul.f32 %v1962, %v1969
        %v1974 = vmul.f32 %v1964, %v1970
        %1977 = vrot.lane.b32.xlu0 %v1965, 112
        %v1978 = vpop.permute.xlu0 %1977
        %1979 = vrot.lane.b32.xlu0 %v1966, 112
        %v1980 = vpop.permute.xlu0 %1979
        %v1983 = vmul.f32 %v1962, %v1978
        %v1984 = vmul.f32 %v1964, %v1980
        %1987 = vrot.lane.b32.xlu0 %v1983, 8
        %v1988 = vpop.permute.xlu0 %1987
        %1989 = vrot.lane.b32.xlu0 %v1984, 8
        %v1990 = vpop.permute.xlu0 %1989
        %v1993 = vadd.f32 %v1973, %v1988
        %v1994 = vadd.f32 %v1974, %v1990
        %v1995 = vtanh.pop %v1993
        %v1996 = vtanh.pop %v1994
        %1999 = vrot.lane.b32.xlu0 %v1995, 16
        %v2000 = vpop.permute.xlu0 %1999
        %2001 = vrot.lane.b32.xlu0 %v1996, 16
        %v2002 = vpop.permute.xlu0 %2001
        %v2005 = vmul.f32 %v1962, %v2000
        %v2006 = vmul.f32 %v1964, %v2002
        %v2009 = vrot.slane %v1866, 7
        %v2010 = vrot.slane %v1867, 6
        %v2011 = vsel %vm1871, %v2010, %v2009
        %2012 = vrot.lane.b32.xlu0 %v2011, 104
        %v2013 = vpop.permute.xlu0 %2012
        %v2014 = vsel %vm1353, %v2013, 0
        %2016 = vmatprep.subr.mxu0 0.0
        %2017 = vmatpush1.msra.mxu0 %v1615
        %2018 = vmatprep.subr.mxu0 0.0
        %2019 = vmatpush1.msra.mxu0 0.0
        %2020 = vmatprep.subr.mxu0 0.0
        %2021 = vmatpush1.msra.mxu0 0.0
        %2022 = vmatprep.subr.mxu0 0.0
        %2023 = vmatpush1.msra.mxu0 0.0
        %2024 = vmatprep.subr.mxu0 0.0
        %2025 = vmatpush1.msra.mxu0 0.0
        %2026 = vmatprep.subr.mxu0 0.0
        %2027 = vmatpush1.msra.mxu0 0.0
        %2028 = vmatprep.subr.mxu0 0.0
        %2029 = vmatpush1.msra.mxu0 0.0
        %2030 = vmatprep.subr.mxu0 0.0
        %2031 = vmatpush1.msra.mxu0 0.0
        %2032 = vmatprep.subr.mxu0 0.0
        %2033 = vmatpush1.msra.mxu0 0.0
        %2034 = vmatprep.subr.mxu0 0.0
        %2035 = vmatpush1.msra.mxu0 0.0
        %2036 = vmatprep.subr.mxu0 0.0
        %2037 = vmatpush1.msra.mxu0 0.0
        %2038 = vmatprep.subr.mxu0 0.0
        %2039 = vmatpush1.msra.mxu0 0.0
        %2040 = vmatprep.subr.mxu0 0.0
        %2041 = vmatpush1.msra.mxu0 0.0
        %2042 = vmatprep.subr.mxu0 0.0
        %2043 = vmatpush1.msra.mxu0 0.0
        %2044 = vmatprep.subr.mxu0 0.0
        %2045 = vmatpush1.msra.mxu0 0.0
        %2046 = vmatprep.subr.mxu0 0.0
        %2047 = vmatpush1.msra.mxu0 0.0
        %2048 = vmatprep.subr.mxu0 0.0
        %2049 = vmatpush1.msra.mxu0 0.0
        %2050 = vmatprep.subr.mxu0 0.0
        %2051 = vmatpush1.msra.mxu0 0.0
        %2052 = vmatprep.subr.mxu0 0.0
        %2053 = vmatpush1.msra.mxu0 0.0
        %2054 = vmatprep.subr.mxu0 0.0
        %2055 = vmatpush1.msra.mxu0 0.0
        %2056 = vmatprep.subr.mxu0 0.0
        %2057 = vmatpush1.msra.mxu0 0.0
        %2058 = vmatprep.subr.mxu0 0.0
        %2059 = vmatpush1.msra.mxu0 0.0
        %2060 = vmatprep.subr.mxu0 0.0
        %2061 = vmatpush1.msra.mxu0 0.0
        %2062 = vmatprep.subr.mxu0 0.0
        %2063 = vmatpush1.msra.mxu0 0.0
        %2064 = vmatprep.subr.mxu0 0.0
        %2065 = vmatpush1.msra.mxu0 0.0
        %2066 = vmatprep.subr.mxu0 0.0
        %2067 = vmatpush1.msra.mxu0 0.0
        %2068 = vmatprep.subr.mxu0 0.0
        %2069 = vmatpush1.msra.mxu0 0.0
        %2070 = vmatprep.subr.mxu0 0.0
        %2071 = vmatpush1.msra.mxu0 0.0
        %2072 = vmatprep.subr.mxu0 0.0
        %2073 = vmatpush1.msra.mxu0 0.0
        %2074 = vmatprep.subr.mxu0 0.0
        %2075 = vmatpush1.msra.mxu0 0.0
        %2076 = vmatprep.subr.mxu0 0.0
        %2077 = vmatpush1.msra.mxu0 0.0
        %2078 = vmatprep.subr.mxu0 0.0
        %2079 = vmatpush1.msra.mxu0 0.0
        %2080 = vmatprep.mubr.f32.mxu0 0.0
        %2081 = vmatmul.mubr.f32.gmra.mrb[0].mxu0 %v2014
        %v2082 = vpop.f32.mrb[0].mxu0
        %v2083 = vadd.f32 0.0, %v2082
        %v2084 = vpop.f32.mrb[0].mxu0
        %2085 = vdwg.mxu0
        %v2087 = vrot.slane %v2083, 2
        %v2088 = vrot.slane %v2083, 3
        %v2091 = vadd.f32 %v1612, %v2087
        %v2092 = vadd.f32 %v1613, %v2088
        %v2093 = vsub.f32 0.0, %v2091
        %v2094 = vsub.f32 0.0, %v2092
        %v2095 = vmul.f32 %v2093, 1.442695
        %v2096 = vpow.pop %v2095
        %v2097 = vmul.f32 %v2094, 1.442695
        %v2098 = vpow.pop %v2097
        %v2099 = vadd.f32 %v2096, 1.0
        %v2100 = vadd.f32 %v2098, 1.0
        %v2101 = vrcp.pop %v2099
        %v2102 = vmul.f32 1.0, %v2101
        %v2103 = vrcp.pop %v2100
        %v2104 = vmul.f32 1.0, %v2103
        %v2105 = vtanh.pop %v2091
        %v2106 = vtanh.pop %v2092
        %v2109 = vrot.slane %v1854, 1
        %v2110 = vrot.slane %v1855, 1
        %v2113 = vmul.f32 %v2102, %v2109
        %v2114 = vmul.f32 %v2104, %v2110
        %2117 = vrot.lane.b32.xlu0 %v2105, 112
        %v2118 = vpop.permute.xlu0 %2117
        %2119 = vrot.lane.b32.xlu0 %v2106, 112
        %v2120 = vpop.permute.xlu0 %2119
        %v2123 = vmul.f32 %v2102, %v2118
        %v2124 = vmul.f32 %v2104, %v2120
        %2127 = vrot.lane.b32.xlu0 %v2123, 8
        %v2128 = vpop.permute.xlu0 %2127
        %2129 = vrot.lane.b32.xlu0 %v2124, 8
        %v2130 = vpop.permute.xlu0 %2129
        %v2133 = vadd.f32 %v2113, %v2128
        %v2134 = vadd.f32 %v2114, %v2130
        %v2135 = vtanh.pop %v2133
        %v2136 = vtanh.pop %v2134
        %2139 = vrot.lane.b32.xlu0 %v2135, 16
        %v2140 = vpop.permute.xlu0 %2139
        %2141 = vrot.lane.b32.xlu0 %v2136, 16
        %v2142 = vpop.permute.xlu0 %2141
        %v2145 = vmul.f32 %v2102, %v2140
        %v2146 = vmul.f32 %v2104, %v2142
        %v2149 = vrot.slane %v2005, 1
        %v2150 = vsel %vm1871, %v2006, %v2149
        %2151 = vrot.lane.b32.xlu0 %v2150, 104
        %v2152 = vpop.permute.xlu0 %2151
        %v2153 = vsel %vm1353, %v2152, 0
        %2155 = vmatprep.subr.mxu0 0.0
        %2156 = vmatpush1.msra.mxu0 %v1614
        %2157 = vmatprep.subr.mxu0 0.0
        %2158 = vmatpush1.msra.mxu0 0.0
        %2159 = vmatprep.subr.mxu0 0.0
        %2160 = vmatpush1.msra.mxu0 0.0
        %2161 = vmatprep.subr.mxu0 0.0
        %2162 = vmatpush1.msra.mxu0 0.0
        %2163 = vmatprep.subr.mxu0 0.0
        %2164 = vmatpush1.msra.mxu0 0.0
        %2165 = vmatprep.subr.mxu0 0.0
        %2166 = vmatpush1.msra.mxu0 0.0
        %2167 = vmatprep.subr.mxu0 0.0
        %2168 = vmatpush1.msra.mxu0 0.0
        %2169 = vmatprep.subr.mxu0 0.0
        %2170 = vmatpush1.msra.mxu0 0.0
        %2171 = vmatprep.subr.mxu0 0.0
        %2172 = vmatpush1.msra.mxu0 0.0
        %2173 = vmatprep.subr.mxu0 0.0
        %2174 = vmatpush1.msra.mxu0 0.0
        %2175 = vmatprep.subr.mxu0 0.0
        %2176 = vmatpush1.msra.mxu0 0.0
        %2177 = vmatprep.subr.mxu0 0.0
        %2178 = vmatpush1.msra.mxu0 0.0
        %2179 = vmatprep.subr.mxu0 0.0
        %2180 = vmatpush1.msra.mxu0 0.0
        %2181 = vmatprep.subr.mxu0 0.0
        %2182 = vmatpush1.msra.mxu0 0.0
        %2183 = vmatprep.subr.mxu0 0.0
        %2184 = vmatpush1.msra.mxu0 0.0
        %2185 = vmatprep.subr.mxu0 0.0
        %2186 = vmatpush1.msra.mxu0 0.0
        %2187 = vmatprep.subr.mxu0 0.0
        %2188 = vmatpush1.msra.mxu0 0.0
        %2189 = vmatprep.subr.mxu0 0.0
        %2190 = vmatpush1.msra.mxu0 0.0
        %2191 = vmatprep.subr.mxu0 0.0
        %2192 = vmatpush1.msra.mxu0 0.0
        %2193 = vmatprep.subr.mxu0 0.0
        %2194 = vmatpush1.msra.mxu0 0.0
        %2195 = vmatprep.subr.mxu0 0.0
        %2196 = vmatpush1.msra.mxu0 0.0
        %2197 = vmatprep.subr.mxu0 0.0
        %2198 = vmatpush1.msra.mxu0 0.0
        %2199 = vmatprep.subr.mxu0 0.0
        %2200 = vmatpush1.msra.mxu0 0.0
        %2201 = vmatprep.subr.mxu0 0.0
        %2202 = vmatpush1.msra.mxu0 0.0
        %2203 = vmatprep.subr.mxu0 0.0
        %2204 = vmatpush1.msra.mxu0 0.0
        %2205 = vmatprep.subr.mxu0 0.0
        %2206 = vmatpush1.msra.mxu0 0.0
        %2207 = vmatprep.subr.mxu0 0.0
        %2208 = vmatpush1.msra.mxu0 0.0
        %2209 = vmatprep.subr.mxu0 0.0
        %2210 = vmatpush1.msra.mxu0 0.0
        %2211 = vmatprep.subr.mxu0 0.0
        %2212 = vmatpush1.msra.mxu0 0.0
        %2213 = vmatprep.subr.mxu0 0.0
        %2214 = vmatpush1.msra.mxu0 0.0
        %2215 = vmatprep.subr.mxu0 0.0
        %2216 = vmatpush1.msra.mxu0 0.0
        %2217 = vmatprep.subr.mxu0 0.0
        %2218 = vmatpush1.msra.mxu0 0.0
        %2219 = vmatprep.mubr.f32.mxu0 0.0
        %2220 = vmatmul.mubr.f32.gmra.mrb[0].mxu0 %v2153
        %v2221 = vpop.f32.mrb[0].mxu0
        %v2222 = vadd.f32 0.0, %v2221
        %v2223 = vpop.f32.mrb[0].mxu0
        %2224 = vdwg.mxu0
        %v2226 = vrot.slane %v2222, 6
        %v2227 = vrot.slane %v2222, 7
        %v2230 = vadd.f32 %v1513, %v2226
        %v2231 = vadd.f32 %v1514, %v2227
        %v2232 = vsub.f32 0.0, %v2230
        %v2233 = vsub.f32 0.0, %v2231
        %v2234 = vmul.f32 %v2232, 1.442695
        %v2235 = vpow.pop %v2234
        %v2236 = vmul.f32 %v2233, 1.442695
        %v2237 = vpow.pop %v2236
        %v2238 = vadd.f32 %v2235, 1.0
        %v2239 = vadd.f32 %v2237, 1.0
        %v2240 = vrcp.pop %v2238
        %v2241 = vmul.f32 1.0, %v2240
        %v2242 = vrcp.pop %v2239
        %v2243 = vmul.f32 1.0, %v2242
        %v2244 = vtanh.pop %v2230
        %v2245 = vtanh.pop %v2231
        %v2248 = vrot.slane %v1993, 7
        %v2249 = vrot.slane %v1994, 7
        %v2252 = vmul.f32 %v2241, %v2248
        %v2253 = vmul.f32 %v2243, %v2249
        %2256 = vrot.lane.b32.xlu0 %v2244, 112
        %v2257 = vpop.permute.xlu0 %2256
        %2258 = vrot.lane.b32.xlu0 %v2245, 112
        %v2259 = vpop.permute.xlu0 %2258
        %v2262 = vmul.f32 %v2241, %v2257
        %v2263 = vmul.f32 %v2243, %v2259
        %2266 = vrot.lane.b32.xlu0 %v2262, 8
        %v2267 = vpop.permute.xlu0 %2266
        %2268 = vrot.lane.b32.xlu0 %v2263, 8
        %v2269 = vpop.permute.xlu0 %2268
        %v2272 = vadd.f32 %v2252, %v2267
        %v2273 = vadd.f32 %v2253, %v2269
        %v2274 = vtanh.pop %v2272
        %v2275 = vtanh.pop %v2273
        %2278 = vrot.lane.b32.xlu0 %v2274, 16
        %v2279 = vpop.permute.xlu0 %2278
        %2280 = vrot.lane.b32.xlu0 %v2275, 16
        %v2281 = vpop.permute.xlu0 %2280
        %v2284 = vmul.f32 %v2241, %v2279
        %v2285 = vmul.f32 %v2243, %v2281
        %v2288 = vrot.slane %v2145, 6
        %v2289 = vrot.slane %v2146, 5
        %v2290 = vsel %vm1871, %v2289, %v2288
        %2291 = vrot.lane.b32.xlu0 %v2290, 104
        %v2292 = vpop.permute.xlu0 %2291
        %v2293 = vsel %vm1353, %v2292, 0
        %2295 = vmatprep.subr.mxu0 0.0
        %2296 = vmatpush1.msra.mxu0 %v1615
        %2297 = vmatprep.subr.mxu0 0.0
        %2298 = vmatpush1.msra.mxu0 0.0
        %2299 = vmatprep.subr.mxu0 0.0
        %2300 = vmatpush1.msra.mxu0 0.0
        %2301 = vmatprep.subr.mxu0 0.0
        %2302 = vmatpush1.msra.mxu0 0.0
        %2303 = vmatprep.subr.mxu0 0.0
        %2304 = vmatpush1.msra.mxu0 0.0
        %2305 = vmatprep.subr.mxu0 0.0
        %2306 = vmatpush1.msra.mxu0 0.0
        %2307 = vmatprep.subr.mxu0 0.0
        %2308 = vmatpush1.msra.mxu0 0.0
        %2309 = vmatprep.subr.mxu0 0.0
        %2310 = vmatpush1.msra.mxu0 0.0
        %2311 = vmatprep.subr.mxu0 0.0
        %2312 = vmatpush1.msra.mxu0 0.0
        %2313 = vmatprep.subr.mxu0 0.0
        %2314 = vmatpush1.msra.mxu0 0.0
        %2315 = vmatprep.subr.mxu0 0.0
        %2316 = vmatpush1.msra.mxu0 0.0
        %2317 = vmatprep.subr.mxu0 0.0
        %2318 = vmatpush1.msra.mxu0 0.0
        %2319 = vmatprep.subr.mxu0 0.0
        %2320 = vmatpush1.msra.mxu0 0.0
        %2321 = vmatprep.subr.mxu0 0.0
        %2322 = vmatpush1.msra.mxu0 0.0
        %2323 = vmatprep.subr.mxu0 0.0
        %2324 = vmatpush1.msra.mxu0 0.0
        %2325 = vmatprep.subr.mxu0 0.0
        %2326 = vmatpush1.msra.mxu0 0.0
        %2327 = vmatprep.subr.mxu0 0.0
        %2328 = vmatpush1.msra.mxu0 0.0
        %2329 = vmatprep.subr.mxu0 0.0
        %2330 = vmatpush1.msra.mxu0 0.0
        %2331 = vmatprep.subr.mxu0 0.0
        %2332 = vmatpush1.msra.mxu0 0.0
        %2333 = vmatprep.subr.mxu0 0.0
        %2334 = vmatpush1.msra.mxu0 0.0
        %2335 = vmatprep.subr.mxu0 0.0
        %2336 = vmatpush1.msra.mxu0 0.0
        %2337 = vmatprep.subr.mxu0 0.0
        %2338 = vmatpush1.msra.mxu0 0.0
        %2339 = vmatprep.subr.mxu0 0.0
        %2340 = vmatpush1.msra.mxu0 0.0
        %2341 = vmatprep.subr.mxu0 0.0
        %2342 = vmatpush1.msra.mxu0 0.0
        %2343 = vmatprep.subr.mxu0 0.0
        %2344 = vmatpush1.msra.mxu0 0.0
        %2345 = vmatprep.subr.mxu0 0.0
        %2346 = vmatpush1.msra.mxu0 0.0
        %2347 = vmatprep.subr.mxu0 0.0
        %2348 = vmatpush1.msra.mxu0 0.0
        %2349 = vmatprep.subr.mxu0 0.0
        %2350 = vmatpush1.msra.mxu0 0.0
        %2351 = vmatprep.subr.mxu0 0.0
        %2352 = vmatpush1.msra.mxu0 0.0
        %2353 = vmatprep.subr.mxu0 0.0
        %2354 = vmatpush1.msra.mxu0 0.0
        %2355 = vmatprep.subr.mxu0 0.0
        %2356 = vmatpush1.msra.mxu0 0.0
        %2357 = vmatprep.subr.mxu0 0.0
        %2358 = vmatpush1.msra.mxu0 0.0
        %2359 = vmatprep.mubr.f32.mxu0 0.0
        %2360 = vmatmul.mubr.f32.gmra.mrb[0].mxu0 %v2293
        %v2361 = vpop.f32.mrb[0].mxu0
        %v2362 = vadd.f32 0.0, %v2361
        %v2363 = vpop.f32.mrb[0].mxu0
        %2364 = vdwg.mxu0
        %v2366 = vrot.slane %v2362, 3
        %v2367 = vrot.slane %v2362, 4
        %v2370 = vadd.f32 %v1612, %v2366
        %v2371 = vadd.f32 %v1613, %v2367
        %v2372 = vsub.f32 0.0, %v2370
        %v2373 = vsub.f32 0.0, %v2371
        %v2374 = vmul.f32 %v2372, 1.442695
        %v2375 = vpow.pop %v2374
        %v2376 = vmul.f32 %v2373, 1.442695
        %v2377 = vpow.pop %v2376
        %v2378 = vadd.f32 %v2375, 1.0
        %v2379 = vadd.f32 %v2377, 1.0
        %v2380 = vrcp.pop %v2378
        %v2381 = vmul.f32 1.0, %v2380
        %v2382 = vrcp.pop %v2379
        %v2383 = vmul.f32 1.0, %v2382
        %v2384 = vtanh.pop %v2370
        %v2385 = vtanh.pop %v2371
        %v2388 = vrot.slane %v2133, 1
        %v2389 = vrot.slane %v2134, 1
        %v2392 = vmul.f32 %v2381, %v2388
        %v2393 = vmul.f32 %v2383, %v2389
        %2396 = vrot.lane.b32.xlu0 %v2384, 112
        %v2397 = vpop.permute.xlu0 %2396
        %2398 = vrot.lane.b32.xlu0 %v2385, 112
        %v2399 = vpop.permute.xlu0 %2398
        %v2402 = vmul.f32 %v2381, %v2397
        %v2403 = vmul.f32 %v2383, %v2399
        %2406 = vrot.lane.b32.xlu0 %v2402, 8
        %v2407 = vpop.permute.xlu0 %2406
        %2408 = vrot.lane.b32.xlu0 %v2403, 8
        %v2409 = vpop.permute.xlu0 %2408
        %v2412 = vadd.f32 %v2392, %v2407
        %v2413 = vadd.f32 %v2393, %v2409
        %v2414 = vtanh.pop %v2412
        %v2415 = vtanh.pop %v2413
        %2418 = vrot.lane.b32.xlu0 %v2414, 16
        %v2419 = vpop.permute.xlu0 %2418
        %2420 = vrot.lane.b32.xlu0 %v2415, 16
        %v2421 = vpop.permute.xlu0 %2420
        %v2424 = vmul.f32 %v2381, %v2419
        %v2425 = vmul.f32 %v2383, %v2421
        %v2428 = vrot.slane %v2284, 2
        %v2429 = vrot.slane %v2285, 1
        %v2430 = vsel %vm1871, %v2429, %v2428
        %2431 = vrot.lane.b32.xlu0 %v2430, 104
        %v2432 = vpop.permute.xlu0 %2431
        %v2433 = vsel %vm1353, %v2432, 0
        %2435 = vmatprep.subr.mxu0 0.0
        %2436 = vmatpush1.msra.mxu0 %v1614
        %2437 = vmatprep.subr.mxu0 0.0
        %2438 = vmatpush1.msra.mxu0 0.0
        %2439 = vmatprep.subr.mxu0 0.0
        %2440 = vmatpush1.msra.mxu0 0.0
        %2441 = vmatprep.subr.mxu0 0.0
        %2442 = vmatpush1.msra.mxu0 0.0
        %2443 = vmatprep.subr.mxu0 0.0
        %2444 = vmatpush1.msra.mxu0 0.0
        %2445 = vmatprep.subr.mxu0 0.0
        %2446 = vmatpush1.msra.mxu0 0.0
        %2447 = vmatprep.subr.mxu0 0.0
        %2448 = vmatpush1.msra.mxu0 0.0
        %2449 = vmatprep.subr.mxu0 0.0
        %2450 = vmatpush1.msra.mxu0 0.0
        %2451 = vmatprep.subr.mxu0 0.0
        %2452 = vmatpush1.msra.mxu0 0.0
        %2453 = vmatprep.subr.mxu0 0.0
        %2454 = vmatpush1.msra.mxu0 0.0
        %2455 = vmatprep.subr.mxu0 0.0
        %2456 = vmatpush1.msra.mxu0 0.0
        %2457 = vmatprep.subr.mxu0 0.0
        %2458 = vmatpush1.msra.mxu0 0.0
        %2459 = vmatprep.subr.mxu0 0.0
        %2460 = vmatpush1.msra.mxu0 0.0
        %2461 = vmatprep.subr.mxu0 0.0
        %2462 = vmatpush1.msra.mxu0 0.0
        %2463 = vmatprep.subr.mxu0 0.0
        %2464 = vmatpush1.msra.mxu0 0.0
        %2465 = vmatprep.subr.mxu0 0.0
        %2466 = vmatpush1.msra.mxu0 0.0
        %2467 = vmatprep.subr.mxu0 0.0
        %2468 = vmatpush1.msra.mxu0 0.0
        %2469 = vmatprep.subr.mxu0 0.0
        %2470 = vmatpush1.msra.mxu0 0.0
        %2471 = vmatprep.subr.mxu0 0.0
        %2472 = vmatpush1.msra.mxu0 0.0
        %2473 = vmatprep.subr.mxu0 0.0
        %2474 = vmatpush1.msra.mxu0 0.0
        %2475 = vmatprep.subr.mxu0 0.0
        %2476 = vmatpush1.msra.mxu0 0.0
        %2477 = vmatprep.subr.mxu0 0.0
        %2478 = vmatpush1.msra.mxu0 0.0
        %2479 = vmatprep.subr.mxu0 0.0
        %2480 = vmatpush1.msra.mxu0 0.0
        %2481 = vmatprep.subr.mxu0 0.0
        %2482 = vmatpush1.msra.mxu0 0.0
        %2483 = vmatprep.subr.mxu0 0.0
        %2484 = vmatpush1.msra.mxu0 0.0
        %2485 = vmatprep.subr.mxu0 0.0
        %2486 = vmatpush1.msra.mxu0 0.0
        %2487 = vmatprep.subr.mxu0 0.0
        %2488 = vmatpush1.msra.mxu0 0.0
        %2489 = vmatprep.subr.mxu0 0.0
        %2490 = vmatpush1.msra.mxu0 0.0
        %2491 = vmatprep.subr.mxu0 0.0
        %2492 = vmatpush1.msra.mxu0 0.0
        %2493 = vmatprep.subr.mxu0 0.0
        %2494 = vmatpush1.msra.mxu0 0.0
        %2495 = vmatprep.subr.mxu0 0.0
        %2496 = vmatpush1.msra.mxu0 0.0
        %2497 = vmatprep.subr.mxu0 0.0
        %2498 = vmatpush1.msra.mxu0 0.0
        %2499 = vmatprep.mubr.f32.mxu0 0.0
        %2500 = vmatmul.mubr.f32.gmra.mrb[0].mxu0 %v2433
        %v2501 = vpop.f32.mrb[0].mxu0
        %v2502 = vadd.f32 0.0, %v2501
        %v2503 = vpop.f32.mrb[0].mxu0
        %2504 = vdwg.mxu0
        %v2506 = vrot.slane %v2502, 5
        %v2507 = vrot.slane %v2502, 6
        %v2510 = vadd.f32 %v1513, %v2506
        %v2511 = vadd.f32 %v1514, %v2507
        %v2512 = vsub.f32 0.0, %v2510
        %v2513 = vsub.f32 0.0, %v2511
        %v2514 = vmul.f32 %v2512, 1.442695
        %v2515 = vpow.pop %v2514
        %v2516 = vmul.f32 %v2513, 1.442695
        %v2517 = vpow.pop %v2516
        %v2518 = vadd.f32 %v2515, 1.0
        %v2519 = vadd.f32 %v2517, 1.0
        %v2520 = vrcp.pop %v2518
        %v2521 = vmul.f32 1.0, %v2520
        %v2522 = vrcp.pop %v2519
        %v2523 = vmul.f32 1.0, %v2522
        %v2524 = vtanh.pop %v2510
        %v2525 = vtanh.pop %v2511
        %v2528 = vrot.slane %v2272, 7
        %v2529 = vrot.slane %v2273, 7
        %v2532 = vmul.f32 %v2521, %v2528
        %v2533 = vmul.f32 %v2523, %v2529
        %2536 = vrot.lane.b32.xlu0 %v2524, 112
        %v2537 = vpop.permute.xlu0 %2536
        %2538 = vrot.lane.b32.xlu0 %v2525, 112
        %v2539 = vpop.permute.xlu0 %2538
        %v2542 = vmul.f32 %v2521, %v2537
        %v2543 = vmul.f32 %v2523, %v2539
        %2546 = vrot.lane.b32.xlu0 %v2542, 8
        %v2547 = vpop.permute.xlu0 %2546
        %2548 = vrot.lane.b32.xlu0 %v2543, 8
        %v2549 = vpop.permute.xlu0 %2548
        %v2552 = vadd.f32 %v2532, %v2547
        %v2553 = vadd.f32 %v2533, %v2549
        %v2554 = vtanh.pop %v2552
        %v2555 = vtanh.pop %v2553
        %2558 = vrot.lane.b32.xlu0 %v2554, 16
        %v2559 = vpop.permute.xlu0 %2558
        %2560 = vrot.lane.b32.xlu0 %v2555, 16
        %v2561 = vpop.permute.xlu0 %2560
        %v2564 = vmul.f32 %v2521, %v2559
        %v2565 = vmul.f32 %v2523, %v2561
        %v2568 = vrot.slane %v2424, 5
        %v2569 = vrot.slane %v2425, 4
        %v2570 = vsel %vm1871, %v2569, %v2568
        %2571 = vrot.lane.b32.xlu0 %v2570, 104
        %v2572 = vpop.permute.xlu0 %2571
        %v2573 = vsel %vm1353, %v2572, 0
        %2575 = vmatprep.subr.mxu0 0.0
        %2576 = vmatpush1.msra.mxu0 %v1615
        %2577 = vmatprep.subr.mxu0 0.0
        %2578 = vmatpush1.msra.mxu0 0.0
        %2579 = vmatprep.subr.mxu0 0.0
        %2580 = vmatpush1.msra.mxu0 0.0
        %2581 = vmatprep.subr.mxu0 0.0
        %2582 = vmatpush1.msra.mxu0 0.0
        %2583 = vmatprep.subr.mxu0 0.0
        %2584 = vmatpush1.msra.mxu0 0.0
        %2585 = vmatprep.subr.mxu0 0.0
        %2586 = vmatpush1.msra.mxu0 0.0
        %2587 = vmatprep.subr.mxu0 0.0
        %2588 = vmatpush1.msra.mxu0 0.0
        %2589 = vmatprep.subr.mxu0 0.0
        %2590 = vmatpush1.msra.mxu0 0.0
        %2591 = vmatprep.subr.mxu0 0.0
        %2592 = vmatpush1.msra.mxu0 0.0
        %2593 = vmatprep.subr.mxu0 0.0
        %2594 = vmatpush1.msra.mxu0 0.0
        %2595 = vmatprep.subr.mxu0 0.0
        %2596 = vmatpush1.msra.mxu0 0.0
        %2597 = vmatprep.subr.mxu0 0.0
        %2598 = vmatpush1.msra.mxu0 0.0
        %2599 = vmatprep.subr.mxu0 0.0
        %2600 = vmatpush1.msra.mxu0 0.0
        %2601 = vmatprep.subr.mxu0 0.0
        %2602 = vmatpush1.msra.mxu0 0.0
        %2603 = vmatprep.subr.mxu0 0.0
        %2604 = vmatpush1.msra.mxu0 0.0
        %2605 = vmatprep.subr.mxu0 0.0
        %2606 = vmatpush1.msra.mxu0 0.0
        %2607 = vmatprep.subr.mxu0 0.0
        %2608 = vmatpush1.msra.mxu0 0.0
        %2609 = vmatprep.subr.mxu0 0.0
        %2610 = vmatpush1.msra.mxu0 0.0
        %2611 = vmatprep.subr.mxu0 0.0
        %2612 = vmatpush1.msra.mxu0 0.0
        %2613 = vmatprep.subr.mxu0 0.0
        %2614 = vmatpush1.msra.mxu0 0.0
        %2615 = vmatprep.subr.mxu0 0.0
        %2616 = vmatpush1.msra.mxu0 0.0
        %2617 = vmatprep.subr.mxu0 0.0
        %2618 = vmatpush1.msra.mxu0 0.0
        %2619 = vmatprep.subr.mxu0 0.0
        %2620 = vmatpush1.msra.mxu0 0.0
        %2621 = vmatprep.subr.mxu0 0.0
        %2622 = vmatpush1.msra.mxu0 0.0
        %2623 = vmatprep.subr.mxu0 0.0
        %2624 = vmatpush1.msra.mxu0 0.0
        %2625 = vmatprep.subr.mxu0 0.0
        %2626 = vmatpush1.msra.mxu0 0.0
        %2627 = vmatprep.subr.mxu0 0.0
        %2628 = vmatpush1.msra.mxu0 0.0
        %2629 = vmatprep.subr.mxu0 0.0
        %2630 = vmatpush1.msra.mxu0 0.0
        %2631 = vmatprep.subr.mxu0 0.0
        %2632 = vmatpush1.msra.mxu0 0.0
        %2633 = vmatprep.subr.mxu0 0.0
        %2634 = vmatpush1.msra.mxu0 0.0
        %2635 = vmatprep.subr.mxu0 0.0
        %2636 = vmatpush1.msra.mxu0 0.0
        %2637 = vmatprep.subr.mxu0 0.0
        %2638 = vmatpush1.msra.mxu0 0.0
        %2639 = vmatprep.mubr.f32.mxu0 0.0
        %2640 = vmatmul.mubr.f32.gmra.mrb[0].mxu0 %v2573
        %v2641 = vpop.f32.mrb[0].mxu0
        %v2642 = vadd.f32 0.0, %v2641
        %v2643 = vpop.f32.mrb[0].mxu0
        %2644 = vdwg.mxu0
        %v2646 = vrot.slane %v2642, 4
        %v2647 = vrot.slane %v2642, 5
        %v2650 = vadd.f32 %v1612, %v2646
        %v2651 = vadd.f32 %v1613, %v2647
        %v2652 = vsub.f32 0.0, %v2650
        %v2653 = vsub.f32 0.0, %v2651
        %v2654 = vmul.f32 %v2652, 1.442695
        %v2655 = vpow.pop %v2654
        %v2656 = vmul.f32 %v2653, 1.442695
        %v2657 = vpow.pop %v2656
        %v2658 = vadd.f32 %v2655, 1.0
        %v2659 = vadd.f32 %v2657, 1.0
        %v2660 = vrcp.pop %v2658
        %v2661 = vmul.f32 1.0, %v2660
        %v2662 = vrcp.pop %v2659
        %v2663 = vmul.f32 1.0, %v2662
        %v2664 = vtanh.pop %v2650
        %v2665 = vtanh.pop %v2651
        %v2668 = vrot.slane %v2412, 1
        %v2669 = vrot.slane %v2413, 1
        %v2672 = vmul.f32 %v2661, %v2668
        %v2673 = vmul.f32 %v2663, %v2669
        %2676 = vrot.lane.b32.xlu0 %v2664, 112
        %v2677 = vpop.permute.xlu0 %2676
        %2678 = vrot.lane.b32.xlu0 %v2665, 112
        %v2679 = vpop.permute.xlu0 %2678
        %v2682 = vmul.f32 %v2661, %v2677
        %v2683 = vmul.f32 %v2663, %v2679
        %2686 = vrot.lane.b32.xlu0 %v2682, 8
        %v2687 = vpop.permute.xlu0 %2686
        %2688 = vrot.lane.b32.xlu0 %v2683, 8
        %v2689 = vpop.permute.xlu0 %2688
        %v2692 = vadd.f32 %v2672, %v2687
        %v2693 = vadd.f32 %v2673, %v2689
        %v2694 = vtanh.pop %v2692
        %v2695 = vtanh.pop %v2693
        %2698 = vrot.lane.b32.xlu0 %v2694, 16
        %v2699 = vpop.permute.xlu0 %2698
        %2700 = vrot.lane.b32.xlu0 %v2695, 16
        %v2701 = vpop.permute.xlu0 %2700
        %v2704 = vmul.f32 %v2661, %v2699
        %v2705 = vmul.f32 %v2663, %v2701
        %v2708 = vrot.slane %v2564, 3
        %v2709 = vrot.slane %v2565, 2
        %v2710 = vsel %vm1871, %v2709, %v2708
        %2711 = vrot.lane.b32.xlu0 %v2710, 104
        %v2712 = vpop.permute.xlu0 %2711
        %v2713 = vsel %vm1353, %v2712, 0
        %2715 = vmatprep.subr.mxu0 0.0
        %2716 = vmatpush1.msra.mxu0 %v1614
        %2717 = vmatprep.subr.mxu0 0.0
        %2718 = vmatpush1.msra.mxu0 0.0
        %2719 = vmatprep.subr.mxu0 0.0
        %2720 = vmatpush1.msra.mxu0 0.0
        %2721 = vmatprep.subr.mxu0 0.0
        %2722 = vmatpush1.msra.mxu0 0.0
        %2723 = vmatprep.subr.mxu0 0.0
        %2724 = vmatpush1.msra.mxu0 0.0
        %2725 = vmatprep.subr.mxu0 0.0
        %2726 = vmatpush1.msra.mxu0 0.0
        %2727 = vmatprep.subr.mxu0 0.0
        %2728 = vmatpush1.msra.mxu0 0.0
        %2729 = vmatprep.subr.mxu0 0.0
        %2730 = vmatpush1.msra.mxu0 0.0
        %2731 = vmatprep.subr.mxu0 0.0
        %2732 = vmatpush1.msra.mxu0 0.0
        %2733 = vmatprep.subr.mxu0 0.0
        %2734 = vmatpush1.msra.mxu0 0.0
        %2735 = vmatprep.subr.mxu0 0.0
        %2736 = vmatpush1.msra.mxu0 0.0
        %2737 = vmatprep.subr.mxu0 0.0
        %2738 = vmatpush1.msra.mxu0 0.0
        %2739 = vmatprep.subr.mxu0 0.0
        %2740 = vmatpush1.msra.mxu0 0.0
        %2741 = vmatprep.subr.mxu0 0.0
        %2742 = vmatpush1.msra.mxu0 0.0
        %2743 = vmatprep.subr.mxu0 0.0
        %2744 = vmatpush1.msra.mxu0 0.0
        %2745 = vmatprep.subr.mxu0 0.0
        %2746 = vmatpush1.msra.mxu0 0.0
        %2747 = vmatprep.subr.mxu0 0.0
        %2748 = vmatpush1.msra.mxu0 0.0
        %2749 = vmatprep.subr.mxu0 0.0
        %2750 = vmatpush1.msra.mxu0 0.0
        %2751 = vmatprep.subr.mxu0 0.0
        %2752 = vmatpush1.msra.mxu0 0.0
        %2753 = vmatprep.subr.mxu0 0.0
        %2754 = vmatpush1.msra.mxu0 0.0
        %2755 = vmatprep.subr.mxu0 0.0
        %2756 = vmatpush1.msra.mxu0 0.0
        %2757 = vmatprep.subr.mxu0 0.0
        %2758 = vmatpush1.msra.mxu0 0.0
        %2759 = vmatprep.subr.mxu0 0.0
        %2760 = vmatpush1.msra.mxu0 0.0
        %2761 = vmatprep.subr.mxu0 0.0
        %2762 = vmatpush1.msra.mxu0 0.0
        %2763 = vmatprep.subr.mxu0 0.0
        %2764 = vmatpush1.msra.mxu0 0.0
        %2765 = vmatprep.subr.mxu0 0.0
        %2766 = vmatpush1.msra.mxu0 0.0
        %2767 = vmatprep.subr.mxu0 0.0
        %2768 = vmatpush1.msra.mxu0 0.0
        %2769 = vmatprep.subr.mxu0 0.0
        %2770 = vmatpush1.msra.mxu0 0.0
        %2771 = vmatprep.subr.mxu0 0.0
        %2772 = vmatpush1.msra.mxu0 0.0
        %2773 = vmatprep.subr.mxu0 0.0
        %2774 = vmatpush1.msra.mxu0 0.0
        %2775 = vmatprep.subr.mxu0 0.0
        %2776 = vmatpush1.msra.mxu0 0.0
        %2777 = vmatprep.subr.mxu0 0.0
        %2778 = vmatpush1.msra.mxu0 0.0
        %2779 = vmatprep.mubr.f32.mxu0 0.0
        %2780 = vmatmul.mubr.f32.gmra.mrb[0].mxu0 %v2713
        %v2781 = vpop.f32.mrb[0].mxu0
        %v2782 = vadd.f32 0.0, %v2781
        %v2783 = vpop.f32.mrb[0].mxu0
        %2784 = vdwg.mxu0
        %v2786 = vrot.slane %v2782, 4
        %v2787 = vrot.slane %v2782, 5
        %v2790 = vadd.f32 %v1513, %v2786
        %v2791 = vadd.f32 %v1514, %v2787
        %v2792 = vsub.f32 0.0, %v2790
        %v2793 = vsub.f32 0.0, %v2791
        %v2794 = vmul.f32 %v2792, 1.442695
        %v2795 = vpow.pop %v2794
        %v2796 = vmul.f32 %v2793, 1.442695
        %v2797 = vpow.pop %v2796
        %v2798 = vadd.f32 %v2795, 1.0
        %v2799 = vadd.f32 %v2797, 1.0
        %v2800 = vrcp.pop %v2798
        %v2801 = vmul.f32 1.0, %v2800
        %v2802 = vrcp.pop %v2799
        %v2803 = vmul.f32 1.0, %v2802
        %v2804 = vtanh.pop %v2790
        %v2805 = vtanh.pop %v2791
        %v2808 = vrot.slane %v2552, 7
        %v2809 = vrot.slane %v2553, 7
        %v2812 = vmul.f32 %v2801, %v2808
        %v2813 = vmul.f32 %v2803, %v2809
        %2816 = vrot.lane.b32.xlu0 %v2804, 112
        %v2817 = vpop.permute.xlu0 %2816
        %2818 = vrot.lane.b32.xlu0 %v2805, 112
        %v2819 = vpop.permute.xlu0 %2818
        %v2822 = vmul.f32 %v2801, %v2817
        %v2823 = vmul.f32 %v2803, %v2819
        %2826 = vrot.lane.b32.xlu0 %v2822, 8
        %v2827 = vpop.permute.xlu0 %2826
        %2828 = vrot.lane.b32.xlu0 %v2823, 8
        %v2829 = vpop.permute.xlu0 %2828
        %v2832 = vadd.f32 %v2812, %v2827
        %v2833 = vadd.f32 %v2813, %v2829
        %v2834 = vtanh.pop %v2832
        %v2835 = vtanh.pop %v2833
        %2838 = vrot.lane.b32.xlu0 %v2834, 16
        %v2839 = vpop.permute.xlu0 %2838
        %2840 = vrot.lane.b32.xlu0 %v2835, 16
        %v2841 = vpop.permute.xlu0 %2840
        %v2844 = vmul.f32 %v2801, %v2839
        %v2845 = vmul.f32 %v2803, %v2841
        %v2848 = vrot.slane %v2704, 4
        %v2849 = vrot.slane %v2705, 3
        %v2850 = vsel %vm1871, %v2849, %v2848
        %2851 = vrot.lane.b32.xlu0 %v2850, 104
        %v2852 = vpop.permute.xlu0 %2851
        %v2853 = vsel %vm1353, %v2852, 0
        %2855 = vmatprep.subr.mxu0 0.0
        %2856 = vmatpush1.msra.mxu0 %v1615
        %2857 = vmatprep.subr.mxu0 0.0
        %2858 = vmatpush1.msra.mxu0 0.0
        %2859 = vmatprep.subr.mxu0 0.0
        %2860 = vmatpush1.msra.mxu0 0.0
        %2861 = vmatprep.subr.mxu0 0.0
        %2862 = vmatpush1.msra.mxu0 0.0
        %2863 = vmatprep.subr.mxu0 0.0
        %2864 = vmatpush1.msra.mxu0 0.0
        %2865 = vmatprep.subr.mxu0 0.0
        %2866 = vmatpush1.msra.mxu0 0.0
        %2867 = vmatprep.subr.mxu0 0.0
        %2868 = vmatpush1.msra.mxu0 0.0
        %2869 = vmatprep.subr.mxu0 0.0
        %2870 = vmatpush1.msra.mxu0 0.0
        %2871 = vmatprep.subr.mxu0 0.0
        %2872 = vmatpush1.msra.mxu0 0.0
        %2873 = vmatprep.subr.mxu0 0.0
        %2874 = vmatpush1.msra.mxu0 0.0
        %2875 = vmatprep.subr.mxu0 0.0
        %2876 = vmatpush1.msra.mxu0 0.0
        %2877 = vmatprep.subr.mxu0 0.0
        %2878 = vmatpush1.msra.mxu0 0.0
        %2879 = vmatprep.subr.mxu0 0.0
        %2880 = vmatpush1.msra.mxu0 0.0
        %2881 = vmatprep.subr.mxu0 0.0
        %2882 = vmatpush1.msra.mxu0 0.0
        %2883 = vmatprep.subr.mxu0 0.0
        %2884 = vmatpush1.msra.mxu0 0.0
        %2885 = vmatprep.subr.mxu0 0.0
        %2886 = vmatpush1.msra.mxu0 0.0
        %2887 = vmatprep.subr.mxu0 0.0
        %2888 = vmatpush1.msra.mxu0 0.0
        %2889 = vmatprep.subr.mxu0 0.0
        %2890 = vmatpush1.msra.mxu0 0.0
        %2891 = vmatprep.subr.mxu0 0.0
        %2892 = vmatpush1.msra.mxu0 0.0
        %2893 = vmatprep.subr.mxu0 0.0
        %2894 = vmatpush1.msra.mxu0 0.0
        %2895 = vmatprep.subr.mxu0 0.0
        %2896 = vmatpush1.msra.mxu0 0.0
        %2897 = vmatprep.subr.mxu0 0.0
        %2898 = vmatpush1.msra.mxu0 0.0
        %2899 = vmatprep.subr.mxu0 0.0
        %2900 = vmatpush1.msra.mxu0 0.0
        %2901 = vmatprep.subr.mxu0 0.0
        %2902 = vmatpush1.msra.mxu0 0.0
        %2903 = vmatprep.subr.mxu0 0.0
        %2904 = vmatpush1.msra.mxu0 0.0
        %2905 = vmatprep.subr.mxu0 0.0
        %2906 = vmatpush1.msra.mxu0 0.0
        %2907 = vmatprep.subr.mxu0 0.0
        %2908 = vmatpush1.msra.mxu0 0.0
        %2909 = vmatprep.subr.mxu0 0.0
        %2910 = vmatpush1.msra.mxu0 0.0
        %2911 = vmatprep.subr.mxu0 0.0
        %2912 = vmatpush1.msra.mxu0 0.0
        %2913 = vmatprep.subr.mxu0 0.0
        %2914 = vmatpush1.msra.mxu0 0.0
        %2915 = vmatprep.subr.mxu0 0.0
        %2916 = vmatpush1.msra.mxu0 0.0
        %2917 = vmatprep.subr.mxu0 0.0
        %2918 = vmatpush1.msra.mxu0 0.0
        %2919 = vmatprep.mubr.f32.mxu0 0.0
        %2920 = vmatmul.mubr.f32.gmra.mrb[0].mxu0 %v2853
        %v2921 = vpop.f32.mrb[0].mxu0
        %v2922 = vadd.f32 0.0, %v2921
        %v2923 = vpop.f32.mrb[0].mxu0
        %2924 = vdwg.mxu0
        %v2926 = vrot.slane %v2922, 5
        %v2927 = vrot.slane %v2922, 6
        %v2930 = vadd.f32 %v1612, %v2926
        %v2931 = vadd.f32 %v1613, %v2927
        %v2932 = vsub.f32 0.0, %v2930
        %v2933 = vsub.f32 0.0, %v2931
        %v2934 = vmul.f32 %v2932, 1.442695
        %v2935 = vpow.pop %v2934
        %v2936 = vmul.f32 %v2933, 1.442695
        %v2937 = vpow.pop %v2936
        %v2938 = vadd.f32 %v2935, 1.0
        %v2939 = vadd.f32 %v2937, 1.0
        %v2940 = vrcp.pop %v2938
        %v2941 = vmul.f32 1.0, %v2940
        %v2942 = vrcp.pop %v2939
        %v2943 = vmul.f32 1.0, %v2942
        %v2944 = vtanh.pop %v2930
        %v2945 = vtanh.pop %v2931
        %v2948 = vrot.slane %v2692, 1
        %v2949 = vrot.slane %v2693, 1
        %v2952 = vmul.f32 %v2941, %v2948
        %v2953 = vmul.f32 %v2943, %v2949
        %2956 = vrot.lane.b32.xlu0 %v2944, 112
        %v2957 = vpop.permute.xlu0 %2956
        %2958 = vrot.lane.b32.xlu0 %v2945, 112
        %v2959 = vpop.permute.xlu0 %2958
        %v2962 = vmul.f32 %v2941, %v2957
        %v2963 = vmul.f32 %v2943, %v2959
        %2966 = vrot.lane.b32.xlu0 %v2962, 8
        %v2967 = vpop.permute.xlu0 %2966
        %2968 = vrot.lane.b32.xlu0 %v2963, 8
        %v2969 = vpop.permute.xlu0 %2968
        %v2972 = vadd.f32 %v2952, %v2967
        %v2973 = vadd.f32 %v2953, %v2969
        %v2974 = vtanh.pop %v2972
        %v2975 = vtanh.pop %v2973
        %2978 = vrot.lane.b32.xlu0 %v2974, 16
        %v2979 = vpop.permute.xlu0 %2978
        %2980 = vrot.lane.b32.xlu0 %v2975, 16
        %v2981 = vpop.permute.xlu0 %2980
        %v2984 = vmul.f32 %v2941, %v2979
        %v2985 = vmul.f32 %v2943, %v2981
        %v2988 = vrot.slane %v2844, 4
        %v2989 = vrot.slane %v2845, 3
        %v2990 = vsel %vm1871, %v2989, %v2988
        %2991 = vrot.lane.b32.xlu0 %v2990, 104
        %v2992 = vpop.permute.xlu0 %2991
        %v2993 = vsel %vm1353, %v2992, 0
        %2995 = vmatprep.subr.mxu0 0.0
        %2996 = vmatpush1.msra.mxu0 %v1614
        %2997 = vmatprep.subr.mxu0 0.0
        %2998 = vmatpush1.msra.mxu0 0.0
        %2999 = vmatprep.subr.mxu0 0.0
        %3000 = vmatpush1.msra.mxu0 0.0
        %3001 = vmatprep.subr.mxu0 0.0
        %3002 = vmatpush1.msra.mxu0 0.0
        %3003 = vmatprep.subr.mxu0 0.0
        %3004 = vmatpush1.msra.mxu0 0.0
        %3005 = vmatprep.subr.mxu0 0.0
        %3006 = vmatpush1.msra.mxu0 0.0
        %3007 = vmatprep.subr.mxu0 0.0
        %3008 = vmatpush1.msra.mxu0 0.0
        %3009 = vmatprep.subr.mxu0 0.0
        %3010 = vmatpush1.msra.mxu0 0.0
        %3011 = vmatprep.subr.mxu0 0.0
        %3012 = vmatpush1.msra.mxu0 0.0
        %3013 = vmatprep.subr.mxu0 0.0
        %3014 = vmatpush1.msra.mxu0 0.0
        %3015 = vmatprep.subr.mxu0 0.0
        %3016 = vmatpush1.msra.mxu0 0.0
        %3017 = vmatprep.subr.mxu0 0.0
        %3018 = vmatpush1.msra.mxu0 0.0
        %3019 = vmatprep.subr.mxu0 0.0
        %3020 = vmatpush1.msra.mxu0 0.0
        %3021 = vmatprep.subr.mxu0 0.0
        %3022 = vmatpush1.msra.mxu0 0.0
        %3023 = vmatprep.subr.mxu0 0.0
        %3024 = vmatpush1.msra.mxu0 0.0
        %3025 = vmatprep.subr.mxu0 0.0
        %3026 = vmatpush1.msra.mxu0 0.0
        %3027 = vmatprep.subr.mxu0 0.0
        %3028 = vmatpush1.msra.mxu0 0.0
        %3029 = vmatprep.subr.mxu0 0.0
        %3030 = vmatpush1.msra.mxu0 0.0
        %3031 = vmatprep.subr.mxu0 0.0
        %3032 = vmatpush1.msra.mxu0 0.0
        %3033 = vmatprep.subr.mxu0 0.0
        %3034 = vmatpush1.msra.mxu0 0.0
        %3035 = vmatprep.subr.mxu0 0.0
        %3036 = vmatpush1.msra.mxu0 0.0
        %3037 = vmatprep.subr.mxu0 0.0
        %3038 = vmatpush1.msra.mxu0 0.0
        %3039 = vmatprep.subr.mxu0 0.0
        %3040 = vmatpush1.msra.mxu0 0.0
        %3041 = vmatprep.subr.mxu0 0.0
        %3042 = vmatpush1.msra.mxu0 0.0
        %3043 = vmatprep.subr.mxu0 0.0
        %3044 = vmatpush1.msra.mxu0 0.0
        %3045 = vmatprep.subr.mxu0 0.0
        %3046 = vmatpush1.msra.mxu0 0.0
        %3047 = vmatprep.subr.mxu0 0.0
        %3048 = vmatpush1.msra.mxu0 0.0
        %3049 = vmatprep.subr.mxu0 0.0
        %3050 = vmatpush1.msra.mxu0 0.0
        %3051 = vmatprep.subr.mxu0 0.0
        %3052 = vmatpush1.msra.mxu0 0.0
        %3053 = vmatprep.subr.mxu0 0.0
        %3054 = vmatpush1.msra.mxu0 0.0
        %3055 = vmatprep.subr.mxu0 0.0
        %3056 = vmatpush1.msra.mxu0 0.0
        %3057 = vmatprep.subr.mxu0 0.0
        %3058 = vmatpush1.msra.mxu0 0.0
        %3059 = vmatprep.mubr.f32.mxu0 0.0
        %3060 = vmatmul.mubr.f32.gmra.mrb[0].mxu0 %v2993
        %v3061 = vpop.f32.mrb[0].mxu0
        %v3062 = vadd.f32 0.0, %v3061
        %v3063 = vpop.f32.mrb[0].mxu0
        %3064 = vdwg.mxu0
        %v3066 = vrot.slane %v3062, 3
        %v3067 = vrot.slane %v3062, 4
        %v3070 = vadd.f32 %v1513, %v3066
        %v3071 = vadd.f32 %v1514, %v3067
        %v3072 = vsub.f32 0.0, %v3070
        %v3073 = vsub.f32 0.0, %v3071
        %v3074 = vmul.f32 %v3072, 1.442695
        %v3075 = vpow.pop %v3074
        %v3076 = vmul.f32 %v3073, 1.442695
        %v3077 = vpow.pop %v3076
        %v3078 = vadd.f32 %v3075, 1.0
        %v3079 = vadd.f32 %v3077, 1.0
        %v3080 = vrcp.pop %v3078
        %v3081 = vmul.f32 1.0, %v3080
        %v3082 = vrcp.pop %v3079
        %v3083 = vmul.f32 1.0, %v3082
        %v3084 = vtanh.pop %v3070
        %v3085 = vtanh.pop %v3071
        %v3088 = vrot.slane %v2832, 7
        %v3089 = vrot.slane %v2833, 7
        %v3092 = vmul.f32 %v3081, %v3088
        %v3093 = vmul.f32 %v3083, %v3089
        %3096 = vrot.lane.b32.xlu0 %v3084, 112
        %v3097 = vpop.permute.xlu0 %3096
        %3098 = vrot.lane.b32.xlu0 %v3085, 112
        %v3099 = vpop.permute.xlu0 %3098
        %v3102 = vmul.f32 %v3081, %v3097
        %v3103 = vmul.f32 %v3083, %v3099
        %3106 = vrot.lane.b32.xlu0 %v3102, 8
        %v3107 = vpop.permute.xlu0 %3106
        %3108 = vrot.lane.b32.xlu0 %v3103, 8
        %v3109 = vpop.permute.xlu0 %3108
        %v3112 = vadd.f32 %v3092, %v3107
        %v3113 = vadd.f32 %v3093, %v3109
        %v3114 = vtanh.pop %v3112
        %v3115 = vtanh.pop %v3113
        %3118 = vrot.lane.b32.xlu0 %v3114, 16
        %v3119 = vpop.permute.xlu0 %3118
        %3120 = vrot.lane.b32.xlu0 %v3115, 16
        %v3121 = vpop.permute.xlu0 %3120
        %v3124 = vmul.f32 %v3081, %v3119
        %v3125 = vmul.f32 %v3083, %v3121
        %v3128 = vrot.slane %v2984, 3
        %v3129 = vrot.slane %v2985, 2
        %v3130 = vsel %vm1871, %v3129, %v3128
        %3131 = vrot.lane.b32.xlu0 %v3130, 104
        %v3132 = vpop.permute.xlu0 %3131
        %v3133 = vsel %vm1353, %v3132, 0
        %3135 = vmatprep.subr.mxu0 0.0
        %3136 = vmatpush1.msra.mxu0 %v1615
        %3137 = vmatprep.subr.mxu0 0.0
        %3138 = vmatpush1.msra.mxu0 0.0
        %3139 = vmatprep.subr.mxu0 0.0
        %3140 = vmatpush1.msra.mxu0 0.0
        %3141 = vmatprep.subr.mxu0 0.0
        %3142 = vmatpush1.msra.mxu0 0.0
        %3143 = vmatprep.subr.mxu0 0.0
        %3144 = vmatpush1.msra.mxu0 0.0
        %3145 = vmatprep.subr.mxu0 0.0
        %3146 = vmatpush1.msra.mxu0 0.0
        %3147 = vmatprep.subr.mxu0 0.0
        %3148 = vmatpush1.msra.mxu0 0.0
        %3149 = vmatprep.subr.mxu0 0.0
        %3150 = vmatpush1.msra.mxu0 0.0
        %3151 = vmatprep.subr.mxu0 0.0
        %3152 = vmatpush1.msra.mxu0 0.0
        %3153 = vmatprep.subr.mxu0 0.0
        %3154 = vmatpush1.msra.mxu0 0.0
        %3155 = vmatprep.subr.mxu0 0.0
        %3156 = vmatpush1.msra.mxu0 0.0
        %3157 = vmatprep.subr.mxu0 0.0
        %3158 = vmatpush1.msra.mxu0 0.0
        %3159 = vmatprep.subr.mxu0 0.0
        %3160 = vmatpush1.msra.mxu0 0.0
        %3161 = vmatprep.subr.mxu0 0.0
        %3162 = vmatpush1.msra.mxu0 0.0
        %3163 = vmatprep.subr.mxu0 0.0
        %3164 = vmatpush1.msra.mxu0 0.0
        %3165 = vmatprep.subr.mxu0 0.0
        %3166 = vmatpush1.msra.mxu0 0.0
        %3167 = vmatprep.subr.mxu0 0.0
        %3168 = vmatpush1.msra.mxu0 0.0
        %3169 = vmatprep.subr.mxu0 0.0
        %3170 = vmatpush1.msra.mxu0 0.0
        %3171 = vmatprep.subr.mxu0 0.0
        %3172 = vmatpush1.msra.mxu0 0.0
        %3173 = vmatprep.subr.mxu0 0.0
        %3174 = vmatpush1.msra.mxu0 0.0
        %3175 = vmatprep.subr.mxu0 0.0
        %3176 = vmatpush1.msra.mxu0 0.0
        %3177 = vmatprep.subr.mxu0 0.0
        %3178 = vmatpush1.msra.mxu0 0.0
        %3179 = vmatprep.subr.mxu0 0.0
        %3180 = vmatpush1.msra.mxu0 0.0
        %3181 = vmatprep.subr.mxu0 0.0
        %3182 = vmatpush1.msra.mxu0 0.0
        %3183 = vmatprep.subr.mxu0 0.0
        %3184 = vmatpush1.msra.mxu0 0.0
        %3185 = vmatprep.subr.mxu0 0.0
        %3186 = vmatpush1.msra.mxu0 0.0
        %3187 = vmatprep.subr.mxu0 0.0
        %3188 = vmatpush1.msra.mxu0 0.0
        %3189 = vmatprep.subr.mxu0 0.0
        %3190 = vmatpush1.msra.mxu0 0.0
        %3191 = vmatprep.subr.mxu0 0.0
        %3192 = vmatpush1.msra.mxu0 0.0
        %3193 = vmatprep.subr.mxu0 0.0
        %3194 = vmatpush1.msra.mxu0 0.0
        %3195 = vmatprep.subr.mxu0 0.0
        %3196 = vmatpush1.msra.mxu0 0.0
        %3197 = vmatprep.subr.mxu0 0.0
        %3198 = vmatpush1.msra.mxu0 0.0
        %3199 = vmatprep.mubr.f32.mxu0 0.0
        %3200 = vmatmul.mubr.f32.gmra.mrb[0].mxu0 %v3133
        %v3201 = vpop.f32.mrb[0].mxu0
        %v3202 = vadd.f32 0.0, %v3201
        %v3203 = vpop.f32.mrb[0].mxu0
        %3204 = vdwg.mxu0
        %v3206 = vrot.slane %v3202, 6
        %v3207 = vrot.slane %v3202, 7
        %v3210 = vadd.f32 %v1612, %v3206
        %v3211 = vadd.f32 %v1613, %v3207
        %v3212 = vsub.f32 0.0, %v3210
        %v3213 = vsub.f32 0.0, %v3211
        %v3214 = vmul.f32 %v3212, 1.442695
        %v3215 = vpow.pop %v3214
        %v3216 = vmul.f32 %v3213, 1.442695
        %v3217 = vpow.pop %v3216
        %v3218 = vadd.f32 %v3215, 1.0
        %v3219 = vadd.f32 %v3217, 1.0
        %v3220 = vrcp.pop %v3218
        %v3221 = vmul.f32 1.0, %v3220
        %v3222 = vrcp.pop %v3219
        %v3223 = vmul.f32 1.0, %v3222
        %v3224 = vtanh.pop %v3210
        %v3225 = vtanh.pop %v3211
        %v3228 = vrot.slane %v2972, 1
        %v3229 = vrot.slane %v2973, 1
        %v3232 = vmul.f32 %v3221, %v3228
        %v3233 = vmul.f32 %v3223, %v3229
        %3236 = vrot.lane.b32.xlu0 %v3224, 112
        %v3237 = vpop.permute.xlu0 %3236
        %3238 = vrot.lane.b32.xlu0 %v3225, 112
        %v3239 = vpop.permute.xlu0 %3238
        %v3242 = vmul.f32 %v3221, %v3237
        %v3243 = vmul.f32 %v3223, %v3239
        %3246 = vrot.lane.b32.xlu0 %v3242, 8
        %v3247 = vpop.permute.xlu0 %3246
        %3248 = vrot.lane.b32.xlu0 %v3243, 8
        %v3249 = vpop.permute.xlu0 %3248
        %v3252 = vadd.f32 %v3232, %v3247
        %v3253 = vadd.f32 %v3233, %v3249
        %v3254 = vtanh.pop %v3252
        %v3255 = vtanh.pop %v3253
        %3258 = vrot.lane.b32.xlu0 %v3254, 16
        %v3259 = vpop.permute.xlu0 %3258
        %3260 = vrot.lane.b32.xlu0 %v3255, 16
        %v3261 = vpop.permute.xlu0 %3260
        %v3264 = vmul.f32 %v3221, %v3259
        %v3265 = vmul.f32 %v3223, %v3261
        %v3268 = vrot.slane %v3124, 5
        %v3269 = vrot.slane %v3125, 4
        %v3270 = vsel %vm1871, %v3269, %v3268
        %3271 = vrot.lane.b32.xlu0 %v3270, 104
        %v3272 = vpop.permute.xlu0 %3271
        %v3273 = vsel %vm1353, %v3272, 0
        %3275 = vmatprep.subr.mxu0 0.0
        %3276 = vmatpush1.msra.mxu0 %v1614
        %3277 = vmatprep.subr.mxu0 0.0
        %3278 = vmatpush1.msra.mxu0 0.0
        %3279 = vmatprep.subr.mxu0 0.0
        %3280 = vmatpush1.msra.mxu0 0.0
        %3281 = vmatprep.subr.mxu0 0.0
        %3282 = vmatpush1.msra.mxu0 0.0
        %3283 = vmatprep.subr.mxu0 0.0
        %3284 = vmatpush1.msra.mxu0 0.0
        %3285 = vmatprep.subr.mxu0 0.0
        %3286 = vmatpush1.msra.mxu0 0.0
        %3287 = vmatprep.subr.mxu0 0.0
        %3288 = vmatpush1.msra.mxu0 0.0
        %3289 = vmatprep.subr.mxu0 0.0
        %3290 = vmatpush1.msra.mxu0 0.0
        %3291 = vmatprep.subr.mxu0 0.0
        %3292 = vmatpush1.msra.mxu0 0.0
        %3293 = vmatprep.subr.mxu0 0.0
        %3294 = vmatpush1.msra.mxu0 0.0
        %3295 = vmatprep.subr.mxu0 0.0
        %3296 = vmatpush1.msra.mxu0 0.0
        %3297 = vmatprep.subr.mxu0 0.0
        %3298 = vmatpush1.msra.mxu0 0.0
        %3299 = vmatprep.subr.mxu0 0.0
        %3300 = vmatpush1.msra.mxu0 0.0
        %3301 = vmatprep.subr.mxu0 0.0
        %3302 = vmatpush1.msra.mxu0 0.0
        %3303 = vmatprep.subr.mxu0 0.0
        %3304 = vmatpush1.msra.mxu0 0.0
        %3305 = vmatprep.subr.mxu0 0.0
        %3306 = vmatpush1.msra.mxu0 0.0
        %3307 = vmatprep.subr.mxu0 0.0
        %3308 = vmatpush1.msra.mxu0 0.0
        %3309 = vmatprep.subr.mxu0 0.0
        %3310 = vmatpush1.msra.mxu0 0.0
        %3311 = vmatprep.subr.mxu0 0.0
        %3312 = vmatpush1.msra.mxu0 0.0
        %3313 = vmatprep.subr.mxu0 0.0
        %3314 = vmatpush1.msra.mxu0 0.0
        %3315 = vmatprep.subr.mxu0 0.0
        %3316 = vmatpush1.msra.mxu0 0.0
        %3317 = vmatprep.subr.mxu0 0.0
        %3318 = vmatpush1.msra.mxu0 0.0
        %3319 = vmatprep.subr.mxu0 0.0
        %3320 = vmatpush1.msra.mxu0 0.0
        %3321 = vmatprep.subr.mxu0 0.0
        %3322 = vmatpush1.msra.mxu0 0.0
        %3323 = vmatprep.subr.mxu0 0.0
        %3324 = vmatpush1.msra.mxu0 0.0
        %3325 = vmatprep.subr.mxu0 0.0
        %3326 = vmatpush1.msra.mxu0 0.0
        %3327 = vmatprep.subr.mxu0 0.0
        %3328 = vmatpush1.msra.mxu0 0.0
        %3329 = vmatprep.subr.mxu0 0.0
        %3330 = vmatpush1.msra.mxu0 0.0
        %3331 = vmatprep.subr.mxu0 0.0
        %3332 = vmatpush1.msra.mxu0 0.0
        %3333 = vmatprep.subr.mxu0 0.0
        %3334 = vmatpush1.msra.mxu0 0.0
        %3335 = vmatprep.subr.mxu0 0.0
        %3336 = vmatpush1.msra.mxu0 0.0
        %3337 = vmatprep.subr.mxu0 0.0
        %3338 = vmatpush1.msra.mxu0 0.0
        %3339 = vmatprep.mubr.f32.mxu0 0.0
        %3340 = vmatmul.mubr.f32.gmra.mrb[0].mxu0 %v3273
        %v3341 = vpop.f32.mrb[0].mxu0
        %v3342 = vadd.f32 0.0, %v3341
        %v3343 = vpop.f32.mrb[0].mxu0
        %3344 = vdwg.mxu0
        %v3346 = vrot.slane %v3342, 2
        %v3347 = vrot.slane %v3342, 3
        %v3350 = vadd.f32 %v1513, %v3346
        %v3351 = vadd.f32 %v1514, %v3347
        %v3352 = vsub.f32 0.0, %v3350
        %v3353 = vsub.f32 0.0, %v3351
        %v3354 = vmul.f32 %v3352, 1.442695
        %v3355 = vpow.pop %v3354
        %v3356 = vmul.f32 %v3353, 1.442695
        %v3357 = vpow.pop %v3356
        %v3358 = vadd.f32 %v3355, 1.0
        %v3359 = vadd.f32 %v3357, 1.0
        %v3360 = vrcp.pop %v3358
        %v3361 = vmul.f32 1.0, %v3360
        %v3362 = vrcp.pop %v3359
        %v3363 = vmul.f32 1.0, %v3362
        %v3364 = vtanh.pop %v3350
        %v3365 = vtanh.pop %v3351
        %v3368 = vrot.slane %v3112, 7
        %v3369 = vrot.slane %v3113, 7
        %v3372 = vmul.f32 %v3361, %v3368
        %v3373 = vmul.f32 %v3363, %v3369
        %3376 = vrot.lane.b32.xlu0 %v3364, 112
        %v3377 = vpop.permute.xlu0 %3376
        %3378 = vrot.lane.b32.xlu0 %v3365, 112
        %v3379 = vpop.permute.xlu0 %3378
        %v3382 = vmul.f32 %v3361, %v3377
        %v3383 = vmul.f32 %v3363, %v3379
        %3386 = vrot.lane.b32.xlu0 %v3382, 8
        %v3387 = vpop.permute.xlu0 %3386
        %3388 = vrot.lane.b32.xlu0 %v3383, 8
        %v3389 = vpop.permute.xlu0 %3388
        %v3392 = vadd.f32 %v3372, %v3387
        %v3393 = vadd.f32 %v3373, %v3389
        %v3394 = vtanh.pop %v3392
        %v3395 = vtanh.pop %v3393
        %3398 = vrot.lane.b32.xlu0 %v3394, 16
        %v3399 = vpop.permute.xlu0 %3398
        %3400 = vrot.lane.b32.xlu0 %v3395, 16
        %v3401 = vpop.permute.xlu0 %3400
        %v3404 = vmul.f32 %v3361, %v3399
        %v3405 = vmul.f32 %v3363, %v3401
        %v3408 = vrot.slane %v3264, 2
        %v3409 = vrot.slane %v3265, 1
        %v3410 = vsel %vm1871, %v3409, %v3408
        %3411 = vrot.lane.b32.xlu0 %v3410, 104
        %v3412 = vpop.permute.xlu0 %3411
        %v3413 = vsel %vm1353, %v3412, 0
        %3415 = vmatprep.subr.mxu0 0.0
        %3416 = vmatpush1.msra.mxu0 %v1615
        %3417 = vmatprep.subr.mxu0 0.0
        %3418 = vmatpush1.msra.mxu0 0.0
        %3419 = vmatprep.subr.mxu0 0.0
        %3420 = vmatpush1.msra.mxu0 0.0
        %3421 = vmatprep.subr.mxu0 0.0
        %3422 = vmatpush1.msra.mxu0 0.0
        %3423 = vmatprep.subr.mxu0 0.0
        %3424 = vmatpush1.msra.mxu0 0.0
        %3425 = vmatprep.subr.mxu0 0.0
        %3426 = vmatpush1.msra.mxu0 0.0
        %3427 = vmatprep.subr.mxu0 0.0
        %3428 = vmatpush1.msra.mxu0 0.0
        %3429 = vmatprep.subr.mxu0 0.0
        %3430 = vmatpush1.msra.mxu0 0.0
        %3431 = vmatprep.subr.mxu0 0.0
        %3432 = vmatpush1.msra.mxu0 0.0
        %3433 = vmatprep.subr.mxu0 0.0
        %3434 = vmatpush1.msra.mxu0 0.0
        %3435 = vmatprep.subr.mxu0 0.0
        %3436 = vmatpush1.msra.mxu0 0.0
        %3437 = vmatprep.subr.mxu0 0.0
        %3438 = vmatpush1.msra.mxu0 0.0
        %3439 = vmatprep.subr.mxu0 0.0
        %3440 = vmatpush1.msra.mxu0 0.0
        %3441 = vmatprep.subr.mxu0 0.0
        %3442 = vmatpush1.msra.mxu0 0.0
        %3443 = vmatprep.subr.mxu0 0.0
        %3444 = vmatpush1.msra.mxu0 0.0
        %3445 = vmatprep.subr.mxu0 0.0
        %3446 = vmatpush1.msra.mxu0 0.0
        %3447 = vmatprep.subr.mxu0 0.0
        %3448 = vmatpush1.msra.mxu0 0.0
        %3449 = vmatprep.subr.mxu0 0.0
        %3450 = vmatpush1.msra.mxu0 0.0
        %3451 = vmatprep.subr.mxu0 0.0
        %3452 = vmatpush1.msra.mxu0 0.0
        %3453 = vmatprep.subr.mxu0 0.0
        %3454 = vmatpush1.msra.mxu0 0.0
        %3455 = vmatprep.subr.mxu0 0.0
        %3456 = vmatpush1.msra.mxu0 0.0
        %3457 = vmatprep.subr.mxu0 0.0
        %3458 = vmatpush1.msra.mxu0 0.0
        %3459 = vmatprep.subr.mxu0 0.0
        %3460 = vmatpush1.msra.mxu0 0.0
        %3461 = vmatprep.subr.mxu0 0.0
        %3462 = vmatpush1.msra.mxu0 0.0
        %3463 = vmatprep.subr.mxu0 0.0
        %3464 = vmatpush1.msra.mxu0 0.0
        %3465 = vmatprep.subr.mxu0 0.0
        %3466 = vmatpush1.msra.mxu0 0.0
        %3467 = vmatprep.subr.mxu0 0.0
        %3468 = vmatpush1.msra.mxu0 0.0
        %3469 = vmatprep.subr.mxu0 0.0
        %3470 = vmatpush1.msra.mxu0 0.0
        %3471 = vmatprep.subr.mxu0 0.0
        %3472 = vmatpush1.msra.mxu0 0.0
        %3473 = vmatprep.subr.mxu0 0.0
        %3474 = vmatpush1.msra.mxu0 0.0
        %3475 = vmatprep.subr.mxu0 0.0
        %3476 = vmatpush1.msra.mxu0 0.0
        %3477 = vmatprep.subr.mxu0 0.0
        %3478 = vmatpush1.msra.mxu0 0.0
        %3479 = vmatprep.mubr.f32.mxu0 0.0
        %3480 = vmatmul.mubr.f32.gmra.mrb[0].mxu0 %v3413
        %v3481 = vpop.f32.mrb[0].mxu0
        %v3482 = vadd.f32 0.0, %v3481
        %v3483 = vpop.f32.mrb[0].mxu0
        %3484 = vdwg.mxu0
        %v3486 = vrot.slane %v3482, 7
        %v3489 = vadd.f32 %v1612, %v3486
        %v3490 = vadd.f32 %v1613, %v3482
        %v3491 = vsub.f32 0.0, %v3489
        %v3492 = vsub.f32 0.0, %v3490
        %v3493 = vmul.f32 %v3491, 1.442695
        %v3494 = vpow.pop %v3493
        %v3495 = vmul.f32 %v3492, 1.442695
        %v3496 = vpow.pop %v3495
        %v3497 = vadd.f32 %v3494, 1.0
        %v3498 = vadd.f32 %v3496, 1.0
        %v3499 = vrcp.pop %v3497
        %v3500 = vmul.f32 1.0, %v3499
        %v3501 = vrcp.pop %v3498
        %v3502 = vmul.f32 1.0, %v3501
        %v3503 = vtanh.pop %v3489
        %v3504 = vtanh.pop %v3490
        %v3507 = vrot.slane %v3252, 1
        %v3508 = vrot.slane %v3253, 1
        %v3511 = vmul.f32 %v3500, %v3507
        %v3512 = vmul.f32 %v3502, %v3508
        %3515 = vrot.lane.b32.xlu0 %v3503, 112
        %v3516 = vpop.permute.xlu0 %3515
        %3517 = vrot.lane.b32.xlu0 %v3504, 112
        %v3518 = vpop.permute.xlu0 %3517
        %v3521 = vmul.f32 %v3500, %v3516
        %v3522 = vmul.f32 %v3502, %v3518
        %3525 = vrot.lane.b32.xlu0 %v3521, 8
        %v3526 = vpop.permute.xlu0 %3525
        %3527 = vrot.lane.b32.xlu0 %v3522, 8
        %v3528 = vpop.permute.xlu0 %3527
        %v3531 = vadd.f32 %v3511, %v3526
        %v3532 = vadd.f32 %v3512, %v3528
        %v3533 = vtanh.pop %v3531
        %v3534 = vtanh.pop %v3532
        %3537 = vrot.lane.b32.xlu0 %v3533, 16
        %v3538 = vpop.permute.xlu0 %3537
        %3539 = vrot.lane.b32.xlu0 %v3534, 16
        %v3540 = vpop.permute.xlu0 %3539
        %v3543 = vmul.f32 %v3500, %v3538
        %v3544 = vmul.f32 %v3502, %v3540
        %v3547 = vrot.slane %v3404, 6
        %v3548 = vrot.slane %v3405, 5
        %v3549 = vsel %vm1871, %v3548, %v3547
        %3550 = vrot.lane.b32.xlu0 %v3549, 104
        %v3551 = vpop.permute.xlu0 %3550
        %v3552 = vsel %vm1353, %v3551, 0
        %3554 = vmatprep.subr.mxu0 0.0
        %3555 = vmatpush1.msra.mxu0 %v1614
        %3556 = vmatprep.subr.mxu0 0.0
        %3557 = vmatpush1.msra.mxu0 0.0
        %3558 = vmatprep.subr.mxu0 0.0
        %3559 = vmatpush1.msra.mxu0 0.0
        %3560 = vmatprep.subr.mxu0 0.0
        %3561 = vmatpush1.msra.mxu0 0.0
        %3562 = vmatprep.subr.mxu0 0.0
        %3563 = vmatpush1.msra.mxu0 0.0
        %3564 = vmatprep.subr.mxu0 0.0
        %3565 = vmatpush1.msra.mxu0 0.0
        %3566 = vmatprep.subr.mxu0 0.0
        %3567 = vmatpush1.msra.mxu0 0.0
        %3568 = vmatprep.subr.mxu0 0.0
        %3569 = vmatpush1.msra.mxu0 0.0
        %3570 = vmatprep.subr.mxu0 0.0
        %3571 = vmatpush1.msra.mxu0 0.0
        %3572 = vmatprep.subr.mxu0 0.0
        %3573 = vmatpush1.msra.mxu0 0.0
        %3574 = vmatprep.subr.mxu0 0.0
        %3575 = vmatpush1.msra.mxu0 0.0
        %3576 = vmatprep.subr.mxu0 0.0
        %3577 = vmatpush1.msra.mxu0 0.0
        %3578 = vmatprep.subr.mxu0 0.0
        %3579 = vmatpush1.msra.mxu0 0.0
        %3580 = vmatprep.subr.mxu0 0.0
        %3581 = vmatpush1.msra.mxu0 0.0
        %3582 = vmatprep.subr.mxu0 0.0
        %3583 = vmatpush1.msra.mxu0 0.0
        %3584 = vmatprep.subr.mxu0 0.0
        %3585 = vmatpush1.msra.mxu0 0.0
        %3586 = vmatprep.subr.mxu0 0.0
        %3587 = vmatpush1.msra.mxu0 0.0
        %3588 = vmatprep.subr.mxu0 0.0
        %3589 = vmatpush1.msra.mxu0 0.0
        %3590 = vmatprep.subr.mxu0 0.0
        %3591 = vmatpush1.msra.mxu0 0.0
        %3592 = vmatprep.subr.mxu0 0.0
        %3593 = vmatpush1.msra.mxu0 0.0
        %3594 = vmatprep.subr.mxu0 0.0
        %3595 = vmatpush1.msra.mxu0 0.0
        %3596 = vmatprep.subr.mxu0 0.0
        %3597 = vmatpush1.msra.mxu0 0.0
        %3598 = vmatprep.subr.mxu0 0.0
        %3599 = vmatpush1.msra.mxu0 0.0
        %3600 = vmatprep.subr.mxu0 0.0
        %3601 = vmatpush1.msra.mxu0 0.0
        %3602 = vmatprep.subr.mxu0 0.0
        %3603 = vmatpush1.msra.mxu0 0.0
        %3604 = vmatprep.subr.mxu0 0.0
        %3605 = vmatpush1.msra.mxu0 0.0
        %3606 = vmatprep.subr.mxu0 0.0
        %3607 = vmatpush1.msra.mxu0 0.0
        %3608 = vmatprep.subr.mxu0 0.0
        %3609 = vmatpush1.msra.mxu0 0.0
        %3610 = vmatprep.subr.mxu0 0.0
        %3611 = vmatpush1.msra.mxu0 0.0
        %3612 = vmatprep.subr.mxu0 0.0
        %3613 = vmatpush1.msra.mxu0 0.0
        %3614 = vmatprep.subr.mxu0 0.0
        %3615 = vmatpush1.msra.mxu0 0.0
        %3616 = vmatprep.subr.mxu0 0.0
        %3617 = vmatpush1.msra.mxu0 0.0
        %3618 = vmatprep.mubr.f32.mxu0 0.0
        %3619 = vmatmul.mubr.f32.gmra.mrb[0].mxu0 %v3552
        %v3620 = vpop.f32.mrb[0].mxu0
        %v3621 = vadd.f32 0.0, %v3620
        %v3622 = vpop.f32.mrb[0].mxu0
        %3623 = vdwg.mxu0
        %v3625 = vrot.slane %v3621, 1
        %v3626 = vrot.slane %v3621, 2
        %v3629 = vadd.f32 %v1513, %v3625
        %v3630 = vadd.f32 %v1514, %v3626
        %v3631 = vsub.f32 0.0, %v3629
        %v3632 = vsub.f32 0.0, %v3630
        %v3633 = vmul.f32 %v3631, 1.442695
        %v3634 = vpow.pop %v3633
        %v3635 = vmul.f32 %v3632, 1.442695
        %v3636 = vpow.pop %v3635
        %v3637 = vadd.f32 %v3634, 1.0
        %v3638 = vadd.f32 %v3636, 1.0
        %v3639 = vrcp.pop %v3637
        %v3640 = vmul.f32 1.0, %v3639
        %v3641 = vrcp.pop %v3638
        %v3642 = vmul.f32 1.0, %v3641
        %v3643 = vtanh.pop %v3629
        %v3644 = vtanh.pop %v3630
        %v3647 = vrot.slane %v3392, 7
        %v3648 = vrot.slane %v3393, 7
        %v3651 = vmul.f32 %v3640, %v3647
        %v3652 = vmul.f32 %v3642, %v3648
        %3655 = vrot.lane.b32.xlu0 %v3643, 112
        %v3656 = vpop.permute.xlu0 %3655
        %3657 = vrot.lane.b32.xlu0 %v3644, 112
        %v3658 = vpop.permute.xlu0 %3657
        %v3661 = vmul.f32 %v3640, %v3656
        %v3662 = vmul.f32 %v3642, %v3658
        %3665 = vrot.lane.b32.xlu0 %v3661, 8
        %v3666 = vpop.permute.xlu0 %3665
        %3667 = vrot.lane.b32.xlu0 %v3662, 8
        %v3668 = vpop.permute.xlu0 %3667
        %v3671 = vadd.f32 %v3651, %v3666
        %v3672 = vadd.f32 %v3652, %v3668
        %v3673 = vtanh.pop %v3671
        %v3674 = vtanh.pop %v3672
        %3677 = vrot.lane.b32.xlu0 %v3673, 16
        %v3678 = vpop.permute.xlu0 %3677
        %3679 = vrot.lane.b32.xlu0 %v3674, 16
        %v3680 = vpop.permute.xlu0 %3679
        %v3683 = vmul.f32 %v3640, %v3678
        %v3684 = vmul.f32 %v3642, %v3680
        %v3687 = vrot.slane %v3543, 1
        %v3688 = vsel %vm1871, %v3544, %v3687
        %3689 = vrot.lane.b32.xlu0 %v3688, 104
        %v3690 = vpop.permute.xlu0 %3689
        %v3691 = vsel %vm1353, %v3690, 0
        %3693 = vmatprep.subr.mxu0 0.0
        %3694 = vmatpush1.msra.mxu0 %v1615
        %3695 = vmatprep.subr.mxu0 0.0
        %3696 = vmatpush1.msra.mxu0 0.0
        %3697 = vmatprep.subr.mxu0 0.0
        %3698 = vmatpush1.msra.mxu0 0.0
        %3699 = vmatprep.subr.mxu0 0.0
        %3700 = vmatpush1.msra.mxu0 0.0
        %3701 = vmatprep.subr.mxu0 0.0
        %3702 = vmatpush1.msra.mxu0 0.0
        %3703 = vmatprep.subr.mxu0 0.0
        %3704 = vmatpush1.msra.mxu0 0.0
        %3705 = vmatprep.subr.mxu0 0.0
        %3706 = vmatpush1.msra.mxu0 0.0
        %3707 = vmatprep.subr.mxu0 0.0
        %3708 = vmatpush1.msra.mxu0 0.0
        %3709 = vmatprep.subr.mxu0 0.0
        %3710 = vmatpush1.msra.mxu0 0.0
        %3711 = vmatprep.subr.mxu0 0.0
        %3712 = vmatpush1.msra.mxu0 0.0
        %3713 = vmatprep.subr.mxu0 0.0
        %3714 = vmatpush1.msra.mxu0 0.0
        %3715 = vmatprep.subr.mxu0 0.0
        %3716 = vmatpush1.msra.mxu0 0.0
        %3717 = vmatprep.subr.mxu0 0.0
        %3718 = vmatpush1.msra.mxu0 0.0
        %3719 = vmatprep.subr.mxu0 0.0
        %3720 = vmatpush1.msra.mxu0 0.0
        %3721 = vmatprep.subr.mxu0 0.0
        %3722 = vmatpush1.msra.mxu0 0.0
        %3723 = vmatprep.subr.mxu0 0.0
        %3724 = vmatpush1.msra.mxu0 0.0
        %3725 = vmatprep.subr.mxu0 0.0
        %3726 = vmatpush1.msra.mxu0 0.0
        %3727 = vmatprep.subr.mxu0 0.0
        %3728 = vmatpush1.msra.mxu0 0.0
        %3729 = vmatprep.subr.mxu0 0.0
        %3730 = vmatpush1.msra.mxu0 0.0
        %3731 = vmatprep.subr.mxu0 0.0
        %3732 = vmatpush1.msra.mxu0 0.0
        %3733 = vmatprep.subr.mxu0 0.0
        %3734 = vmatpush1.msra.mxu0 0.0
        %3735 = vmatprep.subr.mxu0 0.0
        %3736 = vmatpush1.msra.mxu0 0.0
        %3737 = vmatprep.subr.mxu0 0.0
        %3738 = vmatpush1.msra.mxu0 0.0
        %3739 = vmatprep.subr.mxu0 0.0
        %3740 = vmatpush1.msra.mxu0 0.0
        %3741 = vmatprep.subr.mxu0 0.0
        %3742 = vmatpush1.msra.mxu0 0.0
        %3743 = vmatprep.subr.mxu0 0.0
        %3744 = vmatpush1.msra.mxu0 0.0
        %3745 = vmatprep.subr.mxu0 0.0
        %3746 = vmatpush1.msra.mxu0 0.0
        %3747 = vmatprep.subr.mxu0 0.0
        %3748 = vmatpush1.msra.mxu0 0.0
        %3749 = vmatprep.subr.mxu0 0.0
        %3750 = vmatpush1.msra.mxu0 0.0
        %3751 = vmatprep.subr.mxu0 0.0
        %3752 = vmatpush1.msra.mxu0 0.0
        %3753 = vmatprep.subr.mxu0 0.0
        %3754 = vmatpush1.msra.mxu0 0.0
        %3755 = vmatprep.subr.mxu0 0.0
        %3756 = vmatpush1.msra.mxu0 0.0
        %3757 = vmatprep.mubr.f32.mxu0 0.0
        %3758 = vmatmul.mubr.f32.gmra.mrb[0].mxu0 %v3691
        %v3759 = vpop.f32.mrb[0].mxu0
        %v3760 = vadd.f32 0.0, %v3759
        %v3761 = vpop.f32.mrb[0].mxu0
        %3762 = vdwg.mxu0
        %v3764 = vrot.slane %v3760, 1
        %v3767 = vadd.f32 %v1612, %v3760
        %v3768 = vadd.f32 %v1613, %v3764
        %v3769 = vsub.f32 0.0, %v3767
        %v3770 = vsub.f32 0.0, %v3768
        %v3771 = vmul.f32 %v3769, 1.442695
        %v3772 = vpow.pop %v3771
        %v3773 = vmul.f32 %v3770, 1.442695
        %v3774 = vpow.pop %v3773
        %v3775 = vadd.f32 %v3772, 1.0
        %v3776 = vadd.f32 %v3774, 1.0
        %v3777 = vrcp.pop %v3775
        %v3778 = vmul.f32 1.0, %v3777
        %v3779 = vrcp.pop %v3776
        %v3780 = vmul.f32 1.0, %v3779
        %v3781 = vtanh.pop %v3767
        %v3782 = vtanh.pop %v3768
        %v3785 = vrot.slane %v3531, 1
        %v3786 = vrot.slane %v3532, 1
        %v3789 = vmul.f32 %v3778, %v3785
        %v3790 = vmul.f32 %v3780, %v3786
        %3793 = vrot.lane.b32.xlu0 %v3781, 112
        %v3794 = vpop.permute.xlu0 %3793
        %3795 = vrot.lane.b32.xlu0 %v3782, 112
        %v3796 = vpop.permute.xlu0 %3795
        %v3799 = vmul.f32 %v3778, %v3794
        %v3800 = vmul.f32 %v3780, %v3796
        %3803 = vrot.lane.b32.xlu0 %v3799, 8
        %v3804 = vpop.permute.xlu0 %3803
        %3805 = vrot.lane.b32.xlu0 %v3800, 8
        %v3806 = vpop.permute.xlu0 %3805
        %v3809 = vadd.f32 %v3789, %v3804
        %v3810 = vadd.f32 %v3790, %v3806
        %v3811 = vtanh.pop %v3809
        %v3812 = vtanh.pop %v3810
        %3815 = vrot.lane.b32.xlu0 %v3811, 16
        %v3816 = vpop.permute.xlu0 %3815
        %3817 = vrot.lane.b32.xlu0 %v3812, 16
        %v3818 = vpop.permute.xlu0 %3817
        %v3821 = vmul.f32 %v3778, %v3816
        %v3822 = vmul.f32 %v3780, %v3818
        %v3825 = vrot.slane %v3684, 7
        %3826 = vrot.lane.b32.xlu0 %v3683, 104
        %v3827 = vpop.permute.xlu0 %3826
        %3828 = vrot.lane.b32.xlu0 %v3825, 104
        %v3829 = vpop.permute.xlu0 %3828
        %v3834 = vrot.slane %v3821, 1
        %3835 = vrot.lane.b32.xlu0 %v3834, 112
        %v3836 = vpop.permute.xlu0 %3835
        %3837 = vrot.lane.b32.xlu0 %v3822, 112
        %v3838 = vpop.permute.xlu0 %3837
        %v3841 = vsel %vm1353, %v3827, %v3836
        %v3842 = vsel %vm1353, %v3829, %v3838
        %v3843 = vmul.f32 %v3841, %v3841
        %vm3844 = vcmask 130055
        %v3845 = vsel %vm3844, %v3843, 0.0
        %3846 = vadd.xlane.f32.xlu0 %v3845
        %v3847 = vpop.xlane.xlu0 %3846
        %v3848 = vrsqrt.pop %v3847
        %v3849 = vmul.f32 %v3847, %v3848
        %vm3850 = vcmp.eq.f32.partialorder %v3847, inf
        %v3851 = vsel %vm3850, %v3847, %v3849
        %vm3852 = vcmp.eq.f32.partialorder %v3847, 0.0
        %v3853 = vand.u32 %v3847, 2147483648
        %v3854 = vsel %vm3852, %v3853, %v3851
        %v3855 = vmax.f32 %v3854, 1e-12
        %v3856 = vrcp.pop %v3855
        %v3857 = vmul.f32 %v3841, %v3856
        %v3858 = vmul.f32 %v3842, %v3842
        %vm3859 = vcmask 122880
        %v3860 = vsel %vm3859, %v3858, 0.0
        %3861 = vadd.xlane.f32.xlu0 %v3860
        %v3862 = vpop.xlane.xlu0 %3861
        %v3863 = vrsqrt.pop %v3862
        %v3864 = vmul.f32 %v3862, %v3863
        %vm3865 = vcmp.eq.f32.partialorder %v3862, inf
        %v3866 = vsel %vm3865, %v3862, %v3864
        %vm3867 = vcmp.eq.f32.partialorder %v3862, 0.0
        %v3868 = vand.u32 %v3862, 2147483648
        %v3869 = vsel %vm3867, %v3868, %v3866
        %v3870 = vmax.f32 %v3869, 1e-12
        %v3871 = vrcp.pop %v3870
        %v3872 = vmul.f32 %v3842, %v3871
        %3873 = vst.msk [vmem:[%s1041 - $0x7] sm:$0x80] %vm3844, %v3857
        %3874 = vst.msk [vmem:[%s1047] sm:$0x1] %vm3859, %v3872
        %v3875 = vmul.f32 %v3857, %v3857
        %v3876 = vsel %vm3844, %v3875, 0.0
        %3877 = vadd.xlane.f32.xlu0 %v3876
        %v3878 = vpop.xlane.xlu0 %3877
        %v3879 = vrsqrt.pop %v3878
        %v3880 = vmul.f32 %v3878, %v3879
        %vm3881 = vcmp.eq.f32.partialorder %v3878, inf
        %v3882 = vsel %vm3881, %v3878, %v3880
        %vm3883 = vcmp.eq.f32.partialorder %v3878, 0.0
        %v3884 = vand.u32 %v3878, 2147483648
        %v3885 = vsel %vm3883, %v3884, %v3882
        %v3886 = vmul.f32 %v3872, %v3872
        %v3887 = vsel %vm3859, %v3886, 0.0
        %3888 = vadd.xlane.f32.xlu0 %v3887
        %v3889 = vpop.xlane.xlu0 %3888
        %v3890 = vrsqrt.pop %v3889
        %v3891 = vmul.f32 %v3889, %v3890
        %vm3892 = vcmp.eq.f32.partialorder %v3889, inf
        %v3893 = vsel %vm3892, %v3889, %v3891
        %vm3894 = vcmp.eq.f32.partialorder %v3889, 0.0
        %v3895 = vand.u32 %v3889, 2147483648
        %v3896 = vsel %vm3894, %v3895, %v3893
        %v3898 = vrot.slane %v3872, 1
        %v3900 = vmul.f32 %v3857, %v3898
        %v3901 = vsel %vm3844, %v3900, 0.0
        %3902 = vadd.xlane.f32.xlu0 %v3901
        %v3903 = vpop.xlane.xlu0 %3902
        %v3905 = vrot.slane %v3896, 1
        %v3907 = vmul.f32 %v3885, %v3905
        %v3908 = vmax.f32 %v3907, 1e-08
        %v3909 = vrcp.pop %v3908
        %v3910 = vmul.f32 %v3903, %v3909
        %v3911 = vld [vmem:[#allocation2] sm:$0x1]
        %v3913 = vlaneseq
        %v3914 = vshrl.u32 %v3913, 7
        %v3915 = vsub.s32 0, %v3914
        %v3916 = vrot.slane %v3911, %v3915
        %v3918 = vmul.f32 %v3910, %v3916
        %v3919 = vld [vmem:[#allocation3] sm:$0x1]
        %v3921 = vlaneseq
        %v3922 = vshrl.u32 %v3921, 7
        %v3923 = vsub.s32 0, %v3922
        %v3924 = vrot.slane %v3919, %v3923
        %v3926 = vadd.f32 %v3918, %v3924
        %vm3927 = vcmask 7175
        %3928 = vst.msk [vmem:[%s1035 - $0x7] sm:$0x80] %vm3927, %v3926
        %s3929 = sand.u32 %s541, 1
        %s3930 = scalar_lea.sflag [#allocation6], %s3929
        %s3931 = sand.u32 %s541, 1
        %s3932 = scalar_lea.vmem [#allocation36], %s3931
        %s3933 = sand.u32 %s61, 1
        %s3934 = scalar_lea.sflag [#allocation38], %s3933
        %s3935 = sand.u32 %s567, 1
        %s3936 = scalar_lea.vmem [#allocation37], %s3935
        %s3937 = sand.u32 %s61, 1
        %s3938 = scalar_lea.sflag [#allocation38], %s3937
        %s3939 = sand.u32 %s593, 1
        %s3940 = scalar_lea.vmem [#allocation39], %s3939
        // Predicated region
        $region189: #{tpu_custom_call.1} parent=107 // pred_check
          %p3941 = pneg %p551
        $region190: #{tpu_custom_call.1} parent=107 // pred_check_branch
          %3943 = sbr.rel (%p3941) target = $region192
        $region191: #{tpu_custom_call.1} parent=107 // pred_region
          %s3945 = ssub.s32 16, 16
          %3946 = vsyncadd %s3930, %s3945
          %s3947 = smul.addr %s61, 16
          %s3948 = scalar_lea.hbm %s22, %s3947
          %s3950 = sshll.u32 %s3932, 4
          %s3951 = int_to_ptr.vmem [resolvable:$true] %s3950
          %3953 = dma.vmem_to_hbm [thread:$0]  %s3951, 16, %s3948, %s3930
        $region192: #{tpu_custom_call.1} parent=107 // pred_fallthru
          _
        // Predicated region
        $region193: #{tpu_custom_call.1} parent=107 // pred_check
          %p3954 = pneg %p577
        $region194: #{tpu_custom_call.1} parent=107 // pred_check_branch
          %3956 = sbr.rel (%p3954) target = $region196
        $region195: #{tpu_custom_call.1} parent=107 // pred_region
          %s3958 = ssub.s32 16, 16
          %3959 = vsyncadd %s3934, %s3958
          %s3960 = smul.addr %s61, 16
          %s3961 = scalar_lea.hbm %s23, %s3960
          %s3963 = sshll.u32 %s3936, 4
          %s3964 = int_to_ptr.vmem [resolvable:$true] %s3963
          %3966 = dma.vmem_to_hbm [thread:$0]  %s3964, 16, %s3961, %s3934
        $region196: #{tpu_custom_call.1} parent=107 // pred_fallthru
          _
        // Predicated region
        $region197: #{tpu_custom_call.1} parent=107 // pred_check
          %p3967 = pneg %p603
        $region198: #{tpu_custom_call.1} parent=107 // pred_check_branch
          %3969 = sbr.rel (%p3967) target = $region200
        $region199: #{tpu_custom_call.1} parent=107 // pred_region
          %s3971 = ssub.s32 16, 16
          %3972 = vsyncadd %s3938, %s3971
          %s3973 = smul.addr %s61, 16
          %s3974 = scalar_lea.hbm %s24, %s3973
          %s3976 = sshll.u32 %s3940, 4
          %s3977 = int_to_ptr.vmem [resolvable:$true] %s3976
          %3979 = dma.vmem_to_hbm [thread:$0]  %s3977, 16, %s3974, %s3938
        $region200: #{tpu_custom_call.1} parent=107 // pred_fallthru
          _
      $region108: #{tpu_custom_call.1} parent=5 // pred_fallthru
        _
      %p3980 = scmp.le.s32.totalorder 2, %s56
      // Predicated region
      $region201: #{tpu_custom_call.1} parent=5 // pred_check
        %p3981 = pneg %p3980
      $region202: #{tpu_custom_call.1} parent=5 // pred_check_branch
        %3983 = sbr.rel (%p3981) target = $region204
      $region203: #{tpu_custom_call.1} parent=5 // pred_region
        %s3984 = ssub.s32 %s56, 2
        // Predicated region
        $region205: #{tpu_custom_call.1} parent=203 // pred_check
          %p3985 = pneg %p557
        $region206: #{tpu_custom_call.1} parent=203 // pred_check_branch
          %3987 = sbr.rel (%p3985) target = $region208
        $region207: #{tpu_custom_call.1} parent=203 // pred_region
          %s3988 = sand.u32 %s542, 1
          %s3989 = scalar_lea.sflag [#allocation6], %s3988
          %s3990 = sand.u32 %s542, 1
          %s3991 = scalar_lea.vmem [#allocation36], %s3990
          %3992 = dma.done %s3989, 16
        $region208: #{tpu_custom_call.1} parent=203 // pred_fallthru
          _
        // Predicated region
        $region209: #{tpu_custom_call.1} parent=203 // pred_check
          %p3993 = pneg %p583
        $region210: #{tpu_custom_call.1} parent=203 // pred_check_branch
          %3995 = sbr.rel (%p3993) target = $region212
        $region211: #{tpu_custom_call.1} parent=203 // pred_region
          %s3996 = sand.u32 %s62, 1
          %s3997 = scalar_lea.sflag [#allocation38], %s3996
          %s3998 = sand.u32 %s568, 1
          %s3999 = scalar_lea.vmem [#allocation37], %s3998
          %4000 = dma.done %s3997, 16
        $region212: #{tpu_custom_call.1} parent=203 // pred_fallthru
          _
        // Predicated region
        $region213: #{tpu_custom_call.1} parent=203 // pred_check
          %p4001 = pneg %p609
        $region214: #{tpu_custom_call.1} parent=203 // pred_check_branch
          %4003 = sbr.rel (%p4001) target = $region216
        $region215: #{tpu_custom_call.1} parent=203 // pred_region
          %s4004 = sand.u32 %s62, 1
          %s4005 = scalar_lea.sflag [#allocation38], %s4004
          %s4006 = sand.u32 %s594, 1
          %s4007 = scalar_lea.vmem [#allocation39], %s4006
          %4008 = dma.done %s4005, 16
        $region216: #{tpu_custom_call.1} parent=203 // pred_fallthru
          _
      $region204: #{tpu_custom_call.1} parent=5 // pred_fallthru
        _
    $region6: #{tpu_custom_call.1} parent=1 // loop_footer
      %s60 = sadd.s32 1, %s56
    $region7: #{tpu_custom_call.1} parent=1 // loop_footer_branch
      %55 = sbr.rel target = $region3
    $region8: #{tpu_custom_call.1} parent=1 // loop_exit
      _
    %4009 = vsyncpa [#allocation5], 1
    %s4010 = scalar_lea.sflag [#allocation5], 1
    %4011 = vsyncpa %s4010, 1
    %4012 = vsyncpa [#allocation8], 1
    %s4013 = scalar_lea.sflag [#allocation8], 1
    %4014 = vsyncpa %s4013, 1
    %4015 = vsyncpa [#allocation11], 1
    %4016 = vsyncpa [#allocation14], 1
    %4017 = vsyncpa [#allocation17], 1
    %4018 = vsyncpa [#allocation20], 1
    %4019 = vsyncpa [#allocation23], 1
    %4020 = vsyncpa [#allocation26], 1
    %4021 = vsyncpa [#allocation29], 1
    %4022 = vsyncpa [#allocation32], 1
    %4023 = vsyncpa [#allocation35], 1
    %4024 = vsyncpa [#allocation6], 1
    %s4025 = scalar_lea.sflag [#allocation6], 1
    %4026 = vsyncpa %s4025, 1
    %4027 = vsyncpa [#allocation38], 1
    %s4028 = scalar_lea.sflag [#allocation38], 1
    %4029 = vsyncpa %s4028, 1

</llo_original>
